<compile_context>
chip_gen: v6e
topology: v6e:2x2x1
jax: 0.10.0
libtpu: 0.0.40
codegen_flags: <defaults>
</compile_context>

<pallas_src>
import functools

import jax
import jax.numpy as jnp
from jax import lax
from jax.experimental import pallas as pl
from jax.experimental.pallas import tpu as pltpu

EXPANSION = 4
BN_EPS = 1e-5
LANE = 128
MAX_IMAGES_PER_STEP = 8


def _round_up(x, m):
    return (x + m - 1) // m * m


def _largest_divisor_leq(n, cap):
    for d in range(min(n, cap), 0, -1):
        if n % d == 0:
            return d
    return 1


# ------------------------------ Pallas kernel --------------------------------

def _bottleneck_kernel(x_ref, w1_ref, b1_ref, w2_ref, b2_ref, w3_ref, b3_ref,
                       o_ref, xp_ref, *, H, W, stride, has_projection, cout):
    """Fused Bottleneck block for Nb images per grid step.

    x_ref  : (Nb, H, W, Cin)          f32   NHWC input block
    w1_ref : (Cin, Pp)                bf16  conv1 (BN1 scale folded in)
    w2_ref : (3, 3*Pp, Pp)            bf16  conv2, K packed as kx*Pp + cin
    w3_ref : (Pp [+Cin], Coutp)       bf16  conv3 [fused with projection]
    b*_ref : (1, C)                   f32   folded BN biases
    o_ref  : (Nb, Hout, Wout, Cout)   f32
    xp_ref : (Nb, H+2, W, 3*Pp)       bf16  dx-packed conv2 operand (VMEM)
    """
    Nb, _, _, cin = x_ref.shape
    Pp = w1_ref.shape[-1]
    Hout = (H - 1) // stride + 1
    Wout = (W - 1) // stride + 1
    M = Nb * H * W
    Mout = Nb * Hout * Wout

    x = x_ref[...]                                        # (Nb, H, W, Cin) f32
    x2d = x.reshape(M, cin)
    x2d_bf = x2d.astype(jnp.bfloat16)

    # ---- conv1 (1x1, scale folded into weights) + bias + relu --------------
    y1 = jnp.dot(x2d_bf, w1_ref[...], preferred_element_type=jnp.float32)
    y1 = jnp.maximum(y1 + b1_ref[...], 0.0)               # (M, Pp) f32
    y1 = y1.reshape(Nb, H, W, Pp)

    # ---- build the dx-packed conv2 operand in VMEM --------------------------
    # lane block kx (width Pp) holds the zero-padded feature map shifted by
    # (kx - 1) along x; rows 0 and H+1 are the y halo (zeroed each step).
    zc = jnp.zeros((Nb, H, 1, Pp), jnp.float32)
    packed = jnp.concatenate(
        [jnp.concatenate([zc, y1[:, :, :W - 1, :]], axis=2),   # kx = 0
         y1,                                                   # kx = 1
         jnp.concatenate([y1[:, :, 1:, :], zc], axis=2)],      # kx = 2
        axis=3)                                                # (Nb,H,W,3*Pp)
    zrow = jnp.zeros((Nb, 1, W, 3 * Pp), jnp.bfloat16)
    xp_ref[:, 0:1, :, :] = zrow
    xp_ref[:, H + 1:H + 2, :, :] = zrow
    xp_ref[:, 1:H + 1, :, :] = packed.astype(jnp.bfloat16)

    # ---- conv2 (3x3) as 3 matmuls with K = 3*Pp -----------------------------
    def tap(ky):
        rows = (Hout - 1) * stride + 1
        t = xp_ref[:, ky:ky + rows, :, :]                  # stacked-dim slice
        if stride > 1:
            t = t[:, ::stride, ::stride, :]
        return t.reshape(Mout, 3 * Pp)

    acc = jnp.dot(tap(0), w2_ref[0], preferred_element_type=jnp.float32)
    acc = acc + jnp.dot(tap(1), w2_ref[1], preferred_element_type=jnp.float32)
    acc = acc + jnp.dot(tap(2), w2_ref[2], preferred_element_type=jnp.float32)
    y2 = jnp.maximum(acc + b2_ref[...], 0.0)               # (Mout, Pp) f32

    # ---- shortcut operand ----------------------------------------------------
    if stride == 1:
        xs2d = x2d
        xs2d_bf = x2d_bf
    else:
        xs = x[:, ::stride, ::stride, :]
        xs2d = xs.reshape(Mout, cin)
        xs2d_bf = xs2d.astype(jnp.bfloat16)

    # ---- conv3 (1x1) [+ fused projection shortcut] + bias --------------------
    if has_projection:
        lhs = jnp.concatenate([y2.astype(jnp.bfloat16), xs2d_bf], axis=1)
    else:
        lhs = y2.astype(jnp.bfloat16)
    y3 = jnp.dot(lhs, w3_ref[...], preferred_element_type=jnp.float32)
    y3 = y3 + b3_ref[...]

    out = y3[:, :cout]
    if not has_projection:
        out = out + xs2d                                   # f32 identity add
    out = jnp.maximum(out, 0.0)
    o_ref[...] = out.reshape(Nb, Hout, Wout, cout).astype(o_ref.dtype)


# -------------------------------- BN folding ---------------------------------

def _fold(gamma, beta, mean, var):
    scale = gamma / jnp.sqrt(var + BN_EPS)
    bias = beta - mean * scale
    return scale.astype(jnp.float32), bias.astype(jnp.float32)


def _prepare_folded(params, has_projection):
    """Fold eval-mode BN scales into conv weights; keep per-channel biases."""
    s1, b1 = _fold(params["g1"], params["beta1"], params["m1"], params["v1"])
    s2, b2 = _fold(params["g2"], params["beta2"], params["m2"], params["v2"])
    s3, b3 = _fold(params["g3"], params["beta3"], params["m3"], params["v3"])
    folded = {
        "w1f": params["w1"] * s1[None, :], "b1": b1,
        "w2f": params["w2"] * s2[None, None, None, :], "b2": b2,
        "w3f": params["w3"] * s3[None, :], "b3": b3,
    }
    if has_projection:
        ssc, bsc = _fold(params["gsc"], params["betasc"],
                         params["msc"], params["vsc"])
        folded["wscf"] = params["wsc"] * ssc[None, :]
        folded["bsc"] = bsc
    return folded


# -------------------------------- Host wrapper --------------------------------

@functools.partial(jax.jit, static_argnames=("stride",))
def bottleneck_forward(x_nchw, params, stride=1):
    """Forward pass of the Bottleneck block (eval-mode BN).  NCHW in/out."""
    x = jnp.transpose(x_nchw, (0, 2, 3, 1)).astype(jnp.float32)   # -> NHWC
    N, H, W, Cin = x.shape
    P = params["w1"].shape[1]
    Cout = EXPANSION * P
    has_projection = (stride != 1) or (Cin != Cout)

    Pp = _round_up(P, LANE)              # lane-padded inner channel count
    Coutp = _round_up(Cout, LANE)        # lane-padded matmul-N (store is Cout)
    Hout = (H - 1) // stride + 1
    Wout = (W - 1) // stride + 1
    Nb = _largest_divisor_leq(N, MAX_IMAGES_PER_STEP)

    f = _prepare_folded(params, has_projection)

    w1 = jnp.pad(f["w1f"], ((0, 0), (0, Pp - P))).astype(jnp.bfloat16)
    b1 = jnp.pad(f["b1"], (0, Pp - P))[None, :]
    # conv2 HWIO -> (ky, kx*Pp + cin, cout): matches the xp lane packing.
    w2 = jnp.pad(f["w2f"], ((0, 0), (0, 0), (0, Pp - P), (0, Pp - P)))
    w2 = w2.astype(jnp.bfloat16).reshape(3, 3 * Pp, Pp)
    b2 = jnp.pad(f["b2"], (0, Pp - P))[None, :]
    w3 = jnp.pad(f["w3f"], ((0, Pp - P), (0, Coutp - Cout))).astype(jnp.bfloat16)
    if has_projection:
        wsc = jnp.pad(f["wscf"], ((0, 0), (0, Coutp - Cout))).astype(jnp.bfloat16)
        w3 = jnp.concatenate([w3, wsc], axis=0)            # (Pp + Cin, Coutp)
        b3 = jnp.pad(f["b3"] + f["bsc"], (0, Coutp - Cout))[None, :]
    else:
        b3 = jnp.pad(f["b3"], (0, Coutp - Cout))[None, :]

    inputs = [x, w1, b1, w2, b2, w3, b3]

    def _img_map(n):
        return (n, 0, 0, 0)

    def _const_spec(a):
        nd = a.ndim
        return pl.BlockSpec(a.shape, lambda n, _nd=nd: (0,) * _nd)

    in_specs = [pl.BlockSpec((Nb, H, W, Cin), _img_map)]
    in_specs += [_const_spec(a) for a in inputs[1:]]
    out_specs = pl.BlockSpec((Nb, Hout, Wout, Cout), _img_map)

    flops = 2 * N * H * W * Cin * P
    flops += 2 * N * Hout * Wout * 9 * P * P
    flops += 2 * N * Hout * Wout * P * Cout
    if has_projection:
        flops += 2 * N * Hout * Wout * Cin * Cout
    bytes_accessed = (x.size * 4 + w1.size * 2 + w2.size * 2 + w3.size * 2
                      + b1.size * 4 + b2.size * 4 + b3.size * 4
                      + N * Hout * Wout * Cout * 4)

    kernel = functools.partial(_bottleneck_kernel, H=H, W=W, stride=stride,
                               has_projection=has_projection, cout=Cout)

    out = pl.pallas_call(
        kernel,
        out_shape=jax.ShapeDtypeStruct((N, Hout, Wout, Cout), jnp.float32),
        grid_spec=pltpu.PrefetchScalarGridSpec(
            num_scalar_prefetch=0,
            grid=(N // Nb,),
            in_specs=in_specs,
            out_specs=out_specs,
            scratch_shapes=[pltpu.VMEM((Nb, H + 2, W, 3 * Pp), jnp.bfloat16)],
        ),
        compiler_params=pltpu.CompilerParams(
            dimension_semantics=("parallel",),
        ),
        cost_estimate=pl.CostEstimate(flops=flops, transcendentals=0,
                                      bytes_accessed=bytes_accessed),
    )(*inputs)

    return jnp.transpose(out, (0, 3, 1, 2))                # back to NCHW


# ----------------------------- Pure-JAX reference ----------------------------
# Mirrors the kernel's numerics: folded-BN bf16 weights on the MXU path, f32
# accumulation, f32 biases, f32 identity residual (eval-mode BN).

def bottleneck_reference(x_nchw, params, stride=1):
    x = jnp.transpose(x_nchw, (0, 2, 3, 1)).astype(jnp.float32)
    Cin = x.shape[-1]
    P = params["w1"].shape[1]
    Cout = EXPANSION * P
    has_projection = (stride != 1) or (Cin != Cout)
    f = _prepare_folded(params, has_projection)

    def conv(inp, w_hwio, s, padding):
        return lax.conv_general_dilated(
            inp.astype(jnp.bfloat16), w_hwio.astype(jnp.bfloat16),
            window_strides=(s, s), padding=padding,
            dimension_numbers=("NHWC", "HWIO", "NHWC"),
            preferred_element_type=jnp.float32)

    out = jnp.maximum(conv(x, f["w1f"][None, None], 1, "VALID") + f["b1"], 0.0)
    out = conv(out, f["w2f"], stride, ((1, 1), (1, 1))) + f["b2"]
    out = jnp.maximum(out, 0.0)
    out = conv(out, f["w3f"][None, None], 1, "VALID") + f["b3"]
    if has_projection:
        sc = conv(x, f["wscf"][None, None], stride, "VALID") + f["bsc"]
    else:
        sc = x
    out = jnp.maximum(out + sc, 0.0)
    return jnp.transpose(out, (0, 3, 1, 2))


# ------------------------------------ main -----------------------------------

def _make_params(key, in_planes, planes):
    cout = EXPANSION * planes
    ks = jax.random.split(key, 8)
    p = {}
    # conv weights in kernel-friendly layout: (Cin, Cout) for 1x1, HWIO for 3x3
    p["w1"] = 0.2 * jax.random.normal(ks[0], (in_planes, planes), jnp.float32)
    p["w2"] = 0.2 * jax.random.normal(ks[1], (3, 3, planes, planes), jnp.float32)
    p["w3"] = 0.2 * jax.random.normal(ks[2], (planes, cout), jnp.float32)
    p["wsc"] = 0.2 * jax.random.normal(ks[3], (in_planes, cout), jnp.float32)

    def bn(k, c, tag):
        k1, k2, k3, k4 = jax.random.split(k, 4)
        p["g" + tag] = 1.0 + 0.1 * jax.random.normal(k1, (c,), jnp.float32)
        p["beta" + tag] = 0.1 * jax.random.normal(k2, (c,), jnp.float32)
        p["m" + tag] = 0.1 * jax.random.normal(k3, (c,), jnp.float32)
        p["v" + tag] = jax.random.uniform(k4, (c,), jnp.float32, 0.5, 1.5)

    bn(ks[4], planes, "1")
    bn(ks[5], planes, "2")
    bn(ks[6], cout, "3")
    bn(ks[7], cout, "sc")
    return p


if __name__ == "__main__":
    key = jax.random.PRNGKey(0)
    # (N, Cin, H, W, planes, stride): first config exercises the projection
    # shortcut (Cin != 4*planes), second the f32 identity shortcut.
    configs = [
        (2, 4, 16, 16, 4, 1),
        (2, 16, 16, 16, 4, 1),
    ]
    for (N, Cin, H, W, planes, stride) in configs:
        key, kx, kp = jax.random.split(key, 3)
        x = jax.random.normal(kx, (N, Cin, H, W), jnp.float32)
        params = _make_params(kp, Cin, planes)

        out = jax.block_until_ready(bottleneck_forward(x, params, stride=stride))
        ref = bottleneck_reference(x, params, stride=stride)

        Hout = (H - 1) // stride + 1
        Wout = (W - 1) // stride + 1
        assert out.shape == (N, EXPANSION * planes, Hout, Wout), out.shape
        max_err = float(jnp.max(jnp.abs(out - ref)))
        assert jnp.allclose(out, ref, rtol=1e-2, atol=1e-2), max_err

    print("KERNEL_OK")
</pallas_src>

<mosaic_0001>
module attributes {stable_mosaic.version = 11 : i64} {
  func.func @_bottleneck_kernel(%arg0: i32, %arg1: memref<2x16x16x4xf32, #tpu.memory_space<vmem>>, %arg2: memref<4x128xbf16, #tpu.memory_space<vmem>>, %arg3: memref<1x128xf32, #tpu.memory_space<vmem>>, %arg4: memref<3x384x128xbf16, #tpu.memory_space<vmem>>, %arg5: memref<1x128xf32, #tpu.memory_space<vmem>>, %arg6: memref<132x128xbf16, #tpu.memory_space<vmem>>, %arg7: memref<1x128xf32, #tpu.memory_space<vmem>>, %arg8: memref<2x16x16x16xf32, #tpu.memory_space<vmem>>, %arg9: memref<2x18x16x384xbf16, #tpu.memory_space<vmem>>) attributes {dimension_semantics = [#tpu.dimension_semantics<parallel>], iteration_bounds = array<i64: 1>, scalar_prefetch = 0 : i64, scratch_operands = 1 : i64, tpu.core_type = #tpu.core_type<tc>, window_params = [{transform_indices = @transform_0, window_bounds = array<i64: 2, 16, 16, 4>}, {pipeline_mode = #tpu.pipeline_mode<synchronous>, transform_indices = @transform_1, window_bounds = array<i64: 4, 128>}, {pipeline_mode = #tpu.pipeline_mode<synchronous>, transform_indices = @transform_2, window_bounds = array<i64: 1, 128>}, {pipeline_mode = #tpu.pipeline_mode<synchronous>, transform_indices = @transform_3, window_bounds = array<i64: 3, 384, 128>}, {pipeline_mode = #tpu.pipeline_mode<synchronous>, transform_indices = @transform_4, window_bounds = array<i64: 1, 128>}, {pipeline_mode = #tpu.pipeline_mode<synchronous>, transform_indices = @transform_5, window_bounds = array<i64: 132, 128>}, {pipeline_mode = #tpu.pipeline_mode<synchronous>, transform_indices = @transform_6, window_bounds = array<i64: 1, 128>}, {transform_indices = @transform_7, window_bounds = array<i64: 2, 16, 16, 16>}]} {
    %c0 = arith.constant 0 : index
    %c0_0 = arith.constant 0 : index
    %c0_1 = arith.constant 0 : index
    %c0_2 = arith.constant 0 : index
    %0 = vector.load %arg1[%c0, %c0_0, %c0_1, %c0_2] : memref<2x16x16x4xf32, #tpu.memory_space<vmem>>, vector<2x16x16x4xf32>
    %1 = vector.shape_cast %0 : vector<2x16x16x4xf32> to vector<512x4xf32>
    %2 = arith.truncf %1 : vector<512x4xf32> to vector<512x4xbf16>
    %c0_3 = arith.constant 0 : index
    %c0_4 = arith.constant 0 : index
    %3 = vector.load %arg2[%c0_3, %c0_4] : memref<4x128xbf16, #tpu.memory_space<vmem>>, vector<4x128xbf16>
    %cst = arith.constant dense<0.000000e+00> : vector<512x128xf32>
    %4 = tpu.matmul %2, %3, %cst {dimension_numbers = #tpu.dot_dimension_numbers<[1], [0], [0], [1], [0, 0, 1, 1], [], []>} : vector<512x4xbf16>, vector<4x128xbf16>, vector<512x128xf32> -> vector<512x128xf32>
    %c0_5 = arith.constant 0 : index
    %c0_6 = arith.constant 0 : index
    %5 = vector.load %arg3[%c0_5, %c0_6] : memref<1x128xf32, #tpu.memory_space<vmem>>, vector<1x128xf32>
    %6 = vector.broadcast %5 : vector<1x128xf32> to vector<512x128xf32>
    %7 = arith.addf %4, %6 : vector<512x128xf32>
    %cst_7 = arith.constant 0.000000e+00 : f32
    %8 = vector.broadcast %cst_7 : f32 to vector<512x128xf32>
    %9 = arith.maximumf %7, %8 : vector<512x128xf32>
    %10 = vector.shape_cast %9 : vector<512x128xf32> to vector<2x16x16x128xf32>
    %cst_8 = arith.constant 0.000000e+00 : f32
    %11 = vector.broadcast %cst_8 : f32 to vector<2x16x1x128xf32>
    %12 = vector.extract_strided_slice %10 {offsets = [0, 0, 0, 0], sizes = [2, 16, 15, 128], strides = [1, 1, 1, 1]} : vector<2x16x16x128xf32> to vector<2x16x15x128xf32>
    %13 = tpu.concatenate %11, %12 in 2 : vector<2x16x1x128xf32>, vector<2x16x15x128xf32> -> vector<2x16x16x128xf32>
    %14 = vector.extract_strided_slice %10 {offsets = [0, 0, 1, 0], sizes = [2, 16, 15, 128], strides = [1, 1, 1, 1]} : vector<2x16x16x128xf32> to vector<2x16x15x128xf32>
    %15 = tpu.concatenate %14, %11 in 2 : vector<2x16x15x128xf32>, vector<2x16x1x128xf32> -> vector<2x16x16x128xf32>
    %16 = tpu.concatenate %13, %10, %15 in 3 : vector<2x16x16x128xf32>, vector<2x16x16x128xf32>, vector<2x16x16x128xf32> -> vector<2x16x16x384xf32>
    %cst_9 = arith.constant 0.000000e+00 : bf16
    %17 = vector.broadcast %cst_9 : bf16 to vector<2x1x16x384xbf16>
    %c0_10 = arith.constant 0 : index
    %c0_11 = arith.constant 0 : index
    %c0_12 = arith.constant 0 : index
    %c0_13 = arith.constant 0 : index
    %18 = vector.load %arg9[%c0_10, %c0_11, %c0_12, %c0_13] : memref<2x18x16x384xbf16, #tpu.memory_space<vmem>>, vector<2x1x16x384xbf16>
    tpu.vector_store %arg9[%c0_10, %c0_11, %c0_12, %c0_13], %17 {strides = array<i32>} : memref<2x18x16x384xbf16, #tpu.memory_space<vmem>>, vector<2x1x16x384xbf16>,
    %c0_14 = arith.constant 0 : index
    %c17 = arith.constant 17 : index
    %c0_15 = arith.constant 0 : index
    %c0_16 = arith.constant 0 : index
    %19 = vector.load %arg9[%c0_14, %c17, %c0_15, %c0_16] : memref<2x18x16x384xbf16, #tpu.memory_space<vmem>>, vector<2x1x16x384xbf16>
    tpu.vector_store %arg9[%c0_14, %c17, %c0_15, %c0_16], %17 {strides = array<i32>} : memref<2x18x16x384xbf16, #tpu.memory_space<vmem>>, vector<2x1x16x384xbf16>,
    %20 = arith.truncf %16 : vector<2x16x16x384xf32> to vector<2x16x16x384xbf16>
    %c0_17 = arith.constant 0 : index
    %c1 = arith.constant 1 : index
    %c0_18 = arith.constant 0 : index
    %c0_19 = arith.constant 0 : index
    %21 = vector.load %arg9[%c0_17, %c1, %c0_18, %c0_19] : memref<2x18x16x384xbf16, #tpu.memory_space<vmem>>, vector<2x16x16x384xbf16>
    tpu.vector_store %arg9[%c0_17, %c1, %c0_18, %c0_19], %20 {strides = array<i32>} : memref<2x18x16x384xbf16, #tpu.memory_space<vmem>>, vector<2x16x16x384xbf16>,
    %c0_20 = arith.constant 0 : index
    %c0_21 = arith.constant 0 : index
    %c0_22 = arith.constant 0 : index
    %c0_23 = arith.constant 0 : index
    %22 = vector.load %arg9[%c0_20, %c0_21, %c0_22, %c0_23] : memref<2x18x16x384xbf16, #tpu.memory_space<vmem>>, vector<2x16x16x384xbf16>
    %23 = vector.shape_cast %22 : vector<2x16x16x384xbf16> to vector<512x384xbf16>
    %c0_24 = arith.constant 0 : index
    %c0_25 = arith.constant 0 : index
    %c0_26 = arith.constant 0 : index
    %24 = vector.load %arg4[%c0_24, %c0_25, %c0_26] : memref<3x384x128xbf16, #tpu.memory_space<vmem>>, vector<1x384x128xbf16>
    %25 = vector.shape_cast %24 : vector<1x384x128xbf16> to vector<384x128xbf16>
    %cst_27 = arith.constant dense<0.000000e+00> : vector<512x128xf32>
    %26 = tpu.matmul %23, %25, %cst_27 {dimension_numbers = #tpu.dot_dimension_numbers<[1], [0], [0], [1], [0, 0, 1, 1], [], []>} : vector<512x384xbf16>, vector<384x128xbf16>, vector<512x128xf32> -> vector<512x128xf32>
    %c0_28 = arith.constant 0 : index
    %c1_29 = arith.constant 1 : index
    %c0_30 = arith.constant 0 : index
    %c0_31 = arith.constant 0 : index
    %27 = vector.load %arg9[%c0_28, %c1_29, %c0_30, %c0_31] : memref<2x18x16x384xbf16, #tpu.memory_space<vmem>>, vector<2x16x16x384xbf16>
    %28 = vector.shape_cast %27 : vector<2x16x16x384xbf16> to vector<512x384xbf16>
    %c1_32 = arith.constant 1 : index
    %c0_33 = arith.constant 0 : index
    %c0_34 = arith.constant 0 : index
    %29 = vector.load %arg4[%c1_32, %c0_33, %c0_34] : memref<3x384x128xbf16, #tpu.memory_space<vmem>>, vector<1x384x128xbf16>
    %30 = vector.shape_cast %29 : vector<1x384x128xbf16> to vector<384x128xbf16>
    %cst_35 = arith.constant dense<0.000000e+00> : vector<512x128xf32>
    %31 = tpu.matmul %28, %30, %cst_35 {dimension_numbers = #tpu.dot_dimension_numbers<[1], [0], [0], [1], [0, 0, 1, 1], [], []>} : vector<512x384xbf16>, vector<384x128xbf16>, vector<512x128xf32> -> vector<512x128xf32>
    %32 = arith.addf %26, %31 : vector<512x128xf32>
    %c0_36 = arith.constant 0 : index
    %c2 = arith.constant 2 : index
    %c0_37 = arith.constant 0 : index
    %c0_38 = arith.constant 0 : index
    %33 = vector.load %arg9[%c0_36, %c2, %c0_37, %c0_38] : memref<2x18x16x384xbf16, #tpu.memory_space<vmem>>, vector<2x16x16x384xbf16>
    %34 = vector.shape_cast %33 : vector<2x16x16x384xbf16> to vector<512x384xbf16>
    %c2_39 = arith.constant 2 : index
    %c0_40 = arith.constant 0 : index
    %c0_41 = arith.constant 0 : index
    %35 = vector.load %arg4[%c2_39, %c0_40, %c0_41] : memref<3x384x128xbf16, #tpu.memory_space<vmem>>, vector<1x384x128xbf16>
    %36 = vector.shape_cast %35 : vector<1x384x128xbf16> to vector<384x128xbf16>
    %cst_42 = arith.constant dense<0.000000e+00> : vector<512x128xf32>
    %37 = tpu.matmul %34, %36, %cst_42 {dimension_numbers = #tpu.dot_dimension_numbers<[1], [0], [0], [1], [0, 0, 1, 1], [], []>} : vector<512x384xbf16>, vector<384x128xbf16>, vector<512x128xf32> -> vector<512x128xf32>
    %38 = arith.addf %32, %37 : vector<512x128xf32>
    %c0_43 = arith.constant 0 : index
    %c0_44 = arith.constant 0 : index
    %39 = vector.load %arg5[%c0_43, %c0_44] : memref<1x128xf32, #tpu.memory_space<vmem>>, vector<1x128xf32>
    %40 = vector.broadcast %39 : vector<1x128xf32> to vector<512x128xf32>
    %41 = arith.addf %38, %40 : vector<512x128xf32>
    %cst_45 = arith.constant 0.000000e+00 : f32
    %42 = vector.broadcast %cst_45 : f32 to vector<512x128xf32>
    %43 = arith.maximumf %41, %42 : vector<512x128xf32>
    %44 = arith.truncf %43 : vector<512x128xf32> to vector<512x128xbf16>
    %45 = tpu.concatenate %44, %2 in 1 : vector<512x128xbf16>, vector<512x4xbf16> -> vector<512x132xbf16>
    %c0_46 = arith.constant 0 : index
    %c0_47 = arith.constant 0 : index
    %46 = vector.load %arg6[%c0_46, %c0_47] : memref<132x128xbf16, #tpu.memory_space<vmem>>, vector<132x128xbf16>
    %cst_48 = arith.constant dense<0.000000e+00> : vector<512x128xf32>
    %47 = tpu.matmul %45, %46, %cst_48 {dimension_numbers = #tpu.dot_dimension_numbers<[1], [0], [0], [1], [0, 0, 1, 1], [], []>} : vector<512x132xbf16>, vector<132x128xbf16>, vector<512x128xf32> -> vector<512x128xf32>
    %c0_49 = arith.constant 0 : index
    %c0_50 = arith.constant 0 : index
    %48 = vector.load %arg7[%c0_49, %c0_50] : memref<1x128xf32, #tpu.memory_space<vmem>>, vector<1x128xf32>
    %49 = vector.broadcast %48 : vector<1x128xf32> to vector<512x128xf32>
    %50 = arith.addf %47, %49 : vector<512x128xf32>
    %51 = vector.extract_strided_slice %50 {offsets = [0, 0], sizes = [512, 16], strides = [1, 1]} : vector<512x128xf32> to vector<512x16xf32>
    %cst_51 = arith.constant 0.000000e+00 : f32
    %52 = vector.broadcast %cst_51 : f32 to vector<512x16xf32>
    %53 = arith.maximumf %51, %52 : vector<512x16xf32>
    %54 = vector.shape_cast %53 : vector<512x16xf32> to vector<2x16x16x16xf32>
    %c0_52 = arith.constant 0 : index
    %c0_53 = arith.constant 0 : index
    %c0_54 = arith.constant 0 : index
    %c0_55 = arith.constant 0 : index
    %55 = vector.load %arg8[%c0_52, %c0_53, %c0_54, %c0_55] : memref<2x16x16x16xf32, #tpu.memory_space<vmem>>, vector<2x16x16x16xf32>
    tpu.vector_store %arg8[%c0_52, %c0_53, %c0_54, %c0_55], %54 {strides = array<i32>} : memref<2x16x16x16xf32, #tpu.memory_space<vmem>>, vector<2x16x16x16xf32>,
    return
  }
  func.func @transform_0(%arg0: i32) -> (i32, i32, i32, i32) {
    %c0_i32 = arith.constant 0 : i32
    %c0_i32_0 = arith.constant 0 : i32
    %c0_i32_1 = arith.constant 0 : i32
    %c0_i32_2 = arith.constant 0 : i32
    return %arg0, %c0_i32, %c0_i32_0, %c0_i32_1 : i32, i32, i32, i32
  }
  func.func @transform_1(%arg0: i32) -> (i32, i32) {
    %c0_i32 = arith.constant 0 : i32
    %c0_i32_0 = arith.constant 0 : i32
    %c0_i32_1 = arith.constant 0 : i32
    return %c0_i32, %c0_i32_0 : i32, i32
  }
  func.func @transform_2(%arg0: i32) -> (i32, i32) {
    %c0_i32 = arith.constant 0 : i32
    %c0_i32_0 = arith.constant 0 : i32
    %c0_i32_1 = arith.constant 0 : i32
    return %c0_i32, %c0_i32_0 : i32, i32
  }
  func.func @transform_3(%arg0: i32) -> (i32, i32, i32) {
    %c0_i32 = arith.constant 0 : i32
    %c0_i32_0 = arith.constant 0 : i32
    %c0_i32_1 = arith.constant 0 : i32
    %c0_i32_2 = arith.constant 0 : i32
    return %c0_i32, %c0_i32_0, %c0_i32_1 : i32, i32, i32
  }
  func.func @transform_4(%arg0: i32) -> (i32, i32) {
    %c0_i32 = arith.constant 0 : i32
    %c0_i32_0 = arith.constant 0 : i32
    %c0_i32_1 = arith.constant 0 : i32
    return %c0_i32, %c0_i32_0 : i32, i32
  }
  func.func @transform_5(%arg0: i32) -> (i32, i32) {
    %c0_i32 = arith.constant 0 : i32
    %c0_i32_0 = arith.constant 0 : i32
    %c0_i32_1 = arith.constant 0 : i32
    return %c0_i32, %c0_i32_0 : i32, i32
  }
  func.func @transform_6(%arg0: i32) -> (i32, i32) {
    %c0_i32 = arith.constant 0 : i32
    %c0_i32_0 = arith.constant 0 : i32
    %c0_i32_1 = arith.constant 0 : i32
    return %c0_i32, %c0_i32_0 : i32, i32
  }
  func.func @transform_7(%arg0: i32) -> (i32, i32, i32, i32) {
    %c0_i32 = arith.constant 0 : i32
    %c0_i32_0 = arith.constant 0 : i32
    %c0_i32_1 = arith.constant 0 : i32
    %c0_i32_2 = arith.constant 0 : i32
    return %arg0, %c0_i32, %c0_i32_0, %c0_i32_1 : i32, i32, i32, i32
  }
}

</mosaic_0001>

<llo_original>
// kernel: bottleneck_forward.1
$region0: #{bottleneck_forward.1}
  #allocation0 [shape = 'u32[]', space=smem, size = 0x4, offset = 0x4, fixed_abs, tag = 'smem constant byte address 0x4 - core index']
  #allocation1 [shape = 'u32[144,128]{1,0:T(1,128)}', space=vmem, size = 0x12000, scoped, tag = 'internal scratch']
  #allocation2 [shape = 'bf16[2,18,16,384]{3,2,1,0:T(8,128)(2,1)}', space=vmem, size = 0x6c000, scoped, tag = 'scratch operand']
  %s0 = inlined_call_operand.vmem [shape: f32[2,16,16,4], index: 0, kind: input, shape index: {}]
  %s1 = inlined_call_operand.vmem [shape: bf16[4,128], index: 1, kind: input, shape index: {}]
  %s2 = inlined_call_operand.vmem [shape: f32[1,128], index: 2, kind: input, shape index: {}]
  %s3 = inlined_call_operand.vmem [shape: bf16[3,384,128], index: 3, kind: input, shape index: {}]
  %s4 = inlined_call_operand.vmem [shape: f32[1,128], index: 4, kind: input, shape index: {}]
  %s5 = inlined_call_operand.vmem [shape: bf16[132,128], index: 5, kind: input, shape index: {}]
  %s6 = inlined_call_operand.vmem [shape: f32[1,128], index: 6, kind: input, shape index: {}]
  %s7 = inlined_call_operand.vmem [shape: f32[2,16,16,16], index: 7, kind: output, shape index: {}]
  %s8 = sld [smem:[#allocation0]]
  $region38: #{bottleneck_forward.1} parent=0
    _
  %s10 = ssub.s32 1, %s8
  %s11 = scalar_select 0, %s10, %s8
  // Predicated region
  $region2: #{bottleneck_forward.1} parent=0 // pred_check
    _
  $region3: #{bottleneck_forward.1} parent=0 // pred_check_branch
    %13 = sbr.rel (0) target = $region5
  $region4: #{bottleneck_forward.1} parent=0 // pred_region
    _
  $region5: #{bottleneck_forward.1} parent=0 // pred_fallthru
    _
  // Predicated region
  $region6: #{bottleneck_forward.1} parent=0 // pred_check
    _
  $region7: #{bottleneck_forward.1} parent=0 // pred_check_branch
    %15 = sbr.rel (0) target = $region9
  $region8: #{bottleneck_forward.1} parent=0 // pred_region
    _
  $region9: #{bottleneck_forward.1} parent=0 // pred_fallthru
    _
  // Predicated region
  $region10: #{bottleneck_forward.1} parent=0 // pred_check
    _
  $region11: #{bottleneck_forward.1} parent=0 // pred_check_branch
    %17 = sbr.rel (0) target = $region13
  $region12: #{bottleneck_forward.1} parent=0 // pred_region
    _
  $region13: #{bottleneck_forward.1} parent=0 // pred_fallthru
    _
  // Predicated region
  $region14: #{bottleneck_forward.1} parent=0 // pred_check
    _
  $region15: #{bottleneck_forward.1} parent=0 // pred_check_branch
    %19 = sbr.rel (0) target = $region17
  $region16: #{bottleneck_forward.1} parent=0 // pred_region
    _
  $region17: #{bottleneck_forward.1} parent=0 // pred_fallthru
    _
  // Predicated region
  $region18: #{bottleneck_forward.1} parent=0 // pred_check
    _
  $region19: #{bottleneck_forward.1} parent=0 // pred_check_branch
    %21 = sbr.rel (0) target = $region21
  $region20: #{bottleneck_forward.1} parent=0 // pred_region
    _
  $region21: #{bottleneck_forward.1} parent=0 // pred_fallthru
    _
  // Predicated region
  $region22: #{bottleneck_forward.1} parent=0 // pred_check
    _
  $region23: #{bottleneck_forward.1} parent=0 // pred_check_branch
    %23 = sbr.rel (0) target = $region25
  $region24: #{bottleneck_forward.1} parent=0 // pred_region
    _
  $region25: #{bottleneck_forward.1} parent=0 // pred_fallthru
    _
  // Predicated region
  $region26: #{bottleneck_forward.1} parent=0 // pred_check
    _
  $region27: #{bottleneck_forward.1} parent=0 // pred_check_branch
    %25 = sbr.rel (0) target = $region29
  $region28: #{bottleneck_forward.1} parent=0 // pred_region
    _
  $region29: #{bottleneck_forward.1} parent=0 // pred_fallthru
    _
  %v27 = vld [vmem:[%s0] sm:$0xff]
  %v28 = vld [vmem:[%s0 + $0x8] sm:$0xff]
  %v29 = vld [vmem:[%s0 + $0x10] sm:$0xff]
  %v30 = vld [vmem:[%s0 + $0x18] sm:$0xff]
  %v31 = vld [vmem:[%s0 + $0x20] sm:$0xff]
  %v32 = vld [vmem:[%s0 + $0x28] sm:$0xff]
  %v33 = vld [vmem:[%s0 + $0x30] sm:$0xff]
  %v34 = vld [vmem:[%s0 + $0x38] sm:$0xff]
  %v35 = vld [vmem:[%s0 + $0x40] sm:$0xff]
  %v36 = vld [vmem:[%s0 + $0x48] sm:$0xff]
  %v37 = vld [vmem:[%s0 + $0x50] sm:$0xff]
  %v38 = vld [vmem:[%s0 + $0x58] sm:$0xff]
  %v39 = vld [vmem:[%s0 + $0x60] sm:$0xff]
  %v40 = vld [vmem:[%s0 + $0x68] sm:$0xff]
  %v41 = vld [vmem:[%s0 + $0x70] sm:$0xff]
  %v42 = vld [vmem:[%s0 + $0x78] sm:$0xff]
  %v43 = vld [vmem:[%s0 + $0x80] sm:$0xff]
  %v44 = vld [vmem:[%s0 + $0x88] sm:$0xff]
  %v45 = vld [vmem:[%s0 + $0x90] sm:$0xff]
  %v46 = vld [vmem:[%s0 + $0x98] sm:$0xff]
  %v47 = vld [vmem:[%s0 + $0xa0] sm:$0xff]
  %v48 = vld [vmem:[%s0 + $0xa8] sm:$0xff]
  %v49 = vld [vmem:[%s0 + $0xb0] sm:$0xff]
  %v50 = vld [vmem:[%s0 + $0xb8] sm:$0xff]
  %v51 = vld [vmem:[%s0 + $0xc0] sm:$0xff]
  %v52 = vld [vmem:[%s0 + $0xc8] sm:$0xff]
  %v53 = vld [vmem:[%s0 + $0xd0] sm:$0xff]
  %v54 = vld [vmem:[%s0 + $0xd8] sm:$0xff]
  %v55 = vld [vmem:[%s0 + $0xe0] sm:$0xff]
  %v56 = vld [vmem:[%s0 + $0xe8] sm:$0xff]
  %v57 = vld [vmem:[%s0 + $0xf0] sm:$0xff]
  %v58 = vld [vmem:[%s0 + $0xf8] sm:$0xff]
  %v59 = vld [vmem:[%s0 + $0x100] sm:$0xff]
  %v60 = vld [vmem:[%s0 + $0x108] sm:$0xff]
  %v61 = vld [vmem:[%s0 + $0x110] sm:$0xff]
  %v62 = vld [vmem:[%s0 + $0x118] sm:$0xff]
  %v63 = vld [vmem:[%s0 + $0x120] sm:$0xff]
  %v64 = vld [vmem:[%s0 + $0x128] sm:$0xff]
  %v65 = vld [vmem:[%s0 + $0x130] sm:$0xff]
  %v66 = vld [vmem:[%s0 + $0x138] sm:$0xff]
  %v67 = vld [vmem:[%s0 + $0x140] sm:$0xff]
  %v68 = vld [vmem:[%s0 + $0x148] sm:$0xff]
  %v69 = vld [vmem:[%s0 + $0x150] sm:$0xff]
  %v70 = vld [vmem:[%s0 + $0x158] sm:$0xff]
  %v71 = vld [vmem:[%s0 + $0x160] sm:$0xff]
  %v72 = vld [vmem:[%s0 + $0x168] sm:$0xff]
  %v73 = vld [vmem:[%s0 + $0x170] sm:$0xff]
  %v74 = vld [vmem:[%s0 + $0x178] sm:$0xff]
  %v75 = vld [vmem:[%s0 + $0x180] sm:$0xff]
  %v76 = vld [vmem:[%s0 + $0x188] sm:$0xff]
  %v77 = vld [vmem:[%s0 + $0x190] sm:$0xff]
  %v78 = vld [vmem:[%s0 + $0x198] sm:$0xff]
  %v79 = vld [vmem:[%s0 + $0x1a0] sm:$0xff]
  %v80 = vld [vmem:[%s0 + $0x1a8] sm:$0xff]
  %v81 = vld [vmem:[%s0 + $0x1b0] sm:$0xff]
  %v82 = vld [vmem:[%s0 + $0x1b8] sm:$0xff]
  %v83 = vld [vmem:[%s0 + $0x1c0] sm:$0xff]
  %v84 = vld [vmem:[%s0 + $0x1c8] sm:$0xff]
  %v85 = vld [vmem:[%s0 + $0x1d0] sm:$0xff]
  %v86 = vld [vmem:[%s0 + $0x1d8] sm:$0xff]
  %v87 = vld [vmem:[%s0 + $0x1e0] sm:$0xff]
  %v88 = vld [vmem:[%s0 + $0x1e8] sm:$0xff]
  %v89 = vld [vmem:[%s0 + $0x1f0] sm:$0xff]
  %v90 = vld [vmem:[%s0 + $0x1f8] sm:$0xff]
  %v91 = vpack.c.bf16 %v28, %v27
  %v92 = vpack.c.bf16 %v30, %v29
  %v93 = vpack.c.bf16 %v32, %v31
  %v94 = vpack.c.bf16 %v34, %v33
  %v95 = vpack.c.bf16 %v36, %v35
  %v96 = vpack.c.bf16 %v38, %v37
  %v97 = vpack.c.bf16 %v40, %v39
  %v98 = vpack.c.bf16 %v42, %v41
  %v99 = vpack.c.bf16 %v44, %v43
  %v100 = vpack.c.bf16 %v46, %v45
  %v101 = vpack.c.bf16 %v48, %v47
  %v102 = vpack.c.bf16 %v50, %v49
  %v103 = vpack.c.bf16 %v52, %v51
  %v104 = vpack.c.bf16 %v54, %v53
  %v105 = vpack.c.bf16 %v56, %v55
  %v106 = vpack.c.bf16 %v58, %v57
  %v107 = vpack.c.bf16 %v60, %v59
  %v108 = vpack.c.bf16 %v62, %v61
  %v109 = vpack.c.bf16 %v64, %v63
  %v110 = vpack.c.bf16 %v66, %v65
  %v111 = vpack.c.bf16 %v68, %v67
  %v112 = vpack.c.bf16 %v70, %v69
  %v113 = vpack.c.bf16 %v72, %v71
  %v114 = vpack.c.bf16 %v74, %v73
  %v115 = vpack.c.bf16 %v76, %v75
  %v116 = vpack.c.bf16 %v78, %v77
  %v117 = vpack.c.bf16 %v80, %v79
  %v118 = vpack.c.bf16 %v82, %v81
  %v119 = vpack.c.bf16 %v84, %v83
  %v120 = vpack.c.bf16 %v86, %v85
  %v121 = vpack.c.bf16 %v88, %v87
  %v122 = vpack.c.bf16 %v90, %v89
  %v123 = vld [vmem:[%s1] sm:$0x3]
  %v124 = vld [vmem:[%s2] sm:$0x1]
  %v126 = vlaneseq
  %v127 = vshrl.u32 %v126, 7
  %v128 = vsub.s32 0, %v127
  %v129 = vrot.slane %v124, %v128
  %vm131 = vcmask 31744
  %v133 = vsel %vm131, %v91, 0
  %v136 = vsel %vm131, %v92, 0
  %v139 = vsel %vm131, %v93, 0
  %v142 = vsel %vm131, %v94, 0
  %v145 = vsel %vm131, %v95, 0
  %v148 = vsel %vm131, %v96, 0
  %v151 = vsel %vm131, %v97, 0
  %v154 = vsel %vm131, %v98, 0
  %v157 = vsel %vm131, %v99, 0
  %v160 = vsel %vm131, %v100, 0
  %v163 = vsel %vm131, %v101, 0
  %v166 = vsel %vm131, %v102, 0
  %v169 = vsel %vm131, %v103, 0
  %v172 = vsel %vm131, %v104, 0
  %v175 = vsel %vm131, %v105, 0
  %v178 = vsel %vm131, %v106, 0
  %v181 = vsel %vm131, %v107, 0
  %v184 = vsel %vm131, %v108, 0
  %v187 = vsel %vm131, %v109, 0
  %v190 = vsel %vm131, %v110, 0
  %v193 = vsel %vm131, %v111, 0
  %v196 = vsel %vm131, %v112, 0
  %v199 = vsel %vm131, %v113, 0
  %v202 = vsel %vm131, %v114, 0
  %v205 = vsel %vm131, %v115, 0
  %v208 = vsel %vm131, %v116, 0
  %v211 = vsel %vm131, %v117, 0
  %v214 = vsel %vm131, %v118, 0
  %v217 = vsel %vm131, %v119, 0
  %v220 = vsel %vm131, %v120, 0
  %v223 = vsel %vm131, %v121, 0
  %v226 = vsel %vm131, %v122, 0
  %vm228 = vcmask 1041408
  %v230 = vsel %vm228, %v123, 0
  %232 = vmatprep.subr.bf16.mxu0 0
  %233 = vmatpush1.bf16.msra.mxu0 0
  %234 = vmatprep.subr.bf16.mxu0 0
  %235 = vmatpush1.bf16.msra.mxu0 0
  %236 = vmatprep.subr.bf16.mxu0 0
  %237 = vmatpush1.bf16.msra.mxu0 0
  %238 = vmatprep.subr.bf16.mxu0 0
  %239 = vmatpush1.bf16.msra.mxu0 0
  %240 = vmatprep.subr.bf16.mxu0 0
  %241 = vmatpush1.bf16.msra.mxu0 0
  %242 = vmatprep.subr.bf16.mxu0 0
  %243 = vmatpush1.bf16.msra.mxu0 0
  %244 = vmatprep.subr.bf16.mxu0 0
  %245 = vmatpush1.bf16.msra.mxu0 0
  %246 = vmatprep.subr.bf16.mxu0 0
  %247 = vmatpush1.bf16.msra.mxu0 %v230
  %248 = vmatprep.subr.bf16.mxu0 0
  %249 = vmatpush2.bf16.msra.mxu0 0
  %250 = vmatprep.subr.bf16.mxu0 0
  %251 = vmatpush2.bf16.msra.mxu0 0
  %252 = vmatprep.subr.bf16.mxu0 0
  %253 = vmatpush2.bf16.msra.mxu0 0
  %254 = vmatprep.subr.bf16.mxu0 0
  %255 = vmatpush2.bf16.msra.mxu0 0
  %256 = vmatprep.subr.bf16.mxu0 0
  %257 = vmatpush2.bf16.msra.mxu0 0
  %258 = vmatprep.subr.bf16.mxu0 0
  %259 = vmatpush2.bf16.msra.mxu0 0
  %260 = vmatprep.subr.bf16.mxu0 0
  %261 = vmatpush2.bf16.msra.mxu0 0
  %262 = vmatprep.subr.bf16.mxu0 0
  %263 = vmatpush2.bf16.msra.mxu0 0
  %264 = vmatprep.mubr.bf16.mxu0 0
  %265 = vmatmul.mubr.bf16.gmra.mxu0 %v133
  %v266 = vpop.f32.mrf.mxu0
  %v267 = vadd.f32 %v129, %v266
  %v268 = vpop.f32.mrf.mxu0
  %v269 = vpop.f32.mrf.mxu0
  %v270 = vadd.f32 %v129, %v269
  %v271 = vpop.f32.mrf.mxu0
  %272 = vmatprep.mubr.bf16.mxu0 0
  %273 = vmatmul.mubr.bf16.gmra.mxu0 %v136
  %v274 = vpop.f32.mrf.mxu0
  %v275 = vadd.f32 %v129, %v274
  %v276 = vpop.f32.mrf.mxu0
  %v277 = vpop.f32.mrf.mxu0
  %v278 = vadd.f32 %v129, %v277
  %v279 = vpop.f32.mrf.mxu0
  %280 = vmatprep.mubr.bf16.mxu0 0
  %281 = vmatmul.mubr.bf16.gmra.mxu0 %v139
  %v282 = vpop.f32.mrf.mxu0
  %v283 = vadd.f32 %v129, %v282
  %v284 = vpop.f32.mrf.mxu0
  %v285 = vpop.f32.mrf.mxu0
  %v286 = vadd.f32 %v129, %v285
  %v287 = vpop.f32.mrf.mxu0
  %288 = vmatprep.mubr.bf16.mxu0 0
  %289 = vmatmul.mubr.bf16.gmra.mxu0 %v142
  %v290 = vpop.f32.mrf.mxu0
  %v291 = vadd.f32 %v129, %v290
  %v292 = vpop.f32.mrf.mxu0
  %v293 = vpop.f32.mrf.mxu0
  %v294 = vadd.f32 %v129, %v293
  %v295 = vpop.f32.mrf.mxu0
  %296 = vmatprep.mubr.bf16.mxu0 0
  %297 = vmatmul.mubr.bf16.gmra.mxu0 %v145
  %v298 = vpop.f32.mrf.mxu0
  %v299 = vadd.f32 %v129, %v298
  %v300 = vpop.f32.mrf.mxu0
  %v301 = vpop.f32.mrf.mxu0
  %v302 = vadd.f32 %v129, %v301
  %v303 = vpop.f32.mrf.mxu0
  %304 = vmatprep.mubr.bf16.mxu0 0
  %305 = vmatmul.mubr.bf16.gmra.mxu0 %v148
  %v306 = vpop.f32.mrf.mxu0
  %v307 = vadd.f32 %v129, %v306
  %v308 = vpop.f32.mrf.mxu0
  %v309 = vpop.f32.mrf.mxu0
  %v310 = vadd.f32 %v129, %v309
  %v311 = vpop.f32.mrf.mxu0
  %312 = vmatprep.mubr.bf16.mxu0 0
  %313 = vmatmul.mubr.bf16.gmra.mxu0 %v151
  %v314 = vpop.f32.mrf.mxu0
  %v315 = vadd.f32 %v129, %v314
  %v316 = vpop.f32.mrf.mxu0
  %v317 = vpop.f32.mrf.mxu0
  %v318 = vadd.f32 %v129, %v317
  %v319 = vpop.f32.mrf.mxu0
  %320 = vmatprep.mubr.bf16.mxu0 0
  %321 = vmatmul.mubr.bf16.gmra.mxu0 %v154
  %v322 = vpop.f32.mrf.mxu0
  %v323 = vadd.f32 %v129, %v322
  %v324 = vpop.f32.mrf.mxu0
  %v325 = vpop.f32.mrf.mxu0
  %v326 = vadd.f32 %v129, %v325
  %v327 = vpop.f32.mrf.mxu0
  %328 = vmatprep.mubr.bf16.mxu0 0
  %329 = vmatmul.mubr.bf16.gmra.mxu0 %v157
  %v330 = vpop.f32.mrf.mxu0
  %v331 = vadd.f32 %v129, %v330
  %v332 = vpop.f32.mrf.mxu0
  %v333 = vpop.f32.mrf.mxu0
  %v334 = vadd.f32 %v129, %v333
  %v335 = vpop.f32.mrf.mxu0
  %336 = vmatprep.mubr.bf16.mxu0 0
  %337 = vmatmul.mubr.bf16.gmra.mxu0 %v160
  %v338 = vpop.f32.mrf.mxu0
  %v339 = vadd.f32 %v129, %v338
  %v340 = vpop.f32.mrf.mxu0
  %v341 = vpop.f32.mrf.mxu0
  %v342 = vadd.f32 %v129, %v341
  %v343 = vpop.f32.mrf.mxu0
  %344 = vmatprep.mubr.bf16.mxu0 0
  %345 = vmatmul.mubr.bf16.gmra.mxu0 %v163
  %v346 = vpop.f32.mrf.mxu0
  %v347 = vadd.f32 %v129, %v346
  %v348 = vpop.f32.mrf.mxu0
  %v349 = vpop.f32.mrf.mxu0
  %v350 = vadd.f32 %v129, %v349
  %v351 = vpop.f32.mrf.mxu0
  %352 = vmatprep.mubr.bf16.mxu0 0
  %353 = vmatmul.mubr.bf16.gmra.mxu0 %v166
  %v354 = vpop.f32.mrf.mxu0
  %v355 = vadd.f32 %v129, %v354
  %v356 = vpop.f32.mrf.mxu0
  %v357 = vpop.f32.mrf.mxu0
  %v358 = vadd.f32 %v129, %v357
  %v359 = vpop.f32.mrf.mxu0
  %360 = vmatprep.mubr.bf16.mxu0 0
  %361 = vmatmul.mubr.bf16.gmra.mxu0 %v169
  %v362 = vpop.f32.mrf.mxu0
  %v363 = vadd.f32 %v129, %v362
  %v364 = vpop.f32.mrf.mxu0
  %v365 = vpop.f32.mrf.mxu0
  %v366 = vadd.f32 %v129, %v365
  %v367 = vpop.f32.mrf.mxu0
  %368 = vmatprep.mubr.bf16.mxu0 0
  %369 = vmatmul.mubr.bf16.gmra.mxu0 %v172
  %v370 = vpop.f32.mrf.mxu0
  %v371 = vadd.f32 %v129, %v370
  %v372 = vpop.f32.mrf.mxu0
  %v373 = vpop.f32.mrf.mxu0
  %v374 = vadd.f32 %v129, %v373
  %v375 = vpop.f32.mrf.mxu0
  %376 = vmatprep.mubr.bf16.mxu0 0
  %377 = vmatmul.mubr.bf16.gmra.mxu0 %v175
  %v378 = vpop.f32.mrf.mxu0
  %v379 = vadd.f32 %v129, %v378
  %v380 = vpop.f32.mrf.mxu0
  %v381 = vpop.f32.mrf.mxu0
  %v382 = vadd.f32 %v129, %v381
  %v383 = vpop.f32.mrf.mxu0
  %384 = vmatprep.mubr.bf16.mxu0 0
  %385 = vmatmul.mubr.bf16.gmra.mxu0 %v178
  %v386 = vpop.f32.mrf.mxu0
  %v387 = vadd.f32 %v129, %v386
  %v388 = vpop.f32.mrf.mxu0
  %v389 = vpop.f32.mrf.mxu0
  %v390 = vadd.f32 %v129, %v389
  %v391 = vpop.f32.mrf.mxu0
  %392 = vmatprep.mubr.bf16.mxu0 0
  %393 = vmatmul.mubr.bf16.gmra.mxu0 %v181
  %v394 = vpop.f32.mrf.mxu0
  %v395 = vadd.f32 %v129, %v394
  %v396 = vpop.f32.mrf.mxu0
  %v397 = vpop.f32.mrf.mxu0
  %v398 = vadd.f32 %v129, %v397
  %v399 = vpop.f32.mrf.mxu0
  %400 = vmatprep.mubr.bf16.mxu0 0
  %401 = vmatmul.mubr.bf16.gmra.mxu0 %v184
  %v402 = vpop.f32.mrf.mxu0
  %v403 = vadd.f32 %v129, %v402
  %v404 = vpop.f32.mrf.mxu0
  %v405 = vpop.f32.mrf.mxu0
  %v406 = vadd.f32 %v129, %v405
  %v407 = vpop.f32.mrf.mxu0
  %408 = vmatprep.mubr.bf16.mxu0 0
  %409 = vmatmul.mubr.bf16.gmra.mxu0 %v187
  %v410 = vpop.f32.mrf.mxu0
  %v411 = vadd.f32 %v129, %v410
  %v412 = vpop.f32.mrf.mxu0
  %v413 = vpop.f32.mrf.mxu0
  %v414 = vadd.f32 %v129, %v413
  %v415 = vpop.f32.mrf.mxu0
  %416 = vmatprep.mubr.bf16.mxu0 0
  %417 = vmatmul.mubr.bf16.gmra.mxu0 %v190
  %v418 = vpop.f32.mrf.mxu0
  %v419 = vadd.f32 %v129, %v418
  %v420 = vpop.f32.mrf.mxu0
  %v421 = vpop.f32.mrf.mxu0
  %v422 = vadd.f32 %v129, %v421
  %v423 = vpop.f32.mrf.mxu0
  %424 = vmatprep.mubr.bf16.mxu0 0
  %425 = vmatmul.mubr.bf16.gmra.mxu0 %v193
  %v426 = vpop.f32.mrf.mxu0
  %v427 = vadd.f32 %v129, %v426
  %v428 = vpop.f32.mrf.mxu0
  %v429 = vpop.f32.mrf.mxu0
  %v430 = vadd.f32 %v129, %v429
  %v431 = vpop.f32.mrf.mxu0
  %432 = vmatprep.mubr.bf16.mxu0 0
  %433 = vmatmul.mubr.bf16.gmra.mxu0 %v196
  %v434 = vpop.f32.mrf.mxu0
  %v435 = vadd.f32 %v129, %v434
  %v436 = vpop.f32.mrf.mxu0
  %v437 = vpop.f32.mrf.mxu0
  %v438 = vadd.f32 %v129, %v437
  %v439 = vpop.f32.mrf.mxu0
  %440 = vmatprep.mubr.bf16.mxu0 0
  %441 = vmatmul.mubr.bf16.gmra.mxu0 %v199
  %v442 = vpop.f32.mrf.mxu0
  %v443 = vadd.f32 %v129, %v442
  %v444 = vpop.f32.mrf.mxu0
  %v445 = vpop.f32.mrf.mxu0
  %v446 = vadd.f32 %v129, %v445
  %v447 = vpop.f32.mrf.mxu0
  %448 = vmatprep.mubr.bf16.mxu0 0
  %449 = vmatmul.mubr.bf16.gmra.mxu0 %v202
  %v450 = vpop.f32.mrf.mxu0
  %v451 = vadd.f32 %v129, %v450
  %v452 = vpop.f32.mrf.mxu0
  %v453 = vpop.f32.mrf.mxu0
  %v454 = vadd.f32 %v129, %v453
  %v455 = vpop.f32.mrf.mxu0
  %456 = vmatprep.mubr.bf16.mxu0 0
  %457 = vmatmul.mubr.bf16.gmra.mxu0 %v205
  %v458 = vpop.f32.mrf.mxu0
  %v459 = vadd.f32 %v129, %v458
  %v460 = vpop.f32.mrf.mxu0
  %v461 = vpop.f32.mrf.mxu0
  %v462 = vadd.f32 %v129, %v461
  %v463 = vpop.f32.mrf.mxu0
  %464 = vmatprep.mubr.bf16.mxu0 0
  %465 = vmatmul.mubr.bf16.gmra.mxu0 %v208
  %v466 = vpop.f32.mrf.mxu0
  %v467 = vadd.f32 %v129, %v466
  %v468 = vpop.f32.mrf.mxu0
  %v469 = vpop.f32.mrf.mxu0
  %v470 = vadd.f32 %v129, %v469
  %v471 = vpop.f32.mrf.mxu0
  %472 = vmatprep.mubr.bf16.mxu0 0
  %473 = vmatmul.mubr.bf16.gmra.mxu0 %v211
  %v474 = vpop.f32.mrf.mxu0
  %v475 = vadd.f32 %v129, %v474
  %v476 = vpop.f32.mrf.mxu0
  %v477 = vpop.f32.mrf.mxu0
  %v478 = vadd.f32 %v129, %v477
  %v479 = vpop.f32.mrf.mxu0
  %480 = vmatprep.mubr.bf16.mxu0 0
  %481 = vmatmul.mubr.bf16.gmra.mxu0 %v214
  %v482 = vpop.f32.mrf.mxu0
  %v483 = vadd.f32 %v129, %v482
  %v484 = vpop.f32.mrf.mxu0
  %v485 = vpop.f32.mrf.mxu0
  %v486 = vadd.f32 %v129, %v485
  %v487 = vpop.f32.mrf.mxu0
  %488 = vmatprep.mubr.bf16.mxu0 0
  %489 = vmatmul.mubr.bf16.gmra.mxu0 %v217
  %v490 = vpop.f32.mrf.mxu0
  %v491 = vadd.f32 %v129, %v490
  %v492 = vpop.f32.mrf.mxu0
  %v493 = vpop.f32.mrf.mxu0
  %v494 = vadd.f32 %v129, %v493
  %v495 = vpop.f32.mrf.mxu0
  %496 = vmatprep.mubr.bf16.mxu0 0
  %497 = vmatmul.mubr.bf16.gmra.mxu0 %v220
  %v498 = vpop.f32.mrf.mxu0
  %v499 = vadd.f32 %v129, %v498
  %v500 = vpop.f32.mrf.mxu0
  %v501 = vpop.f32.mrf.mxu0
  %v502 = vadd.f32 %v129, %v501
  %v503 = vpop.f32.mrf.mxu0
  %504 = vmatprep.mubr.bf16.mxu0 0
  %505 = vmatmul.mubr.bf16.gmra.mxu0 %v223
  %v506 = vpop.f32.mrf.mxu0
  %v507 = vadd.f32 %v129, %v506
  %v508 = vpop.f32.mrf.mxu0
  %v509 = vpop.f32.mrf.mxu0
  %v510 = vadd.f32 %v129, %v509
  %v511 = vpop.f32.mrf.mxu0
  %512 = vmatprep.mubr.bf16.mxu0 0
  %513 = vmatmul.mubr.bf16.gmra.mxu0 %v226
  %v514 = vpop.f32.mrf.mxu0
  %v515 = vadd.f32 %v129, %v514
  %v516 = vpop.f32.mrf.mxu0
  %v517 = vpop.f32.mrf.mxu0
  %v518 = vadd.f32 %v129, %v517
  %v519 = vpop.f32.mrf.mxu0
  %520 = vdwg.mxu0
  %v521 = vmax.f32 %v267, 0.0
  %v522 = vmax.f32 %v270, 0.0
  %v523 = vmax.f32 %v275, 0.0
  %v524 = vmax.f32 %v278, 0.0
  %v525 = vmax.f32 %v283, 0.0
  %v526 = vmax.f32 %v286, 0.0
  %v527 = vmax.f32 %v291, 0.0
  %v528 = vmax.f32 %v294, 0.0
  %v529 = vmax.f32 %v299, 0.0
  %v530 = vmax.f32 %v302, 0.0
  %v531 = vmax.f32 %v307, 0.0
  %v532 = vmax.f32 %v310, 0.0
  %v533 = vmax.f32 %v315, 0.0
  %v534 = vmax.f32 %v318, 0.0
  %v535 = vmax.f32 %v323, 0.0
  %v536 = vmax.f32 %v326, 0.0
  %v537 = vmax.f32 %v331, 0.0
  %v538 = vmax.f32 %v334, 0.0
  %v539 = vmax.f32 %v339, 0.0
  %v540 = vmax.f32 %v342, 0.0
  %v541 = vmax.f32 %v347, 0.0
  %v542 = vmax.f32 %v350, 0.0
  %v543 = vmax.f32 %v355, 0.0
  %v544 = vmax.f32 %v358, 0.0
  %v545 = vmax.f32 %v363, 0.0
  %v546 = vmax.f32 %v366, 0.0
  %v547 = vmax.f32 %v371, 0.0
  %v548 = vmax.f32 %v374, 0.0
  %v549 = vmax.f32 %v379, 0.0
  %v550 = vmax.f32 %v382, 0.0
  %v551 = vmax.f32 %v387, 0.0
  %v552 = vmax.f32 %v390, 0.0
  %v553 = vmax.f32 %v395, 0.0
  %v554 = vmax.f32 %v398, 0.0
  %v555 = vmax.f32 %v403, 0.0
  %v556 = vmax.f32 %v406, 0.0
  %v557 = vmax.f32 %v411, 0.0
  %v558 = vmax.f32 %v414, 0.0
  %v559 = vmax.f32 %v419, 0.0
  %v560 = vmax.f32 %v422, 0.0
  %v561 = vmax.f32 %v427, 0.0
  %v562 = vmax.f32 %v430, 0.0
  %v563 = vmax.f32 %v435, 0.0
  %v564 = vmax.f32 %v438, 0.0
  %v565 = vmax.f32 %v443, 0.0
  %v566 = vmax.f32 %v446, 0.0
  %v567 = vmax.f32 %v451, 0.0
  %v568 = vmax.f32 %v454, 0.0
  %v569 = vmax.f32 %v459, 0.0
  %v570 = vmax.f32 %v462, 0.0
  %v571 = vmax.f32 %v467, 0.0
  %v572 = vmax.f32 %v470, 0.0
  %v573 = vmax.f32 %v475, 0.0
  %v574 = vmax.f32 %v478, 0.0
  %v575 = vmax.f32 %v483, 0.0
  %v576 = vmax.f32 %v486, 0.0
  %v577 = vmax.f32 %v491, 0.0
  %v578 = vmax.f32 %v494, 0.0
  %v579 = vmax.f32 %v499, 0.0
  %v580 = vmax.f32 %v502, 0.0
  %v581 = vmax.f32 %v507, 0.0
  %v582 = vmax.f32 %v510, 0.0
  %v583 = vmax.f32 %v515, 0.0
  %v584 = vmax.f32 %v518, 0.0
  %vm649 = vcmask 1040384
  %v650 = vrot.slane %v521, 7
  %v651 = vrot.slane %v522, 7
  %v652 = vsel %vm649, %v650, %v651
  %v653 = vrot.slane %v523, 7
  %v654 = vrot.slane %v524, 7
  %v655 = vsel %vm649, %v653, %v654
  %v656 = vrot.slane %v525, 7
  %v657 = vrot.slane %v526, 7
  %v658 = vsel %vm649, %v656, %v657
  %v659 = vrot.slane %v527, 7
  %v660 = vrot.slane %v528, 7
  %v661 = vsel %vm649, %v659, %v660
  %v662 = vrot.slane %v529, 7
  %v663 = vrot.slane %v530, 7
  %v664 = vsel %vm649, %v662, %v663
  %v665 = vrot.slane %v531, 7
  %v666 = vrot.slane %v532, 7
  %v667 = vsel %vm649, %v665, %v666
  %v668 = vrot.slane %v533, 7
  %v669 = vrot.slane %v534, 7
  %v670 = vsel %vm649, %v668, %v669
  %v671 = vrot.slane %v535, 7
  %v672 = vrot.slane %v536, 7
  %v673 = vsel %vm649, %v671, %v672
  %v674 = vrot.slane %v537, 7
  %v675 = vrot.slane %v538, 7
  %v676 = vsel %vm649, %v674, %v675
  %v677 = vrot.slane %v539, 7
  %v678 = vrot.slane %v540, 7
  %v679 = vsel %vm649, %v677, %v678
  %v680 = vrot.slane %v541, 7
  %v681 = vrot.slane %v542, 7
  %v682 = vsel %vm649, %v680, %v681
  %v683 = vrot.slane %v543, 7
  %v684 = vrot.slane %v544, 7
  %v685 = vsel %vm649, %v683, %v684
  %v686 = vrot.slane %v545, 7
  %v687 = vrot.slane %v546, 7
  %v688 = vsel %vm649, %v686, %v687
  %v689 = vrot.slane %v547, 7
  %v690 = vrot.slane %v548, 7
  %v691 = vsel %vm649, %v689, %v690
  %v692 = vrot.slane %v549, 7
  %v693 = vrot.slane %v550, 7
  %v694 = vsel %vm649, %v692, %v693
  %v695 = vrot.slane %v551, 7
  %v696 = vrot.slane %v552, 7
  %v697 = vsel %vm649, %v695, %v696
  %v698 = vrot.slane %v553, 7
  %v699 = vrot.slane %v554, 7
  %v700 = vsel %vm649, %v698, %v699
  %v701 = vrot.slane %v555, 7
  %v702 = vrot.slane %v556, 7
  %v703 = vsel %vm649, %v701, %v702
  %v704 = vrot.slane %v557, 7
  %v705 = vrot.slane %v558, 7
  %v706 = vsel %vm649, %v704, %v705
  %v707 = vrot.slane %v559, 7
  %v708 = vrot.slane %v560, 7
  %v709 = vsel %vm649, %v707, %v708
  %v710 = vrot.slane %v561, 7
  %v711 = vrot.slane %v562, 7
  %v712 = vsel %vm649, %v710, %v711
  %v713 = vrot.slane %v563, 7
  %v714 = vrot.slane %v564, 7
  %v715 = vsel %vm649, %v713, %v714
  %v716 = vrot.slane %v565, 7
  %v717 = vrot.slane %v566, 7
  %v718 = vsel %vm649, %v716, %v717
  %v719 = vrot.slane %v567, 7
  %v720 = vrot.slane %v568, 7
  %v721 = vsel %vm649, %v719, %v720
  %v722 = vrot.slane %v569, 7
  %v723 = vrot.slane %v570, 7
  %v724 = vsel %vm649, %v722, %v723
  %v725 = vrot.slane %v571, 7
  %v726 = vrot.slane %v572, 7
  %v727 = vsel %vm649, %v725, %v726
  %v728 = vrot.slane %v573, 7
  %v729 = vrot.slane %v574, 7
  %v730 = vsel %vm649, %v728, %v729
  %v731 = vrot.slane %v575, 7
  %v732 = vrot.slane %v576, 7
  %v733 = vsel %vm649, %v731, %v732
  %v734 = vrot.slane %v577, 7
  %v735 = vrot.slane %v578, 7
  %v736 = vsel %vm649, %v734, %v735
  %v737 = vrot.slane %v579, 7
  %v738 = vrot.slane %v580, 7
  %v739 = vsel %vm649, %v737, %v738
  %v740 = vrot.slane %v581, 7
  %v741 = vrot.slane %v582, 7
  %v742 = vsel %vm649, %v740, %v741
  %v743 = vrot.slane %v583, 7
  %v744 = vrot.slane %v584, 7
  %v745 = vsel %vm649, %v743, %v744
  %v810 = vsel %vm649, 0.0, %v650
  %v811 = vsel %vm649, 0.0, %v653
  %v812 = vsel %vm649, 0.0, %v656
  %v813 = vsel %vm649, 0.0, %v659
  %v814 = vsel %vm649, 0.0, %v662
  %v815 = vsel %vm649, 0.0, %v665
  %v816 = vsel %vm649, 0.0, %v668
  %v817 = vsel %vm649, 0.0, %v671
  %v818 = vsel %vm649, 0.0, %v674
  %v819 = vsel %vm649, 0.0, %v677
  %v820 = vsel %vm649, 0.0, %v680
  %v821 = vsel %vm649, 0.0, %v683
  %v822 = vsel %vm649, 0.0, %v686
  %v823 = vsel %vm649, 0.0, %v689
  %v824 = vsel %vm649, 0.0, %v692
  %v825 = vsel %vm649, 0.0, %v695
  %v826 = vsel %vm649, 0.0, %v698
  %v827 = vsel %vm649, 0.0, %v701
  %v828 = vsel %vm649, 0.0, %v704
  %v829 = vsel %vm649, 0.0, %v707
  %v830 = vsel %vm649, 0.0, %v710
  %v831 = vsel %vm649, 0.0, %v713
  %v832 = vsel %vm649, 0.0, %v716
  %v833 = vsel %vm649, 0.0, %v719
  %v834 = vsel %vm649, 0.0, %v722
  %v835 = vsel %vm649, 0.0, %v725
  %v836 = vsel %vm649, 0.0, %v728
  %v837 = vsel %vm649, 0.0, %v731
  %v838 = vsel %vm649, 0.0, %v734
  %v839 = vsel %vm649, 0.0, %v737
  %v840 = vsel %vm649, 0.0, %v740
  %v841 = vsel %vm649, 0.0, %v743
  %vm842 = vcmask 1046528
  %v843 = vrot.slane %v521, 1
  %v844 = vrot.slane %v522, 1
  %v845 = vsel %vm842, %v843, %v844
  %v846 = vrot.slane %v523, 1
  %v847 = vrot.slane %v524, 1
  %v848 = vsel %vm842, %v846, %v847
  %v849 = vrot.slane %v525, 1
  %v850 = vrot.slane %v526, 1
  %v851 = vsel %vm842, %v849, %v850
  %v852 = vrot.slane %v527, 1
  %v853 = vrot.slane %v528, 1
  %v854 = vsel %vm842, %v852, %v853
  %v855 = vrot.slane %v529, 1
  %v856 = vrot.slane %v530, 1
  %v857 = vsel %vm842, %v855, %v856
  %v858 = vrot.slane %v531, 1
  %v859 = vrot.slane %v532, 1
  %v860 = vsel %vm842, %v858, %v859
  %v861 = vrot.slane %v533, 1
  %v862 = vrot.slane %v534, 1
  %v863 = vsel %vm842, %v861, %v862
  %v864 = vrot.slane %v535, 1
  %v865 = vrot.slane %v536, 1
  %v866 = vsel %vm842, %v864, %v865
  %v867 = vrot.slane %v537, 1
  %v868 = vrot.slane %v538, 1
  %v869 = vsel %vm842, %v867, %v868
  %v870 = vrot.slane %v539, 1
  %v871 = vrot.slane %v540, 1
  %v872 = vsel %vm842, %v870, %v871
  %v873 = vrot.slane %v541, 1
  %v874 = vrot.slane %v542, 1
  %v875 = vsel %vm842, %v873, %v874
  %v876 = vrot.slane %v543, 1
  %v877 = vrot.slane %v544, 1
  %v878 = vsel %vm842, %v876, %v877
  %v879 = vrot.slane %v545, 1
  %v880 = vrot.slane %v546, 1
  %v881 = vsel %vm842, %v879, %v880
  %v882 = vrot.slane %v547, 1
  %v883 = vrot.slane %v548, 1
  %v884 = vsel %vm842, %v882, %v883
  %v885 = vrot.slane %v549, 1
  %v886 = vrot.slane %v550, 1
  %v887 = vsel %vm842, %v885, %v886
  %v888 = vrot.slane %v551, 1
  %v889 = vrot.slane %v552, 1
  %v890 = vsel %vm842, %v888, %v889
  %v891 = vrot.slane %v553, 1
  %v892 = vrot.slane %v554, 1
  %v893 = vsel %vm842, %v891, %v892
  %v894 = vrot.slane %v555, 1
  %v895 = vrot.slane %v556, 1
  %v896 = vsel %vm842, %v894, %v895
  %v897 = vrot.slane %v557, 1
  %v898 = vrot.slane %v558, 1
  %v899 = vsel %vm842, %v897, %v898
  %v900 = vrot.slane %v559, 1
  %v901 = vrot.slane %v560, 1
  %v902 = vsel %vm842, %v900, %v901
  %v903 = vrot.slane %v561, 1
  %v904 = vrot.slane %v562, 1
  %v905 = vsel %vm842, %v903, %v904
  %v906 = vrot.slane %v563, 1
  %v907 = vrot.slane %v564, 1
  %v908 = vsel %vm842, %v906, %v907
  %v909 = vrot.slane %v565, 1
  %v910 = vrot.slane %v566, 1
  %v911 = vsel %vm842, %v909, %v910
  %v912 = vrot.slane %v567, 1
  %v913 = vrot.slane %v568, 1
  %v914 = vsel %vm842, %v912, %v913
  %v915 = vrot.slane %v569, 1
  %v916 = vrot.slane %v570, 1
  %v917 = vsel %vm842, %v915, %v916
  %v918 = vrot.slane %v571, 1
  %v919 = vrot.slane %v572, 1
  %v920 = vsel %vm842, %v918, %v919
  %v921 = vrot.slane %v573, 1
  %v922 = vrot.slane %v574, 1
  %v923 = vsel %vm842, %v921, %v922
  %v924 = vrot.slane %v575, 1
  %v925 = vrot.slane %v576, 1
  %v926 = vsel %vm842, %v924, %v925
  %v927 = vrot.slane %v577, 1
  %v928 = vrot.slane %v578, 1
  %v929 = vsel %vm842, %v927, %v928
  %v930 = vrot.slane %v579, 1
  %v931 = vrot.slane %v580, 1
  %v932 = vsel %vm842, %v930, %v931
  %v933 = vrot.slane %v581, 1
  %v934 = vrot.slane %v582, 1
  %v935 = vsel %vm842, %v933, %v934
  %v936 = vrot.slane %v583, 1
  %v937 = vrot.slane %v584, 1
  %v938 = vsel %vm842, %v936, %v937
  %v1003 = vsel %vm842, %v844, 0.0
  %v1004 = vsel %vm842, %v847, 0.0
  %v1005 = vsel %vm842, %v850, 0.0
  %v1006 = vsel %vm842, %v853, 0.0
  %v1007 = vsel %vm842, %v856, 0.0
  %v1008 = vsel %vm842, %v859, 0.0
  %v1009 = vsel %vm842, %v862, 0.0
  %v1010 = vsel %vm842, %v865, 0.0
  %v1011 = vsel %vm842, %v868, 0.0
  %v1012 = vsel %vm842, %v871, 0.0
  %v1013 = vsel %vm842, %v874, 0.0
  %v1014 = vsel %vm842, %v877, 0.0
  %v1015 = vsel %vm842, %v880, 0.0
  %v1016 = vsel %vm842, %v883, 0.0
  %v1017 = vsel %vm842, %v886, 0.0
  %v1018 = vsel %vm842, %v889, 0.0
  %v1019 = vsel %vm842, %v892, 0.0
  %v1020 = vsel %vm842, %v895, 0.0
  %v1021 = vsel %vm842, %v898, 0.0
  %v1022 = vsel %vm842, %v901, 0.0
  %v1023 = vsel %vm842, %v904, 0.0
  %v1024 = vsel %vm842, %v907, 0.0
  %v1025 = vsel %vm842, %v910, 0.0
  %v1026 = vsel %vm842, %v913, 0.0
  %v1027 = vsel %vm842, %v916, 0.0
  %v1028 = vsel %vm842, %v919, 0.0
  %v1029 = vsel %vm842, %v922, 0.0
  %v1030 = vsel %vm842, %v925, 0.0
  %v1031 = vsel %vm842, %v928, 0.0
  %v1032 = vsel %vm842, %v931, 0.0
  %v1033 = vsel %vm842, %v934, 0.0
  %v1034 = vsel %vm842, %v937, 0.0
  %1035 = vst [vmem:[#allocation2] sm:$0xff] 0
  %1036 = vst [vmem:[#allocation2 + $0x8] sm:$0xf] 0
  %1037 = vst [vmem:[#allocation2 + $0xc] sm:$0xff] 0
  %1038 = vst [vmem:[#allocation2 + $0x14] sm:$0xf] 0
  %1039 = vst [vmem:[#allocation2 + $0x1b0] sm:$0xff] 0
  %1040 = vst [vmem:[#allocation2 + $0x1b8] sm:$0xf] 0
  %1041 = vst [vmem:[#allocation2 + $0x1bc] sm:$0xff] 0
  %1042 = vst [vmem:[#allocation2 + $0x1c4] sm:$0xf] 0
  %s1043 = scalar_lea.vmem [#allocation2], 408
  %1044 = vst [vmem:[%s1043] sm:$0xff] 0
  %1045 = vst [vmem:[%s1043 + $0x8] sm:$0xf] 0
  %1046 = vst [vmem:[%s1043 + $0xc] sm:$0xff] 0
  %1047 = vst [vmem:[%s1043 + $0x14] sm:$0xf] 0
  %1048 = vst [vmem:[%s1043 + $0x1b0] sm:$0xff] 0
  %1049 = vst [vmem:[%s1043 + $0x1b8] sm:$0xf] 0
  %1050 = vst [vmem:[%s1043 + $0x1bc] sm:$0xff] 0
  %1051 = vst [vmem:[%s1043 + $0x1c4] sm:$0xf] 0
  %v1052 = vpack.c.bf16 %v652, %v810
  %v1053 = vpack.c.bf16 %v522, %v521
  %v1054 = vpack.c.bf16 %v1003, %v845
  %v1055 = vpack.c.bf16 %v655, %v811
  %v1056 = vpack.c.bf16 %v524, %v523
  %v1057 = vpack.c.bf16 %v1004, %v848
  %v1058 = vpack.c.bf16 %v658, %v812
  %v1059 = vpack.c.bf16 %v526, %v525
  %v1060 = vpack.c.bf16 %v1005, %v851
  %v1061 = vpack.c.bf16 %v661, %v813
  %v1062 = vpack.c.bf16 %v528, %v527
  %v1063 = vpack.c.bf16 %v1006, %v854
  %v1064 = vpack.c.bf16 %v664, %v814
  %v1065 = vpack.c.bf16 %v530, %v529
  %v1066 = vpack.c.bf16 %v1007, %v857
  %v1067 = vpack.c.bf16 %v667, %v815
  %v1068 = vpack.c.bf16 %v532, %v531
  %v1069 = vpack.c.bf16 %v1008, %v860
  %v1070 = vpack.c.bf16 %v670, %v816
  %v1071 = vpack.c.bf16 %v534, %v533
  %v1072 = vpack.c.bf16 %v1009, %v863
  %v1073 = vpack.c.bf16 %v673, %v817
  %v1074 = vpack.c.bf16 %v536, %v535
  %v1075 = vpack.c.bf16 %v1010, %v866
  %v1076 = vpack.c.bf16 %v676, %v818
  %v1077 = vpack.c.bf16 %v538, %v537
  %v1078 = vpack.c.bf16 %v1011, %v869
  %v1079 = vpack.c.bf16 %v679, %v819
  %v1080 = vpack.c.bf16 %v540, %v539
  %v1081 = vpack.c.bf16 %v1012, %v872
  %v1082 = vpack.c.bf16 %v682, %v820
  %v1083 = vpack.c.bf16 %v542, %v541
  %v1084 = vpack.c.bf16 %v1013, %v875
  %v1085 = vpack.c.bf16 %v685, %v821
  %v1086 = vpack.c.bf16 %v544, %v543
  %v1087 = vpack.c.bf16 %v1014, %v878
  %v1088 = vpack.c.bf16 %v688, %v822
  %v1089 = vpack.c.bf16 %v546, %v545
  %v1090 = vpack.c.bf16 %v1015, %v881
  %v1091 = vpack.c.bf16 %v691, %v823
  %v1092 = vpack.c.bf16 %v548, %v547
  %v1093 = vpack.c.bf16 %v1016, %v884
  %v1094 = vpack.c.bf16 %v694, %v824
  %v1095 = vpack.c.bf16 %v550, %v549
  %v1096 = vpack.c.bf16 %v1017, %v887
  %v1097 = vpack.c.bf16 %v697, %v825
  %v1098 = vpack.c.bf16 %v552, %v551
  %v1099 = vpack.c.bf16 %v1018, %v890
  %v1100 = vpack.c.bf16 %v700, %v826
  %v1101 = vpack.c.bf16 %v554, %v553
  %v1102 = vpack.c.bf16 %v1019, %v893
  %v1103 = vpack.c.bf16 %v703, %v827
  %v1104 = vpack.c.bf16 %v556, %v555
  %v1105 = vpack.c.bf16 %v1020, %v896
  %v1106 = vpack.c.bf16 %v706, %v828
  %v1107 = vpack.c.bf16 %v558, %v557
  %v1108 = vpack.c.bf16 %v1021, %v899
  %v1109 = vpack.c.bf16 %v709, %v829
  %v1110 = vpack.c.bf16 %v560, %v559
  %v1111 = vpack.c.bf16 %v1022, %v902
  %v1112 = vpack.c.bf16 %v712, %v830
  %v1113 = vpack.c.bf16 %v562, %v561
  %v1114 = vpack.c.bf16 %v1023, %v905
  %v1115 = vpack.c.bf16 %v715, %v831
  %v1116 = vpack.c.bf16 %v564, %v563
  %v1117 = vpack.c.bf16 %v1024, %v908
  %v1118 = vpack.c.bf16 %v718, %v832
  %v1119 = vpack.c.bf16 %v566, %v565
  %v1120 = vpack.c.bf16 %v1025, %v911
  %v1121 = vpack.c.bf16 %v721, %v833
  %v1122 = vpack.c.bf16 %v568, %v567
  %v1123 = vpack.c.bf16 %v1026, %v914
  %v1124 = vpack.c.bf16 %v724, %v834
  %v1125 = vpack.c.bf16 %v570, %v569
  %v1126 = vpack.c.bf16 %v1027, %v917
  %v1127 = vpack.c.bf16 %v727, %v835
  %v1128 = vpack.c.bf16 %v572, %v571
  %v1129 = vpack.c.bf16 %v1028, %v920
  %v1130 = vpack.c.bf16 %v730, %v836
  %v1131 = vpack.c.bf16 %v574, %v573
  %v1132 = vpack.c.bf16 %v1029, %v923
  %v1133 = vpack.c.bf16 %v733, %v837
  %v1134 = vpack.c.bf16 %v576, %v575
  %v1135 = vpack.c.bf16 %v1030, %v926
  %v1136 = vpack.c.bf16 %v736, %v838
  %v1137 = vpack.c.bf16 %v578, %v577
  %v1138 = vpack.c.bf16 %v1031, %v929
  %v1139 = vpack.c.bf16 %v739, %v839
  %v1140 = vpack.c.bf16 %v580, %v579
  %v1141 = vpack.c.bf16 %v1032, %v932
  %v1142 = vpack.c.bf16 %v742, %v840
  %v1143 = vpack.c.bf16 %v582, %v581
  %v1144 = vpack.c.bf16 %v1033, %v935
  %v1145 = vpack.c.bf16 %v745, %v841
  %v1146 = vpack.c.bf16 %v584, %v583
  %v1147 = vpack.c.bf16 %v1034, %v938
  %v1244 = vunpack.c.l.b16 %v1052
  %v1245 = vunpack.c.l.b16 %v1053
  %v1246 = vunpack.c.l.b16 %v1054
  %v1247 = vunpack.c.h.b16 %v1052
  %v1248 = vunpack.c.h.b16 %v1053
  %v1249 = vunpack.c.h.b16 %v1054
  %v1250 = vunpack.c.l.b16 %v1055
  %v1251 = vunpack.c.l.b16 %v1056
  %v1252 = vunpack.c.l.b16 %v1057
  %v1253 = vunpack.c.h.b16 %v1055
  %v1254 = vunpack.c.h.b16 %v1056
  %v1255 = vunpack.c.h.b16 %v1057
  %v1256 = vunpack.c.l.b16 %v1058
  %v1257 = vunpack.c.l.b16 %v1059
  %v1258 = vunpack.c.l.b16 %v1060
  %v1259 = vunpack.c.h.b16 %v1058
  %v1260 = vunpack.c.h.b16 %v1059
  %v1261 = vunpack.c.h.b16 %v1060
  %v1262 = vunpack.c.l.b16 %v1061
  %v1263 = vunpack.c.l.b16 %v1062
  %v1264 = vunpack.c.l.b16 %v1063
  %v1265 = vunpack.c.h.b16 %v1061
  %v1266 = vunpack.c.h.b16 %v1062
  %v1267 = vunpack.c.h.b16 %v1063
  %v1268 = vunpack.c.l.b16 %v1064
  %v1269 = vunpack.c.l.b16 %v1065
  %v1270 = vunpack.c.l.b16 %v1066
  %v1271 = vunpack.c.h.b16 %v1064
  %v1272 = vunpack.c.h.b16 %v1065
  %v1273 = vunpack.c.h.b16 %v1066
  %v1274 = vunpack.c.l.b16 %v1067
  %v1275 = vunpack.c.l.b16 %v1068
  %v1276 = vunpack.c.l.b16 %v1069
  %v1277 = vunpack.c.h.b16 %v1067
  %v1278 = vunpack.c.h.b16 %v1068
  %v1279 = vunpack.c.h.b16 %v1069
  %v1280 = vunpack.c.l.b16 %v1070
  %v1281 = vunpack.c.l.b16 %v1071
  %v1282 = vunpack.c.l.b16 %v1072
  %v1283 = vunpack.c.h.b16 %v1070
  %v1284 = vunpack.c.h.b16 %v1071
  %v1285 = vunpack.c.h.b16 %v1072
  %v1286 = vunpack.c.l.b16 %v1073
  %v1287 = vunpack.c.l.b16 %v1074
  %v1288 = vunpack.c.l.b16 %v1075
  %v1289 = vunpack.c.h.b16 %v1073
  %v1290 = vunpack.c.h.b16 %v1074
  %v1291 = vunpack.c.h.b16 %v1075
  %v1292 = vunpack.c.l.b16 %v1076
  %v1293 = vunpack.c.l.b16 %v1077
  %v1294 = vunpack.c.l.b16 %v1078
  %v1295 = vunpack.c.h.b16 %v1076
  %v1296 = vunpack.c.h.b16 %v1077
  %v1297 = vunpack.c.h.b16 %v1078
  %v1298 = vunpack.c.l.b16 %v1079
  %v1299 = vunpack.c.l.b16 %v1080
  %v1300 = vunpack.c.l.b16 %v1081
  %v1301 = vunpack.c.h.b16 %v1079
  %v1302 = vunpack.c.h.b16 %v1080
  %v1303 = vunpack.c.h.b16 %v1081
  %v1304 = vunpack.c.l.b16 %v1082
  %v1305 = vunpack.c.l.b16 %v1083
  %v1306 = vunpack.c.l.b16 %v1084
  %v1307 = vunpack.c.h.b16 %v1082
  %v1308 = vunpack.c.h.b16 %v1083
  %v1309 = vunpack.c.h.b16 %v1084
  %v1310 = vunpack.c.l.b16 %v1085
  %v1311 = vunpack.c.l.b16 %v1086
  %v1312 = vunpack.c.l.b16 %v1087
  %v1313 = vunpack.c.h.b16 %v1085
  %v1314 = vunpack.c.h.b16 %v1086
  %v1315 = vunpack.c.h.b16 %v1087
  %v1316 = vunpack.c.l.b16 %v1088
  %v1317 = vunpack.c.l.b16 %v1089
  %v1318 = vunpack.c.l.b16 %v1090
  %v1319 = vunpack.c.h.b16 %v1088
  %v1320 = vunpack.c.h.b16 %v1089
  %v1321 = vunpack.c.h.b16 %v1090
  %v1322 = vunpack.c.l.b16 %v1091
  %v1323 = vunpack.c.l.b16 %v1092
  %v1324 = vunpack.c.l.b16 %v1093
  %v1325 = vunpack.c.h.b16 %v1091
  %v1326 = vunpack.c.h.b16 %v1092
  %v1327 = vunpack.c.h.b16 %v1093
  %v1328 = vunpack.c.l.b16 %v1094
  %v1329 = vunpack.c.l.b16 %v1095
  %v1330 = vunpack.c.l.b16 %v1096
  %v1331 = vunpack.c.h.b16 %v1094
  %v1332 = vunpack.c.h.b16 %v1095
  %v1333 = vunpack.c.h.b16 %v1096
  %v1334 = vunpack.c.l.b16 %v1097
  %v1335 = vunpack.c.l.b16 %v1098
  %v1336 = vunpack.c.l.b16 %v1099
  %v1337 = vunpack.c.h.b16 %v1097
  %v1338 = vunpack.c.h.b16 %v1098
  %v1339 = vunpack.c.h.b16 %v1099
  %v1340 = vunpack.c.l.b16 %v1100
  %v1341 = vunpack.c.l.b16 %v1101
  %v1342 = vunpack.c.l.b16 %v1102
  %v1343 = vunpack.c.h.b16 %v1100
  %v1344 = vunpack.c.h.b16 %v1101
  %v1345 = vunpack.c.h.b16 %v1102
  %v1346 = vunpack.c.l.b16 %v1103
  %v1347 = vunpack.c.l.b16 %v1104
  %v1348 = vunpack.c.l.b16 %v1105
  %v1349 = vunpack.c.h.b16 %v1103
  %v1350 = vunpack.c.h.b16 %v1104
  %v1351 = vunpack.c.h.b16 %v1105
  %v1352 = vunpack.c.l.b16 %v1106
  %v1353 = vunpack.c.l.b16 %v1107
  %v1354 = vunpack.c.l.b16 %v1108
  %v1355 = vunpack.c.h.b16 %v1106
  %v1356 = vunpack.c.h.b16 %v1107
  %v1357 = vunpack.c.h.b16 %v1108
  %v1358 = vunpack.c.l.b16 %v1109
  %v1359 = vunpack.c.l.b16 %v1110
  %v1360 = vunpack.c.l.b16 %v1111
  %v1361 = vunpack.c.h.b16 %v1109
  %v1362 = vunpack.c.h.b16 %v1110
  %v1363 = vunpack.c.h.b16 %v1111
  %v1364 = vunpack.c.l.b16 %v1112
  %v1365 = vunpack.c.l.b16 %v1113
  %v1366 = vunpack.c.l.b16 %v1114
  %v1367 = vunpack.c.h.b16 %v1112
  %v1368 = vunpack.c.h.b16 %v1113
  %v1369 = vunpack.c.h.b16 %v1114
  %v1370 = vunpack.c.l.b16 %v1115
  %v1371 = vunpack.c.l.b16 %v1116
  %v1372 = vunpack.c.l.b16 %v1117
  %v1373 = vunpack.c.h.b16 %v1115
  %v1374 = vunpack.c.h.b16 %v1116
  %v1375 = vunpack.c.h.b16 %v1117
  %v1376 = vunpack.c.l.b16 %v1118
  %v1377 = vunpack.c.l.b16 %v1119
  %v1378 = vunpack.c.l.b16 %v1120
  %v1379 = vunpack.c.h.b16 %v1118
  %v1380 = vunpack.c.h.b16 %v1119
  %v1381 = vunpack.c.h.b16 %v1120
  %v1382 = vunpack.c.l.b16 %v1121
  %v1383 = vunpack.c.l.b16 %v1122
  %v1384 = vunpack.c.l.b16 %v1123
  %v1385 = vunpack.c.h.b16 %v1121
  %v1386 = vunpack.c.h.b16 %v1122
  %v1387 = vunpack.c.h.b16 %v1123
  %v1388 = vunpack.c.l.b16 %v1124
  %v1389 = vunpack.c.l.b16 %v1125
  %v1390 = vunpack.c.l.b16 %v1126
  %v1391 = vunpack.c.h.b16 %v1124
  %v1392 = vunpack.c.h.b16 %v1125
  %v1393 = vunpack.c.h.b16 %v1126
  %v1394 = vunpack.c.l.b16 %v1127
  %v1395 = vunpack.c.l.b16 %v1128
  %v1396 = vunpack.c.l.b16 %v1129
  %v1397 = vunpack.c.h.b16 %v1127
  %v1398 = vunpack.c.h.b16 %v1128
  %v1399 = vunpack.c.h.b16 %v1129
  %v1400 = vunpack.c.l.b16 %v1130
  %v1401 = vunpack.c.l.b16 %v1131
  %v1402 = vunpack.c.l.b16 %v1132
  %v1403 = vunpack.c.h.b16 %v1130
  %v1404 = vunpack.c.h.b16 %v1131
  %v1405 = vunpack.c.h.b16 %v1132
  %v1406 = vunpack.c.l.b16 %v1133
  %v1407 = vunpack.c.l.b16 %v1134
  %v1408 = vunpack.c.l.b16 %v1135
  %v1409 = vunpack.c.h.b16 %v1133
  %v1410 = vunpack.c.h.b16 %v1134
  %v1411 = vunpack.c.h.b16 %v1135
  %v1412 = vunpack.c.l.b16 %v1136
  %v1413 = vunpack.c.l.b16 %v1137
  %v1414 = vunpack.c.l.b16 %v1138
  %v1415 = vunpack.c.h.b16 %v1136
  %v1416 = vunpack.c.h.b16 %v1137
  %v1417 = vunpack.c.h.b16 %v1138
  %v1418 = vunpack.c.l.b16 %v1139
  %v1419 = vunpack.c.l.b16 %v1140
  %v1420 = vunpack.c.l.b16 %v1141
  %v1421 = vunpack.c.h.b16 %v1139
  %v1422 = vunpack.c.h.b16 %v1140
  %v1423 = vunpack.c.h.b16 %v1141
  %v1424 = vunpack.c.l.b16 %v1142
  %v1425 = vunpack.c.l.b16 %v1143
  %v1426 = vunpack.c.l.b16 %v1144
  %v1427 = vunpack.c.h.b16 %v1142
  %v1428 = vunpack.c.h.b16 %v1143
  %v1429 = vunpack.c.h.b16 %v1144
  %v1430 = vunpack.c.l.b16 %v1145
  %v1431 = vunpack.c.l.b16 %v1146
  %v1432 = vunpack.c.l.b16 %v1147
  %v1433 = vunpack.c.h.b16 %v1145
  %v1434 = vunpack.c.h.b16 %v1146
  %v1435 = vunpack.c.h.b16 %v1147
  %v1436 = vpack.c.b16 %v1245, %v1244
  %v1437 = vpack.c.b16 %v1246, %v1246
  %v1438 = vpack.c.b16 %v1248, %v1247
  %v1439 = vpack.c.b16 %v1249, %v1249
  %v1440 = vpack.c.b16 %v1251, %v1250
  %v1441 = vpack.c.b16 %v1252, %v1252
  %v1442 = vpack.c.b16 %v1254, %v1253
  %v1443 = vpack.c.b16 %v1255, %v1255
  %v1444 = vpack.c.b16 %v1257, %v1256
  %v1445 = vpack.c.b16 %v1258, %v1258
  %v1446 = vpack.c.b16 %v1260, %v1259
  %v1447 = vpack.c.b16 %v1261, %v1261
  %v1448 = vpack.c.b16 %v1263, %v1262
  %v1449 = vpack.c.b16 %v1264, %v1264
  %v1450 = vpack.c.b16 %v1266, %v1265
  %v1451 = vpack.c.b16 %v1267, %v1267
  %v1452 = vpack.c.b16 %v1269, %v1268
  %v1453 = vpack.c.b16 %v1270, %v1270
  %v1454 = vpack.c.b16 %v1272, %v1271
  %v1455 = vpack.c.b16 %v1273, %v1273
  %v1456 = vpack.c.b16 %v1275, %v1274
  %v1457 = vpack.c.b16 %v1276, %v1276
  %v1458 = vpack.c.b16 %v1278, %v1277
  %v1459 = vpack.c.b16 %v1279, %v1279
  %v1460 = vpack.c.b16 %v1281, %v1280
  %v1461 = vpack.c.b16 %v1282, %v1282
  %v1462 = vpack.c.b16 %v1284, %v1283
  %v1463 = vpack.c.b16 %v1285, %v1285
  %v1464 = vpack.c.b16 %v1287, %v1286
  %v1465 = vpack.c.b16 %v1288, %v1288
  %v1466 = vpack.c.b16 %v1290, %v1289
  %v1467 = vpack.c.b16 %v1291, %v1291
  %v1468 = vpack.c.b16 %v1293, %v1292
  %v1469 = vpack.c.b16 %v1294, %v1294
  %v1470 = vpack.c.b16 %v1296, %v1295
  %v1471 = vpack.c.b16 %v1297, %v1297
  %v1472 = vpack.c.b16 %v1299, %v1298
  %v1473 = vpack.c.b16 %v1300, %v1300
  %v1474 = vpack.c.b16 %v1302, %v1301
  %v1475 = vpack.c.b16 %v1303, %v1303
  %v1476 = vpack.c.b16 %v1305, %v1304
  %v1477 = vpack.c.b16 %v1306, %v1306
  %v1478 = vpack.c.b16 %v1308, %v1307
  %v1479 = vpack.c.b16 %v1309, %v1309
  %v1480 = vpack.c.b16 %v1311, %v1310
  %v1481 = vpack.c.b16 %v1312, %v1312
  %v1482 = vpack.c.b16 %v1314, %v1313
  %v1483 = vpack.c.b16 %v1315, %v1315
  %v1484 = vpack.c.b16 %v1317, %v1316
  %v1485 = vpack.c.b16 %v1318, %v1318
  %v1486 = vpack.c.b16 %v1320, %v1319
  %v1487 = vpack.c.b16 %v1321, %v1321
  %v1488 = vpack.c.b16 %v1323, %v1322
  %v1489 = vpack.c.b16 %v1324, %v1324
  %v1490 = vpack.c.b16 %v1326, %v1325
  %v1491 = vpack.c.b16 %v1327, %v1327
  %v1492 = vpack.c.b16 %v1329, %v1328
  %v1493 = vpack.c.b16 %v1330, %v1330
  %v1494 = vpack.c.b16 %v1332, %v1331
  %v1495 = vpack.c.b16 %v1333, %v1333
  %v1496 = vpack.c.b16 %v1335, %v1334
  %v1497 = vpack.c.b16 %v1336, %v1336
  %v1498 = vpack.c.b16 %v1338, %v1337
  %v1499 = vpack.c.b16 %v1339, %v1339
  %v1500 = vpack.c.b16 %v1341, %v1340
  %v1501 = vpack.c.b16 %v1342, %v1342
  %v1502 = vpack.c.b16 %v1344, %v1343
  %v1503 = vpack.c.b16 %v1345, %v1345
  %v1504 = vpack.c.b16 %v1347, %v1346
  %v1505 = vpack.c.b16 %v1348, %v1348
  %v1506 = vpack.c.b16 %v1350, %v1349
  %v1507 = vpack.c.b16 %v1351, %v1351
  %v1508 = vpack.c.b16 %v1353, %v1352
  %v1509 = vpack.c.b16 %v1354, %v1354
  %v1510 = vpack.c.b16 %v1356, %v1355
  %v1511 = vpack.c.b16 %v1357, %v1357
  %v1512 = vpack.c.b16 %v1359, %v1358
  %v1513 = vpack.c.b16 %v1360, %v1360
  %v1514 = vpack.c.b16 %v1362, %v1361
  %v1515 = vpack.c.b16 %v1363, %v1363
  %v1516 = vpack.c.b16 %v1365, %v1364
  %v1517 = vpack.c.b16 %v1366, %v1366
  %v1518 = vpack.c.b16 %v1368, %v1367
  %v1519 = vpack.c.b16 %v1369, %v1369
  %v1520 = vpack.c.b16 %v1371, %v1370
  %v1521 = vpack.c.b16 %v1372, %v1372
  %v1522 = vpack.c.b16 %v1374, %v1373
  %v1523 = vpack.c.b16 %v1375, %v1375
  %v1524 = vpack.c.b16 %v1377, %v1376
  %v1525 = vpack.c.b16 %v1378, %v1378
  %v1526 = vpack.c.b16 %v1380, %v1379
  %v1527 = vpack.c.b16 %v1381, %v1381
  %v1528 = vpack.c.b16 %v1383, %v1382
  %v1529 = vpack.c.b16 %v1384, %v1384
  %v1530 = vpack.c.b16 %v1386, %v1385
  %v1531 = vpack.c.b16 %v1387, %v1387
  %v1532 = vpack.c.b16 %v1389, %v1388
  %v1533 = vpack.c.b16 %v1390, %v1390
  %v1534 = vpack.c.b16 %v1392, %v1391
  %v1535 = vpack.c.b16 %v1393, %v1393
  %v1536 = vpack.c.b16 %v1395, %v1394
  %v1537 = vpack.c.b16 %v1396, %v1396
  %v1538 = vpack.c.b16 %v1398, %v1397
  %v1539 = vpack.c.b16 %v1399, %v1399
  %v1540 = vpack.c.b16 %v1401, %v1400
  %v1541 = vpack.c.b16 %v1402, %v1402
  %v1542 = vpack.c.b16 %v1404, %v1403
  %v1543 = vpack.c.b16 %v1405, %v1405
  %v1544 = vpack.c.b16 %v1407, %v1406
  %v1545 = vpack.c.b16 %v1408, %v1408
  %v1546 = vpack.c.b16 %v1410, %v1409
  %v1547 = vpack.c.b16 %v1411, %v1411
  %v1548 = vpack.c.b16 %v1413, %v1412
  %v1549 = vpack.c.b16 %v1414, %v1414
  %v1550 = vpack.c.b16 %v1416, %v1415
  %v1551 = vpack.c.b16 %v1417, %v1417
  %v1552 = vpack.c.b16 %v1419, %v1418
  %v1553 = vpack.c.b16 %v1420, %v1420
  %v1554 = vpack.c.b16 %v1422, %v1421
  %v1555 = vpack.c.b16 %v1423, %v1423
  %v1556 = vpack.c.b16 %v1425, %v1424
  %v1557 = vpack.c.b16 %v1426, %v1426
  %v1558 = vpack.c.b16 %v1428, %v1427
  %v1559 = vpack.c.b16 %v1429, %v1429
  %v1560 = vpack.c.b16 %v1431, %v1430
  %v1561 = vpack.c.b16 %v1432, %v1432
  %v1562 = vpack.c.b16 %v1434, %v1433
  %v1563 = vpack.c.b16 %v1435, %v1435
  %s1692 = scalar_lea.vmem [#allocation2], 24
  %1693 = vst [vmem:[%s1692] sm:$0xff] %v1436
  %1694 = vst [vmem:[%s1692 + $0x8] sm:$0xf] %v1437
  %1695 = vst [vmem:[%s1692 + $0xc] sm:$0xff] %v1438
  %1696 = vst [vmem:[%s1692 + $0x14] sm:$0xf] %v1439
  %1697 = vst [vmem:[%s1692 + $0x18] sm:$0xff] %v1440
  %1698 = vst [vmem:[%s1692 + $0x20] sm:$0xf] %v1441
  %1699 = vst [vmem:[%s1692 + $0x24] sm:$0xff] %v1442
  %1700 = vst [vmem:[%s1692 + $0x2c] sm:$0xf] %v1443
  %1701 = vst [vmem:[%s1692 + $0x30] sm:$0xff] %v1444
  %1702 = vst [vmem:[%s1692 + $0x38] sm:$0xf] %v1445
  %1703 = vst [vmem:[%s1692 + $0x3c] sm:$0xff] %v1446
  %1704 = vst [vmem:[%s1692 + $0x44] sm:$0xf] %v1447
  %1705 = vst [vmem:[%s1692 + $0x48] sm:$0xff] %v1448
  %1706 = vst [vmem:[%s1692 + $0x50] sm:$0xf] %v1449
  %1707 = vst [vmem:[%s1692 + $0x54] sm:$0xff] %v1450
  %1708 = vst [vmem:[%s1692 + $0x5c] sm:$0xf] %v1451
  %1709 = vst [vmem:[%s1692 + $0x60] sm:$0xff] %v1452
  %1710 = vst [vmem:[%s1692 + $0x68] sm:$0xf] %v1453
  %1711 = vst [vmem:[%s1692 + $0x6c] sm:$0xff] %v1454
  %1712 = vst [vmem:[%s1692 + $0x74] sm:$0xf] %v1455
  %1713 = vst [vmem:[%s1692 + $0x78] sm:$0xff] %v1456
  %1714 = vst [vmem:[%s1692 + $0x80] sm:$0xf] %v1457
  %1715 = vst [vmem:[%s1692 + $0x84] sm:$0xff] %v1458
  %1716 = vst [vmem:[%s1692 + $0x8c] sm:$0xf] %v1459
  %1717 = vst [vmem:[%s1692 + $0x90] sm:$0xff] %v1460
  %1718 = vst [vmem:[%s1692 + $0x98] sm:$0xf] %v1461
  %1719 = vst [vmem:[%s1692 + $0x9c] sm:$0xff] %v1462
  %1720 = vst [vmem:[%s1692 + $0xa4] sm:$0xf] %v1463
  %1721 = vst [vmem:[%s1692 + $0xa8] sm:$0xff] %v1464
  %1722 = vst [vmem:[%s1692 + $0xb0] sm:$0xf] %v1465
  %1723 = vst [vmem:[%s1692 + $0xb4] sm:$0xff] %v1466
  %1724 = vst [vmem:[%s1692 + $0xbc] sm:$0xf] %v1467
  %1725 = vst [vmem:[%s1692 + $0xc0] sm:$0xff] %v1468
  %1726 = vst [vmem:[%s1692 + $0xc8] sm:$0xf] %v1469
  %1727 = vst [vmem:[%s1692 + $0xcc] sm:$0xff] %v1470
  %1728 = vst [vmem:[%s1692 + $0xd4] sm:$0xf] %v1471
  %1729 = vst [vmem:[%s1692 + $0xd8] sm:$0xff] %v1472
  %1730 = vst [vmem:[%s1692 + $0xe0] sm:$0xf] %v1473
  %1731 = vst [vmem:[%s1692 + $0xe4] sm:$0xff] %v1474
  %1732 = vst [vmem:[%s1692 + $0xec] sm:$0xf] %v1475
  %1733 = vst [vmem:[%s1692 + $0xf0] sm:$0xff] %v1476
  %1734 = vst [vmem:[%s1692 + $0xf8] sm:$0xf] %v1477
  %1735 = vst [vmem:[%s1692 + $0xfc] sm:$0xff] %v1478
  %1736 = vst [vmem:[%s1692 + $0x104] sm:$0xf] %v1479
  %1737 = vst [vmem:[%s1692 + $0x108] sm:$0xff] %v1480
  %1738 = vst [vmem:[%s1692 + $0x110] sm:$0xf] %v1481
  %1739 = vst [vmem:[%s1692 + $0x114] sm:$0xff] %v1482
  %1740 = vst [vmem:[%s1692 + $0x11c] sm:$0xf] %v1483
  %1741 = vst [vmem:[%s1692 + $0x120] sm:$0xff] %v1484
  %1742 = vst [vmem:[%s1692 + $0x128] sm:$0xf] %v1485
  %1743 = vst [vmem:[%s1692 + $0x12c] sm:$0xff] %v1486
  %1744 = vst [vmem:[%s1692 + $0x134] sm:$0xf] %v1487
  %1745 = vst [vmem:[%s1692 + $0x138] sm:$0xff] %v1488
  %1746 = vst [vmem:[%s1692 + $0x140] sm:$0xf] %v1489
  %1747 = vst [vmem:[%s1692 + $0x144] sm:$0xff] %v1490
  %1748 = vst [vmem:[%s1692 + $0x14c] sm:$0xf] %v1491
  %1749 = vst [vmem:[%s1692 + $0x150] sm:$0xff] %v1492
  %1750 = vst [vmem:[%s1692 + $0x158] sm:$0xf] %v1493
  %1751 = vst [vmem:[%s1692 + $0x15c] sm:$0xff] %v1494
  %1752 = vst [vmem:[%s1692 + $0x164] sm:$0xf] %v1495
  %1753 = vst [vmem:[%s1692 + $0x168] sm:$0xff] %v1496
  %1754 = vst [vmem:[%s1692 + $0x170] sm:$0xf] %v1497
  %1755 = vst [vmem:[%s1692 + $0x174] sm:$0xff] %v1498
  %1756 = vst [vmem:[%s1692 + $0x17c] sm:$0xf] %v1499
  %1757 = vst [vmem:[%s1692 + $0x1b0] sm:$0xff] %v1500
  %1758 = vst [vmem:[%s1692 + $0x1b8] sm:$0xf] %v1501
  %1759 = vst [vmem:[%s1692 + $0x1bc] sm:$0xff] %v1502
  %1760 = vst [vmem:[%s1692 + $0x1c4] sm:$0xf] %v1503
  %1761 = vst [vmem:[%s1692 + $0x1c8] sm:$0xff] %v1504
  %1762 = vst [vmem:[%s1692 + $0x1d0] sm:$0xf] %v1505
  %1763 = vst [vmem:[%s1692 + $0x1d4] sm:$0xff] %v1506
  %1764 = vst [vmem:[%s1692 + $0x1dc] sm:$0xf] %v1507
  %1765 = vst [vmem:[%s1692 + $0x1e0] sm:$0xff] %v1508
  %1766 = vst [vmem:[%s1692 + $0x1e8] sm:$0xf] %v1509
  %1767 = vst [vmem:[%s1692 + $0x1ec] sm:$0xff] %v1510
  %1768 = vst [vmem:[%s1692 + $0x1f4] sm:$0xf] %v1511
  %1769 = vst [vmem:[%s1692 + $0x1f8] sm:$0xff] %v1512
  %1770 = vst [vmem:[%s1692 + $0x200] sm:$0xf] %v1513
  %1771 = vst [vmem:[%s1692 + $0x204] sm:$0xff] %v1514
  %1772 = vst [vmem:[%s1692 + $0x20c] sm:$0xf] %v1515
  %1773 = vst [vmem:[%s1692 + $0x210] sm:$0xff] %v1516
  %1774 = vst [vmem:[%s1692 + $0x218] sm:$0xf] %v1517
  %1775 = vst [vmem:[%s1692 + $0x21c] sm:$0xff] %v1518
  %1776 = vst [vmem:[%s1692 + $0x224] sm:$0xf] %v1519
  %1777 = vst [vmem:[%s1692 + $0x228] sm:$0xff] %v1520
  %1778 = vst [vmem:[%s1692 + $0x230] sm:$0xf] %v1521
  %1779 = vst [vmem:[%s1692 + $0x234] sm:$0xff] %v1522
  %1780 = vst [vmem:[%s1692 + $0x23c] sm:$0xf] %v1523
  %1781 = vst [vmem:[%s1692 + $0x240] sm:$0xff] %v1524
  %1782 = vst [vmem:[%s1692 + $0x248] sm:$0xf] %v1525
  %1783 = vst [vmem:[%s1692 + $0x24c] sm:$0xff] %v1526
  %1784 = vst [vmem:[%s1692 + $0x254] sm:$0xf] %v1527
  %1785 = vst [vmem:[%s1692 + $0x258] sm:$0xff] %v1528
  %1786 = vst [vmem:[%s1692 + $0x260] sm:$0xf] %v1529
  %1787 = vst [vmem:[%s1692 + $0x264] sm:$0xff] %v1530
  %1788 = vst [vmem:[%s1692 + $0x26c] sm:$0xf] %v1531
  %1789 = vst [vmem:[%s1692 + $0x270] sm:$0xff] %v1532
  %1790 = vst [vmem:[%s1692 + $0x278] sm:$0xf] %v1533
  %1791 = vst [vmem:[%s1692 + $0x27c] sm:$0xff] %v1534
  %1792 = vst [vmem:[%s1692 + $0x284] sm:$0xf] %v1535
  %1793 = vst [vmem:[%s1692 + $0x288] sm:$0xff] %v1536
  %1794 = vst [vmem:[%s1692 + $0x290] sm:$0xf] %v1537
  %1795 = vst [vmem:[%s1692 + $0x294] sm:$0xff] %v1538
  %1796 = vst [vmem:[%s1692 + $0x29c] sm:$0xf] %v1539
  %1797 = vst [vmem:[%s1692 + $0x2a0] sm:$0xff] %v1540
  %1798 = vst [vmem:[%s1692 + $0x2a8] sm:$0xf] %v1541
  %1799 = vst [vmem:[%s1692 + $0x2ac] sm:$0xff] %v1542
  %1800 = vst [vmem:[%s1692 + $0x2b4] sm:$0xf] %v1543
  %1801 = vst [vmem:[%s1692 + $0x2b8] sm:$0xff] %v1544
  %1802 = vst [vmem:[%s1692 + $0x2c0] sm:$0xf] %v1545
  %1803 = vst [vmem:[%s1692 + $0x2c4] sm:$0xff] %v1546
  %1804 = vst [vmem:[%s1692 + $0x2cc] sm:$0xf] %v1547
  %1805 = vst [vmem:[%s1692 + $0x2d0] sm:$0xff] %v1548
  %1806 = vst [vmem:[%s1692 + $0x2d8] sm:$0xf] %v1549
  %1807 = vst [vmem:[%s1692 + $0x2dc] sm:$0xff] %v1550
  %1808 = vst [vmem:[%s1692 + $0x2e4] sm:$0xf] %v1551
  %1809 = vst [vmem:[%s1692 + $0x2e8] sm:$0xff] %v1552
  %1810 = vst [vmem:[%s1692 + $0x2f0] sm:$0xf] %v1553
  %1811 = vst [vmem:[%s1692 + $0x2f4] sm:$0xff] %v1554
  %1812 = vst [vmem:[%s1692 + $0x2fc] sm:$0xf] %v1555
  %1813 = vst [vmem:[%s1692 + $0x300] sm:$0xff] %v1556
  %1814 = vst [vmem:[%s1692 + $0x308] sm:$0xf] %v1557
  %1815 = vst [vmem:[%s1692 + $0x30c] sm:$0xff] %v1558
  %1816 = vst [vmem:[%s1692 + $0x314] sm:$0xf] %v1559
  %1817 = vst [vmem:[%s1692 + $0x318] sm:$0xff] %v1560
  %1818 = vst [vmem:[%s1692 + $0x320] sm:$0xf] %v1561
  %1819 = vst [vmem:[%s1692 + $0x324] sm:$0xff] %v1562
  %1820 = vst [vmem:[%s1692 + $0x32c] sm:$0xf] %v1563
  %v1821 = vld [vmem:[#allocation2] sm:$0xff]
  %v1822 = vld [vmem:[#allocation2 + $0x8] sm:$0xf]
  %v1823 = vld [vmem:[#allocation2 + $0xc] sm:$0xff]
  %v1824 = vld [vmem:[#allocation2 + $0x14] sm:$0xf]
  %v1825 = vld [vmem:[#allocation2 + $0x18] sm:$0xff]
  %v1826 = vld [vmem:[#allocation2 + $0x20] sm:$0xf]
  %v1827 = vld [vmem:[#allocation2 + $0x24] sm:$0xff]
  %v1828 = vld [vmem:[#allocation2 + $0x2c] sm:$0xf]
  %v1829 = vld [vmem:[#allocation2 + $0x30] sm:$0xff]
  %v1830 = vld [vmem:[#allocation2 + $0x38] sm:$0xf]
  %v1831 = vld [vmem:[#allocation2 + $0x3c] sm:$0xff]
  %v1832 = vld [vmem:[#allocation2 + $0x44] sm:$0xf]
  %v1833 = vld [vmem:[#allocation2 + $0x48] sm:$0xff]
  %v1834 = vld [vmem:[#allocation2 + $0x50] sm:$0xf]
  %v1835 = vld [vmem:[#allocation2 + $0x54] sm:$0xff]
  %v1836 = vld [vmem:[#allocation2 + $0x5c] sm:$0xf]
  %v1837 = vld [vmem:[#allocation2 + $0x60] sm:$0xff]
  %v1838 = vld [vmem:[#allocation2 + $0x68] sm:$0xf]
  %v1839 = vld [vmem:[#allocation2 + $0x6c] sm:$0xff]
  %v1840 = vld [vmem:[#allocation2 + $0x74] sm:$0xf]
  %v1841 = vld [vmem:[#allocation2 + $0x78] sm:$0xff]
  %v1842 = vld [vmem:[#allocation2 + $0x80] sm:$0xf]
  %v1843 = vld [vmem:[#allocation2 + $0x84] sm:$0xff]
  %v1844 = vld [vmem:[#allocation2 + $0x8c] sm:$0xf]
  %v1845 = vld [vmem:[#allocation2 + $0x90] sm:$0xff]
  %v1846 = vld [vmem:[#allocation2 + $0x98] sm:$0xf]
  %v1847 = vld [vmem:[#allocation2 + $0x9c] sm:$0xff]
  %v1848 = vld [vmem:[#allocation2 + $0xa4] sm:$0xf]
  %v1849 = vld [vmem:[#allocation2 + $0xa8] sm:$0xff]
  %v1850 = vld [vmem:[#allocation2 + $0xb0] sm:$0xf]
  %v1851 = vld [vmem:[#allocation2 + $0xb4] sm:$0xff]
  %v1852 = vld [vmem:[#allocation2 + $0xbc] sm:$0xf]
  %v1853 = vld [vmem:[#allocation2 + $0xc0] sm:$0xff]
  %v1854 = vld [vmem:[#allocation2 + $0xc8] sm:$0xf]
  %v1855 = vld [vmem:[#allocation2 + $0xcc] sm:$0xff]
  %v1856 = vld [vmem:[#allocation2 + $0xd4] sm:$0xf]
  %v1857 = vld [vmem:[#allocation2 + $0xd8] sm:$0xff]
  %v1858 = vld [vmem:[#allocation2 + $0xe0] sm:$0xf]
  %v1859 = vld [vmem:[#allocation2 + $0xe4] sm:$0xff]
  %v1860 = vld [vmem:[#allocation2 + $0xec] sm:$0xf]
  %v1861 = vld [vmem:[#allocation2 + $0xf0] sm:$0xff]
  %v1862 = vld [vmem:[#allocation2 + $0xf8] sm:$0xf]
  %v1863 = vld [vmem:[#allocation2 + $0xfc] sm:$0xff]
  %v1864 = vld [vmem:[#allocation2 + $0x104] sm:$0xf]
  %v1865 = vld [vmem:[#allocation2 + $0x108] sm:$0xff]
  %v1866 = vld [vmem:[#allocation2 + $0x110] sm:$0xf]
  %v1867 = vld [vmem:[#allocation2 + $0x114] sm:$0xff]
  %v1868 = vld [vmem:[#allocation2 + $0x11c] sm:$0xf]
  %v1869 = vld [vmem:[#allocation2 + $0x120] sm:$0xff]
  %v1870 = vld [vmem:[#allocation2 + $0x128] sm:$0xf]
  %v1871 = vld [vmem:[#allocation2 + $0x12c] sm:$0xff]
  %v1872 = vld [vmem:[#allocation2 + $0x134] sm:$0xf]
  %v1873 = vld [vmem:[#allocation2 + $0x138] sm:$0xff]
  %v1874 = vld [vmem:[#allocation2 + $0x140] sm:$0xf]
  %v1875 = vld [vmem:[#allocation2 + $0x144] sm:$0xff]
  %v1876 = vld [vmem:[#allocation2 + $0x14c] sm:$0xf]
  %v1877 = vld [vmem:[#allocation2 + $0x150] sm:$0xff]
  %v1878 = vld [vmem:[#allocation2 + $0x158] sm:$0xf]
  %v1879 = vld [vmem:[#allocation2 + $0x15c] sm:$0xff]
  %v1880 = vld [vmem:[#allocation2 + $0x164] sm:$0xf]
  %v1881 = vld [vmem:[#allocation2 + $0x168] sm:$0xff]
  %v1882 = vld [vmem:[#allocation2 + $0x170] sm:$0xf]
  %v1883 = vld [vmem:[#allocation2 + $0x174] sm:$0xff]
  %v1884 = vld [vmem:[#allocation2 + $0x17c] sm:$0xf]
  %v1885 = vld [vmem:[#allocation2 + $0x1b0] sm:$0xff]
  %v1886 = vld [vmem:[#allocation2 + $0x1b8] sm:$0xf]
  %v1887 = vld [vmem:[#allocation2 + $0x1bc] sm:$0xff]
  %v1888 = vld [vmem:[#allocation2 + $0x1c4] sm:$0xf]
  %v1889 = vld [vmem:[#allocation2 + $0x1c8] sm:$0xff]
  %v1890 = vld [vmem:[#allocation2 + $0x1d0] sm:$0xf]
  %v1891 = vld [vmem:[#allocation2 + $0x1d4] sm:$0xff]
  %v1892 = vld [vmem:[#allocation2 + $0x1dc] sm:$0xf]
  %v1893 = vld [vmem:[#allocation2 + $0x1e0] sm:$0xff]
  %v1894 = vld [vmem:[#allocation2 + $0x1e8] sm:$0xf]
  %v1895 = vld [vmem:[#allocation2 + $0x1ec] sm:$0xff]
  %v1896 = vld [vmem:[#allocation2 + $0x1f4] sm:$0xf]
  %v1897 = vld [vmem:[#allocation2 + $0x1f8] sm:$0xff]
  %v1898 = vld [vmem:[#allocation2 + $0x200] sm:$0xf]
  %v1899 = vld [vmem:[#allocation2 + $0x204] sm:$0xff]
  %v1900 = vld [vmem:[#allocation2 + $0x20c] sm:$0xf]
  %v1901 = vld [vmem:[#allocation2 + $0x210] sm:$0xff]
  %v1902 = vld [vmem:[#allocation2 + $0x218] sm:$0xf]
  %v1903 = vld [vmem:[#allocation2 + $0x21c] sm:$0xff]
  %v1904 = vld [vmem:[#allocation2 + $0x224] sm:$0xf]
  %v1905 = vld [vmem:[#allocation2 + $0x228] sm:$0xff]
  %v1906 = vld [vmem:[#allocation2 + $0x230] sm:$0xf]
  %v1907 = vld [vmem:[#allocation2 + $0x234] sm:$0xff]
  %v1908 = vld [vmem:[#allocation2 + $0x23c] sm:$0xf]
  %v1909 = vld [vmem:[#allocation2 + $0x240] sm:$0xff]
  %v1910 = vld [vmem:[#allocation2 + $0x248] sm:$0xf]
  %v1911 = vld [vmem:[#allocation2 + $0x24c] sm:$0xff]
  %v1912 = vld [vmem:[#allocation2 + $0x254] sm:$0xf]
  %v1913 = vld [vmem:[#allocation2 + $0x258] sm:$0xff]
  %v1914 = vld [vmem:[#allocation2 + $0x260] sm:$0xf]
  %v1915 = vld [vmem:[#allocation2 + $0x264] sm:$0xff]
  %v1916 = vld [vmem:[#allocation2 + $0x26c] sm:$0xf]
  %v1917 = vld [vmem:[#allocation2 + $0x270] sm:$0xff]
  %v1918 = vld [vmem:[#allocation2 + $0x278] sm:$0xf]
  %v1919 = vld [vmem:[#allocation2 + $0x27c] sm:$0xff]
  %v1920 = vld [vmem:[#allocation2 + $0x284] sm:$0xf]
  %v1921 = vld [vmem:[#allocation2 + $0x288] sm:$0xff]
  %v1922 = vld [vmem:[#allocation2 + $0x290] sm:$0xf]
  %v1923 = vld [vmem:[#allocation2 + $0x294] sm:$0xff]
  %v1924 = vld [vmem:[#allocation2 + $0x29c] sm:$0xf]
  %v1925 = vld [vmem:[#allocation2 + $0x2a0] sm:$0xff]
  %v1926 = vld [vmem:[#allocation2 + $0x2a8] sm:$0xf]
  %v1927 = vld [vmem:[#allocation2 + $0x2ac] sm:$0xff]
  %v1928 = vld [vmem:[#allocation2 + $0x2b4] sm:$0xf]
  %v1929 = vld [vmem:[#allocation2 + $0x2b8] sm:$0xff]
  %v1930 = vld [vmem:[#allocation2 + $0x2c0] sm:$0xf]
  %v1931 = vld [vmem:[#allocation2 + $0x2c4] sm:$0xff]
  %v1932 = vld [vmem:[#allocation2 + $0x2cc] sm:$0xf]
  %v1933 = vld [vmem:[#allocation2 + $0x2d0] sm:$0xff]
  %v1934 = vld [vmem:[#allocation2 + $0x2d8] sm:$0xf]
  %v1935 = vld [vmem:[#allocation2 + $0x2dc] sm:$0xff]
  %v1936 = vld [vmem:[#allocation2 + $0x2e4] sm:$0xf]
  %v1937 = vld [vmem:[#allocation2 + $0x2e8] sm:$0xff]
  %v1938 = vld [vmem:[#allocation2 + $0x2f0] sm:$0xf]
  %v1939 = vld [vmem:[#allocation2 + $0x2f4] sm:$0xff]
  %v1940 = vld [vmem:[#allocation2 + $0x2fc] sm:$0xf]
  %v1941 = vld [vmem:[#allocation2 + $0x300] sm:$0xff]
  %v1942 = vld [vmem:[#allocation2 + $0x308] sm:$0xf]
  %v1943 = vld [vmem:[#allocation2 + $0x30c] sm:$0xff]
  %v1944 = vld [vmem:[#allocation2 + $0x314] sm:$0xf]
  %v1945 = vld [vmem:[#allocation2 + $0x318] sm:$0xff]
  %v1946 = vld [vmem:[#allocation2 + $0x320] sm:$0xf]
  %v1947 = vld [vmem:[#allocation2 + $0x324] sm:$0xff]
  %v1948 = vld [vmem:[#allocation2 + $0x32c] sm:$0xf]
  %v1949 = vld [vmem:[%s3] sm:$0xf]
  %v1950 = vld [vmem:[%s3 + $0x4] sm:$0xf]
  %v1951 = vld [vmem:[%s3 + $0x8] sm:$0xf]
  %v1952 = vld [vmem:[%s3 + $0xc] sm:$0xf]
  %v1953 = vld [vmem:[%s3 + $0x10] sm:$0xf]
  %v1954 = vld [vmem:[%s3 + $0x14] sm:$0xf]
  %v1955 = vld [vmem:[%s3 + $0x18] sm:$0xf]
  %v1956 = vld [vmem:[%s3 + $0x1c] sm:$0xf]
  %v1957 = vld [vmem:[%s3 + $0x20] sm:$0xf]
  %v1958 = vld [vmem:[%s3 + $0x24] sm:$0xf]
  %v1959 = vld [vmem:[%s3 + $0x28] sm:$0xf]
  %v1960 = vld [vmem:[%s3 + $0x2c] sm:$0xf]
  %v1961 = vld [vmem:[%s3 + $0x30] sm:$0xf]
  %v1962 = vld [vmem:[%s3 + $0x34] sm:$0xf]
  %v1963 = vld [vmem:[%s3 + $0x38] sm:$0xf]
  %v1964 = vld [vmem:[%s3 + $0x3c] sm:$0xf]
  %v1965 = vld [vmem:[%s3 + $0x40] sm:$0xf]
  %v1966 = vld [vmem:[%s3 + $0x44] sm:$0xf]
  %v1967 = vld [vmem:[%s3 + $0x48] sm:$0xf]
  %v1968 = vld [vmem:[%s3 + $0x4c] sm:$0xf]
  %v1969 = vld [vmem:[%s3 + $0x50] sm:$0xf]
  %v1970 = vld [vmem:[%s3 + $0x54] sm:$0xf]
  %v1971 = vld [vmem:[%s3 + $0x58] sm:$0xf]
  %v1972 = vld [vmem:[%s3 + $0x5c] sm:$0xf]
  %v1973 = vld [vmem:[%s3 + $0x60] sm:$0xf]
  %v1974 = vld [vmem:[%s3 + $0x64] sm:$0xf]
  %v1975 = vld [vmem:[%s3 + $0x68] sm:$0xf]
  %v1976 = vld [vmem:[%s3 + $0x6c] sm:$0xf]
  %v1977 = vld [vmem:[%s3 + $0x70] sm:$0xf]
  %v1978 = vld [vmem:[%s3 + $0x74] sm:$0xf]
  %v1979 = vld [vmem:[%s3 + $0x78] sm:$0xf]
  %v1980 = vld [vmem:[%s3 + $0x7c] sm:$0xf]
  %v1981 = vld [vmem:[%s3 + $0x80] sm:$0xf]
  %v1982 = vld [vmem:[%s3 + $0x84] sm:$0xf]
  %v1983 = vld [vmem:[%s3 + $0x88] sm:$0xf]
  %v1984 = vld [vmem:[%s3 + $0x8c] sm:$0xf]
  %v1985 = vld [vmem:[%s3 + $0x90] sm:$0xf]
  %v1986 = vld [vmem:[%s3 + $0x94] sm:$0xf]
  %v1987 = vld [vmem:[%s3 + $0x98] sm:$0xf]
  %v1988 = vld [vmem:[%s3 + $0x9c] sm:$0xf]
  %v1989 = vld [vmem:[%s3 + $0xa0] sm:$0xf]
  %v1990 = vld [vmem:[%s3 + $0xa4] sm:$0xf]
  %v1991 = vld [vmem:[%s3 + $0xa8] sm:$0xf]
  %v1992 = vld [vmem:[%s3 + $0xac] sm:$0xf]
  %v1993 = vld [vmem:[%s3 + $0xb0] sm:$0xf]
  %v1994 = vld [vmem:[%s3 + $0xb4] sm:$0xf]
  %v1995 = vld [vmem:[%s3 + $0xb8] sm:$0xf]
  %v1996 = vld [vmem:[%s3 + $0xbc] sm:$0xf]
  %v1997 = vld [vmem:[%s1692] sm:$0xff]
  %v1998 = vld [vmem:[%s1692 + $0x8] sm:$0xf]
  %v1999 = vld [vmem:[%s1692 + $0xc] sm:$0xff]
  %v2000 = vld [vmem:[%s1692 + $0x14] sm:$0xf]
  %v2001 = vld [vmem:[%s1692 + $0x18] sm:$0xff]
  %v2002 = vld [vmem:[%s1692 + $0x20] sm:$0xf]
  %v2003 = vld [vmem:[%s1692 + $0x24] sm:$0xff]
  %v2004 = vld [vmem:[%s1692 + $0x2c] sm:$0xf]
  %v2005 = vld [vmem:[%s1692 + $0x30] sm:$0xff]
  %v2006 = vld [vmem:[%s1692 + $0x38] sm:$0xf]
  %v2007 = vld [vmem:[%s1692 + $0x3c] sm:$0xff]
  %v2008 = vld [vmem:[%s1692 + $0x44] sm:$0xf]
  %v2009 = vld [vmem:[%s1692 + $0x48] sm:$0xff]
  %v2010 = vld [vmem:[%s1692 + $0x50] sm:$0xf]
  %v2011 = vld [vmem:[%s1692 + $0x54] sm:$0xff]
  %v2012 = vld [vmem:[%s1692 + $0x5c] sm:$0xf]
  %v2013 = vld [vmem:[%s1692 + $0x60] sm:$0xff]
  %v2014 = vld [vmem:[%s1692 + $0x68] sm:$0xf]
  %v2015 = vld [vmem:[%s1692 + $0x6c] sm:$0xff]
  %v2016 = vld [vmem:[%s1692 + $0x74] sm:$0xf]
  %v2017 = vld [vmem:[%s1692 + $0x78] sm:$0xff]
  %v2018 = vld [vmem:[%s1692 + $0x80] sm:$0xf]
  %v2019 = vld [vmem:[%s1692 + $0x84] sm:$0xff]
  %v2020 = vld [vmem:[%s1692 + $0x8c] sm:$0xf]
  %v2021 = vld [vmem:[%s1692 + $0x90] sm:$0xff]
  %v2022 = vld [vmem:[%s1692 + $0x98] sm:$0xf]
  %v2023 = vld [vmem:[%s1692 + $0x9c] sm:$0xff]
  %v2024 = vld [vmem:[%s1692 + $0xa4] sm:$0xf]
  %v2025 = vld [vmem:[%s1692 + $0xa8] sm:$0xff]
  %v2026 = vld [vmem:[%s1692 + $0xb0] sm:$0xf]
  %v2027 = vld [vmem:[%s1692 + $0xb4] sm:$0xff]
  %v2028 = vld [vmem:[%s1692 + $0xbc] sm:$0xf]
  %v2029 = vld [vmem:[%s1692 + $0xc0] sm:$0xff]
  %v2030 = vld [vmem:[%s1692 + $0xc8] sm:$0xf]
  %v2031 = vld [vmem:[%s1692 + $0xcc] sm:$0xff]
  %v2032 = vld [vmem:[%s1692 + $0xd4] sm:$0xf]
  %v2033 = vld [vmem:[%s1692 + $0xd8] sm:$0xff]
  %v2034 = vld [vmem:[%s1692 + $0xe0] sm:$0xf]
  %v2035 = vld [vmem:[%s1692 + $0xe4] sm:$0xff]
  %v2036 = vld [vmem:[%s1692 + $0xec] sm:$0xf]
  %v2037 = vld [vmem:[%s1692 + $0xf0] sm:$0xff]
  %v2038 = vld [vmem:[%s1692 + $0xf8] sm:$0xf]
  %v2039 = vld [vmem:[%s1692 + $0xfc] sm:$0xff]
  %v2040 = vld [vmem:[%s1692 + $0x104] sm:$0xf]
  %v2041 = vld [vmem:[%s1692 + $0x108] sm:$0xff]
  %v2042 = vld [vmem:[%s1692 + $0x110] sm:$0xf]
  %v2043 = vld [vmem:[%s1692 + $0x114] sm:$0xff]
  %v2044 = vld [vmem:[%s1692 + $0x11c] sm:$0xf]
  %v2045 = vld [vmem:[%s1692 + $0x120] sm:$0xff]
  %v2046 = vld [vmem:[%s1692 + $0x128] sm:$0xf]
  %v2047 = vld [vmem:[%s1692 + $0x12c] sm:$0xff]
  %v2048 = vld [vmem:[%s1692 + $0x134] sm:$0xf]
  %v2049 = vld [vmem:[%s1692 + $0x138] sm:$0xff]
  %v2050 = vld [vmem:[%s1692 + $0x140] sm:$0xf]
  %v2051 = vld [vmem:[%s1692 + $0x144] sm:$0xff]
  %v2052 = vld [vmem:[%s1692 + $0x14c] sm:$0xf]
  %v2053 = vld [vmem:[%s1692 + $0x150] sm:$0xff]
  %v2054 = vld [vmem:[%s1692 + $0x158] sm:$0xf]
  %v2055 = vld [vmem:[%s1692 + $0x15c] sm:$0xff]
  %v2056 = vld [vmem:[%s1692 + $0x164] sm:$0xf]
  %v2057 = vld [vmem:[%s1692 + $0x168] sm:$0xff]
  %v2058 = vld [vmem:[%s1692 + $0x170] sm:$0xf]
  %v2059 = vld [vmem:[%s1692 + $0x174] sm:$0xff]
  %v2060 = vld [vmem:[%s1692 + $0x17c] sm:$0xf]
  %v2061 = vld [vmem:[%s1692 + $0x1b0] sm:$0xff]
  %v2062 = vld [vmem:[%s1692 + $0x1b8] sm:$0xf]
  %v2063 = vld [vmem:[%s1692 + $0x1bc] sm:$0xff]
  %v2064 = vld [vmem:[%s1692 + $0x1c4] sm:$0xf]
  %v2065 = vld [vmem:[%s1692 + $0x1c8] sm:$0xff]
  %v2066 = vld [vmem:[%s1692 + $0x1d0] sm:$0xf]
  %v2067 = vld [vmem:[%s1692 + $0x1d4] sm:$0xff]
  %v2068 = vld [vmem:[%s1692 + $0x1dc] sm:$0xf]
  %v2069 = vld [vmem:[%s1692 + $0x1e0] sm:$0xff]
  %v2070 = vld [vmem:[%s1692 + $0x1e8] sm:$0xf]
  %v2071 = vld [vmem:[%s1692 + $0x1ec] sm:$0xff]
  %v2072 = vld [vmem:[%s1692 + $0x1f4] sm:$0xf]
  %v2073 = vld [vmem:[%s1692 + $0x1f8] sm:$0xff]
  %v2074 = vld [vmem:[%s1692 + $0x200] sm:$0xf]
  %v2075 = vld [vmem:[%s1692 + $0x204] sm:$0xff]
  %v2076 = vld [vmem:[%s1692 + $0x20c] sm:$0xf]
  %v2077 = vld [vmem:[%s1692 + $0x210] sm:$0xff]
  %v2078 = vld [vmem:[%s1692 + $0x218] sm:$0xf]
  %v2079 = vld [vmem:[%s1692 + $0x21c] sm:$0xff]
  %v2080 = vld [vmem:[%s1692 + $0x224] sm:$0xf]
  %v2081 = vld [vmem:[%s1692 + $0x228] sm:$0xff]
  %v2082 = vld [vmem:[%s1692 + $0x230] sm:$0xf]
  %v2083 = vld [vmem:[%s1692 + $0x234] sm:$0xff]
  %v2084 = vld [vmem:[%s1692 + $0x23c] sm:$0xf]
  %v2085 = vld [vmem:[%s1692 + $0x240] sm:$0xff]
  %v2086 = vld [vmem:[%s1692 + $0x248] sm:$0xf]
  %v2087 = vld [vmem:[%s1692 + $0x24c] sm:$0xff]
  %v2088 = vld [vmem:[%s1692 + $0x254] sm:$0xf]
  %v2089 = vld [vmem:[%s1692 + $0x258] sm:$0xff]
  %v2090 = vld [vmem:[%s1692 + $0x260] sm:$0xf]
  %v2091 = vld [vmem:[%s1692 + $0x264] sm:$0xff]
  %v2092 = vld [vmem:[%s1692 + $0x26c] sm:$0xf]
  %v2093 = vld [vmem:[%s1692 + $0x270] sm:$0xff]
  %v2094 = vld [vmem:[%s1692 + $0x278] sm:$0xf]
  %v2095 = vld [vmem:[%s1692 + $0x27c] sm:$0xff]
  %v2096 = vld [vmem:[%s1692 + $0x284] sm:$0xf]
  %v2097 = vld [vmem:[%s1692 + $0x288] sm:$0xff]
  %v2098 = vld [vmem:[%s1692 + $0x290] sm:$0xf]
  %v2099 = vld [vmem:[%s1692 + $0x294] sm:$0xff]
  %v2100 = vld [vmem:[%s1692 + $0x29c] sm:$0xf]
  %v2101 = vld [vmem:[%s1692 + $0x2a0] sm:$0xff]
  %v2102 = vld [vmem:[%s1692 + $0x2a8] sm:$0xf]
  %v2103 = vld [vmem:[%s1692 + $0x2ac] sm:$0xff]
  %v2104 = vld [vmem:[%s1692 + $0x2b4] sm:$0xf]
  %v2105 = vld [vmem:[%s1692 + $0x2b8] sm:$0xff]
  %v2106 = vld [vmem:[%s1692 + $0x2c0] sm:$0xf]
  %v2107 = vld [vmem:[%s1692 + $0x2c4] sm:$0xff]
  %v2108 = vld [vmem:[%s1692 + $0x2cc] sm:$0xf]
  %v2109 = vld [vmem:[%s1692 + $0x2d0] sm:$0xff]
  %v2110 = vld [vmem:[%s1692 + $0x2d8] sm:$0xf]
  %v2111 = vld [vmem:[%s1692 + $0x2dc] sm:$0xff]
  %v2112 = vld [vmem:[%s1692 + $0x2e4] sm:$0xf]
  %v2113 = vld [vmem:[%s1692 + $0x2e8] sm:$0xff]
  %v2114 = vld [vmem:[%s1692 + $0x2f0] sm:$0xf]
  %v2115 = vld [vmem:[%s1692 + $0x2f4] sm:$0xff]
  %v2116 = vld [vmem:[%s1692 + $0x2fc] sm:$0xf]
  %v2117 = vld [vmem:[%s1692 + $0x300] sm:$0xff]
  %v2118 = vld [vmem:[%s1692 + $0x308] sm:$0xf]
  %v2119 = vld [vmem:[%s1692 + $0x30c] sm:$0xff]
  %v2120 = vld [vmem:[%s1692 + $0x314] sm:$0xf]
  %v2121 = vld [vmem:[%s1692 + $0x318] sm:$0xff]
  %v2122 = vld [vmem:[%s1692 + $0x320] sm:$0xf]
  %v2123 = vld [vmem:[%s1692 + $0x324] sm:$0xff]
  %v2124 = vld [vmem:[%s1692 + $0x32c] sm:$0xf]
  %s2125 = scalar_lea.vmem %s3, 192
  %v2126 = vld [vmem:[%s2125] sm:$0xf]
  %v2127 = vld [vmem:[%s2125 + $0x4] sm:$0xf]
  %v2128 = vld [vmem:[%s2125 + $0x8] sm:$0xf]
  %v2129 = vld [vmem:[%s2125 + $0xc] sm:$0xf]
  %v2130 = vld [vmem:[%s2125 + $0x10] sm:$0xf]
  %v2131 = vld [vmem:[%s2125 + $0x14] sm:$0xf]
  %v2132 = vld [vmem:[%s2125 + $0x18] sm:$0xf]
  %v2133 = vld [vmem:[%s2125 + $0x1c] sm:$0xf]
  %v2134 = vld [vmem:[%s2125 + $0x20] sm:$0xf]
  %v2135 = vld [vmem:[%s2125 + $0x24] sm:$0xf]
  %v2136 = vld [vmem:[%s2125 + $0x28] sm:$0xf]
  %v2137 = vld [vmem:[%s2125 + $0x2c] sm:$0xf]
  %v2138 = vld [vmem:[%s2125 + $0x30] sm:$0xf]
  %v2139 = vld [vmem:[%s2125 + $0x34] sm:$0xf]
  %v2140 = vld [vmem:[%s2125 + $0x38] sm:$0xf]
  %v2141 = vld [vmem:[%s2125 + $0x3c] sm:$0xf]
  %v2142 = vld [vmem:[%s2125 + $0x40] sm:$0xf]
  %v2143 = vld [vmem:[%s2125 + $0x44] sm:$0xf]
  %v2144 = vld [vmem:[%s2125 + $0x48] sm:$0xf]
  %v2145 = vld [vmem:[%s2125 + $0x4c] sm:$0xf]
  %v2146 = vld [vmem:[%s2125 + $0x50] sm:$0xf]
  %v2147 = vld [vmem:[%s2125 + $0x54] sm:$0xf]
  %v2148 = vld [vmem:[%s2125 + $0x58] sm:$0xf]
  %v2149 = vld [vmem:[%s2125 + $0x5c] sm:$0xf]
  %v2150 = vld [vmem:[%s2125 + $0x60] sm:$0xf]
  %v2151 = vld [vmem:[%s2125 + $0x64] sm:$0xf]
  %v2152 = vld [vmem:[%s2125 + $0x68] sm:$0xf]
  %v2153 = vld [vmem:[%s2125 + $0x6c] sm:$0xf]
  %v2154 = vld [vmem:[%s2125 + $0x70] sm:$0xf]
  %v2155 = vld [vmem:[%s2125 + $0x74] sm:$0xf]
  %v2156 = vld [vmem:[%s2125 + $0x78] sm:$0xf]
  %v2157 = vld [vmem:[%s2125 + $0x7c] sm:$0xf]
  %v2158 = vld [vmem:[%s2125 + $0x80] sm:$0xf]
  %v2159 = vld [vmem:[%s2125 + $0x84] sm:$0xf]
  %v2160 = vld [vmem:[%s2125 + $0x88] sm:$0xf]
  %v2161 = vld [vmem:[%s2125 + $0x8c] sm:$0xf]
  %v2162 = vld [vmem:[%s2125 + $0x90] sm:$0xf]
  %v2163 = vld [vmem:[%s2125 + $0x94] sm:$0xf]
  %v2164 = vld [vmem:[%s2125 + $0x98] sm:$0xf]
  %v2165 = vld [vmem:[%s2125 + $0x9c] sm:$0xf]
  %v2166 = vld [vmem:[%s2125 + $0xa0] sm:$0xf]
  %v2167 = vld [vmem:[%s2125 + $0xa4] sm:$0xf]
  %v2168 = vld [vmem:[%s2125 + $0xa8] sm:$0xf]
  %v2169 = vld [vmem:[%s2125 + $0xac] sm:$0xf]
  %v2170 = vld [vmem:[%s2125 + $0xb0] sm:$0xf]
  %v2171 = vld [vmem:[%s2125 + $0xb4] sm:$0xf]
  %v2172 = vld [vmem:[%s2125 + $0xb8] sm:$0xf]
  %v2173 = vld [vmem:[%s2125 + $0xbc] sm:$0xf]
  %v2302 = vunpack.c.l.b16 %v1997
  %v2303 = vunpack.c.h.b16 %v1997
  %v2304 = vunpack.c.l.b16 %v1998
  %v2305 = vunpack.c.l.b16 %v1999
  %v2306 = vunpack.c.h.b16 %v1999
  %v2307 = vunpack.c.l.b16 %v2000
  %v2308 = vunpack.c.l.b16 %v2001
  %v2309 = vunpack.c.h.b16 %v2001
  %v2310 = vunpack.c.l.b16 %v2002
  %v2311 = vunpack.c.l.b16 %v2003
  %v2312 = vunpack.c.h.b16 %v2003
  %v2313 = vunpack.c.l.b16 %v2004
  %v2314 = vunpack.c.l.b16 %v2005
  %v2315 = vunpack.c.h.b16 %v2005
  %v2316 = vunpack.c.l.b16 %v2006
  %v2317 = vunpack.c.l.b16 %v2007
  %v2318 = vunpack.c.h.b16 %v2007
  %v2319 = vunpack.c.l.b16 %v2008
  %v2320 = vunpack.c.l.b16 %v2009
  %v2321 = vunpack.c.h.b16 %v2009
  %v2322 = vunpack.c.l.b16 %v2010
  %v2323 = vunpack.c.l.b16 %v2011
  %v2324 = vunpack.c.h.b16 %v2011
  %v2325 = vunpack.c.l.b16 %v2012
  %v2326 = vunpack.c.l.b16 %v2013
  %v2327 = vunpack.c.h.b16 %v2013
  %v2328 = vunpack.c.l.b16 %v2014
  %v2329 = vunpack.c.l.b16 %v2015
  %v2330 = vunpack.c.h.b16 %v2015
  %v2331 = vunpack.c.l.b16 %v2016
  %v2332 = vunpack.c.l.b16 %v2017
  %v2333 = vunpack.c.h.b16 %v2017
  %v2334 = vunpack.c.l.b16 %v2018
  %v2335 = vunpack.c.l.b16 %v2019
  %v2336 = vunpack.c.h.b16 %v2019
  %v2337 = vunpack.c.l.b16 %v2020
  %v2338 = vunpack.c.l.b16 %v2021
  %v2339 = vunpack.c.h.b16 %v2021
  %v2340 = vunpack.c.l.b16 %v2022
  %v2341 = vunpack.c.l.b16 %v2023
  %v2342 = vunpack.c.h.b16 %v2023
  %v2343 = vunpack.c.l.b16 %v2024
  %v2344 = vunpack.c.l.b16 %v2025
  %v2345 = vunpack.c.h.b16 %v2025
  %v2346 = vunpack.c.l.b16 %v2026
  %v2347 = vunpack.c.l.b16 %v2027
  %v2348 = vunpack.c.h.b16 %v2027
  %v2349 = vunpack.c.l.b16 %v2028
  %v2350 = vunpack.c.l.b16 %v2029
  %v2351 = vunpack.c.h.b16 %v2029
  %v2352 = vunpack.c.l.b16 %v2030
  %v2353 = vunpack.c.l.b16 %v2031
  %v2354 = vunpack.c.h.b16 %v2031
  %v2355 = vunpack.c.l.b16 %v2032
  %v2356 = vunpack.c.l.b16 %v2033
  %v2357 = vunpack.c.h.b16 %v2033
  %v2358 = vunpack.c.l.b16 %v2034
  %v2359 = vunpack.c.l.b16 %v2035
  %v2360 = vunpack.c.h.b16 %v2035
  %v2361 = vunpack.c.l.b16 %v2036
  %v2362 = vunpack.c.l.b16 %v2037
  %v2363 = vunpack.c.h.b16 %v2037
  %v2364 = vunpack.c.l.b16 %v2038
  %v2365 = vunpack.c.l.b16 %v2039
  %v2366 = vunpack.c.h.b16 %v2039
  %v2367 = vunpack.c.l.b16 %v2040
  %v2368 = vunpack.c.l.b16 %v2041
  %v2369 = vunpack.c.h.b16 %v2041
  %v2370 = vunpack.c.l.b16 %v2042
  %v2371 = vunpack.c.l.b16 %v2043
  %v2372 = vunpack.c.h.b16 %v2043
  %v2373 = vunpack.c.l.b16 %v2044
  %v2374 = vunpack.c.l.b16 %v2045
  %v2375 = vunpack.c.h.b16 %v2045
  %v2376 = vunpack.c.l.b16 %v2046
  %v2377 = vunpack.c.l.b16 %v2047
  %v2378 = vunpack.c.h.b16 %v2047
  %v2379 = vunpack.c.l.b16 %v2048
  %v2380 = vunpack.c.l.b16 %v2049
  %v2381 = vunpack.c.h.b16 %v2049
  %v2382 = vunpack.c.l.b16 %v2050
  %v2383 = vunpack.c.l.b16 %v2051
  %v2384 = vunpack.c.h.b16 %v2051
  %v2385 = vunpack.c.l.b16 %v2052
  %v2386 = vunpack.c.l.b16 %v2053
  %v2387 = vunpack.c.h.b16 %v2053
  %v2388 = vunpack.c.l.b16 %v2054
  %v2389 = vunpack.c.l.b16 %v2055
  %v2390 = vunpack.c.h.b16 %v2055
  %v2391 = vunpack.c.l.b16 %v2056
  %v2392 = vunpack.c.l.b16 %v2057
  %v2393 = vunpack.c.h.b16 %v2057
  %v2394 = vunpack.c.l.b16 %v2058
  %v2395 = vunpack.c.l.b16 %v2059
  %v2396 = vunpack.c.h.b16 %v2059
  %v2397 = vunpack.c.l.b16 %v2060
  %v2398 = vunpack.c.l.b16 %v2061
  %v2399 = vunpack.c.h.b16 %v2061
  %v2400 = vunpack.c.l.b16 %v2062
  %v2401 = vunpack.c.l.b16 %v2063
  %v2402 = vunpack.c.h.b16 %v2063
  %v2403 = vunpack.c.l.b16 %v2064
  %v2404 = vunpack.c.l.b16 %v2065
  %v2405 = vunpack.c.h.b16 %v2065
  %v2406 = vunpack.c.l.b16 %v2066
  %v2407 = vunpack.c.l.b16 %v2067
  %v2408 = vunpack.c.h.b16 %v2067
  %v2409 = vunpack.c.l.b16 %v2068
  %v2410 = vunpack.c.l.b16 %v2069
  %v2411 = vunpack.c.h.b16 %v2069
  %v2412 = vunpack.c.l.b16 %v2070
  %v2413 = vunpack.c.l.b16 %v2071
  %v2414 = vunpack.c.h.b16 %v2071
  %v2415 = vunpack.c.l.b16 %v2072
  %v2416 = vunpack.c.l.b16 %v2073
  %v2417 = vunpack.c.h.b16 %v2073
  %v2418 = vunpack.c.l.b16 %v2074
  %v2419 = vunpack.c.l.b16 %v2075
  %v2420 = vunpack.c.h.b16 %v2075
  %v2421 = vunpack.c.l.b16 %v2076
  %v2422 = vunpack.c.l.b16 %v2077
  %v2423 = vunpack.c.h.b16 %v2077
  %v2424 = vunpack.c.l.b16 %v2078
  %v2425 = vunpack.c.l.b16 %v2079
  %v2426 = vunpack.c.h.b16 %v2079
  %v2427 = vunpack.c.l.b16 %v2080
  %v2428 = vunpack.c.l.b16 %v2081
  %v2429 = vunpack.c.h.b16 %v2081
  %v2430 = vunpack.c.l.b16 %v2082
  %v2431 = vunpack.c.l.b16 %v2083
  %v2432 = vunpack.c.h.b16 %v2083
  %v2433 = vunpack.c.l.b16 %v2084
  %v2434 = vunpack.c.l.b16 %v2085
  %v2435 = vunpack.c.h.b16 %v2085
  %v2436 = vunpack.c.l.b16 %v2086
  %v2437 = vunpack.c.l.b16 %v2087
  %v2438 = vunpack.c.h.b16 %v2087
  %v2439 = vunpack.c.l.b16 %v2088
  %v2440 = vunpack.c.l.b16 %v2089
  %v2441 = vunpack.c.h.b16 %v2089
  %v2442 = vunpack.c.l.b16 %v2090
  %v2443 = vunpack.c.l.b16 %v2091
  %v2444 = vunpack.c.h.b16 %v2091
  %v2445 = vunpack.c.l.b16 %v2092
  %v2446 = vunpack.c.l.b16 %v2093
  %v2447 = vunpack.c.h.b16 %v2093
  %v2448 = vunpack.c.l.b16 %v2094
  %v2449 = vunpack.c.l.b16 %v2095
  %v2450 = vunpack.c.h.b16 %v2095
  %v2451 = vunpack.c.l.b16 %v2096
  %v2452 = vunpack.c.l.b16 %v2097
  %v2453 = vunpack.c.h.b16 %v2097
  %v2454 = vunpack.c.l.b16 %v2098
  %v2455 = vunpack.c.l.b16 %v2099
  %v2456 = vunpack.c.h.b16 %v2099
  %v2457 = vunpack.c.l.b16 %v2100
  %v2458 = vunpack.c.l.b16 %v2101
  %v2459 = vunpack.c.h.b16 %v2101
  %v2460 = vunpack.c.l.b16 %v2102
  %v2461 = vunpack.c.l.b16 %v2103
  %v2462 = vunpack.c.h.b16 %v2103
  %v2463 = vunpack.c.l.b16 %v2104
  %v2464 = vunpack.c.l.b16 %v2105
  %v2465 = vunpack.c.h.b16 %v2105
  %v2466 = vunpack.c.l.b16 %v2106
  %v2467 = vunpack.c.l.b16 %v2107
  %v2468 = vunpack.c.h.b16 %v2107
  %v2469 = vunpack.c.l.b16 %v2108
  %v2470 = vunpack.c.l.b16 %v2109
  %v2471 = vunpack.c.h.b16 %v2109
  %v2472 = vunpack.c.l.b16 %v2110
  %v2473 = vunpack.c.l.b16 %v2111
  %v2474 = vunpack.c.h.b16 %v2111
  %v2475 = vunpack.c.l.b16 %v2112
  %v2476 = vunpack.c.l.b16 %v2113
  %v2477 = vunpack.c.h.b16 %v2113
  %v2478 = vunpack.c.l.b16 %v2114
  %v2479 = vunpack.c.l.b16 %v2115
  %v2480 = vunpack.c.h.b16 %v2115
  %v2481 = vunpack.c.l.b16 %v2116
  %v2482 = vunpack.c.l.b16 %v2117
  %v2483 = vunpack.c.h.b16 %v2117
  %v2484 = vunpack.c.l.b16 %v2118
  %v2485 = vunpack.c.l.b16 %v2119
  %v2486 = vunpack.c.h.b16 %v2119
  %v2487 = vunpack.c.l.b16 %v2120
  %v2488 = vunpack.c.l.b16 %v2121
  %v2489 = vunpack.c.h.b16 %v2121
  %v2490 = vunpack.c.l.b16 %v2122
  %v2491 = vunpack.c.l.b16 %v2123
  %v2492 = vunpack.c.h.b16 %v2123
  %v2493 = vunpack.c.l.b16 %v2124
  %v2494 = vpack.c.b16 %v2305, %v2302
  %v2495 = vpack.c.b16 %v2306, %v2303
  %v2496 = vpack.c.b16 %v2307, %v2304
  %v2497 = vpack.c.b16 %v2311, %v2308
  %v2498 = vpack.c.b16 %v2312, %v2309
  %v2499 = vpack.c.b16 %v2313, %v2310
  %v2500 = vpack.c.b16 %v2317, %v2314
  %v2501 = vpack.c.b16 %v2318, %v2315
  %v2502 = vpack.c.b16 %v2319, %v2316
  %v2503 = vpack.c.b16 %v2323, %v2320
  %v2504 = vpack.c.b16 %v2324, %v2321
  %v2505 = vpack.c.b16 %v2325, %v2322
  %v2506 = vpack.c.b16 %v2329, %v2326
  %v2507 = vpack.c.b16 %v2330, %v2327
  %v2508 = vpack.c.b16 %v2331, %v2328
  %v2509 = vpack.c.b16 %v2335, %v2332
  %v2510 = vpack.c.b16 %v2336, %v2333
  %v2511 = vpack.c.b16 %v2337, %v2334
  %v2512 = vpack.c.b16 %v2341, %v2338
  %v2513 = vpack.c.b16 %v2342, %v2339
  %v2514 = vpack.c.b16 %v2343, %v2340
  %v2515 = vpack.c.b16 %v2347, %v2344
  %v2516 = vpack.c.b16 %v2348, %v2345
  %v2517 = vpack.c.b16 %v2349, %v2346
  %v2518 = vpack.c.b16 %v2353, %v2350
  %v2519 = vpack.c.b16 %v2354, %v2351
  %v2520 = vpack.c.b16 %v2355, %v2352
  %v2521 = vpack.c.b16 %v2359, %v2356
  %v2522 = vpack.c.b16 %v2360, %v2357
  %v2523 = vpack.c.b16 %v2361, %v2358
  %v2524 = vpack.c.b16 %v2365, %v2362
  %v2525 = vpack.c.b16 %v2366, %v2363
  %v2526 = vpack.c.b16 %v2367, %v2364
  %v2527 = vpack.c.b16 %v2371, %v2368
  %v2528 = vpack.c.b16 %v2372, %v2369
  %v2529 = vpack.c.b16 %v2373, %v2370
  %v2530 = vpack.c.b16 %v2377, %v2374
  %v2531 = vpack.c.b16 %v2378, %v2375
  %v2532 = vpack.c.b16 %v2379, %v2376
  %v2533 = vpack.c.b16 %v2383, %v2380
  %v2534 = vpack.c.b16 %v2384, %v2381
  %v2535 = vpack.c.b16 %v2385, %v2382
  %v2536 = vpack.c.b16 %v2389, %v2386
  %v2537 = vpack.c.b16 %v2390, %v2387
  %v2538 = vpack.c.b16 %v2391, %v2388
  %v2539 = vpack.c.b16 %v2395, %v2392
  %v2540 = vpack.c.b16 %v2396, %v2393
  %v2541 = vpack.c.b16 %v2397, %v2394
  %v2542 = vpack.c.b16 %v2401, %v2398
  %v2543 = vpack.c.b16 %v2402, %v2399
  %v2544 = vpack.c.b16 %v2403, %v2400
  %v2545 = vpack.c.b16 %v2407, %v2404
  %v2546 = vpack.c.b16 %v2408, %v2405
  %v2547 = vpack.c.b16 %v2409, %v2406
  %v2548 = vpack.c.b16 %v2413, %v2410
  %v2549 = vpack.c.b16 %v2414, %v2411
  %v2550 = vpack.c.b16 %v2415, %v2412
  %v2551 = vpack.c.b16 %v2419, %v2416
  %v2552 = vpack.c.b16 %v2420, %v2417
  %v2553 = vpack.c.b16 %v2421, %v2418
  %v2554 = vpack.c.b16 %v2425, %v2422
  %v2555 = vpack.c.b16 %v2426, %v2423
  %v2556 = vpack.c.b16 %v2427, %v2424
  %v2557 = vpack.c.b16 %v2431, %v2428
  %v2558 = vpack.c.b16 %v2432, %v2429
  %v2559 = vpack.c.b16 %v2433, %v2430
  %v2560 = vpack.c.b16 %v2437, %v2434
  %v2561 = vpack.c.b16 %v2438, %v2435
  %v2562 = vpack.c.b16 %v2439, %v2436
  %v2563 = vpack.c.b16 %v2443, %v2440
  %v2564 = vpack.c.b16 %v2444, %v2441
  %v2565 = vpack.c.b16 %v2445, %v2442
  %v2566 = vpack.c.b16 %v2449, %v2446
  %v2567 = vpack.c.b16 %v2450, %v2447
  %v2568 = vpack.c.b16 %v2451, %v2448
  %v2569 = vpack.c.b16 %v2455, %v2452
  %v2570 = vpack.c.b16 %v2456, %v2453
  %v2571 = vpack.c.b16 %v2457, %v2454
  %v2572 = vpack.c.b16 %v2461, %v2458
  %v2573 = vpack.c.b16 %v2462, %v2459
  %v2574 = vpack.c.b16 %v2463, %v2460
  %v2575 = vpack.c.b16 %v2467, %v2464
  %v2576 = vpack.c.b16 %v2468, %v2465
  %v2577 = vpack.c.b16 %v2469, %v2466
  %v2578 = vpack.c.b16 %v2473, %v2470
  %v2579 = vpack.c.b16 %v2474, %v2471
  %v2580 = vpack.c.b16 %v2475, %v2472
  %v2581 = vpack.c.b16 %v2479, %v2476
  %v2582 = vpack.c.b16 %v2480, %v2477
  %v2583 = vpack.c.b16 %v2481, %v2478
  %v2584 = vpack.c.b16 %v2485, %v2482
  %v2585 = vpack.c.b16 %v2486, %v2483
  %v2586 = vpack.c.b16 %v2487, %v2484
  %v2587 = vpack.c.b16 %v2491, %v2488
  %v2588 = vpack.c.b16 %v2492, %v2489
  %v2589 = vpack.c.b16 %v2493, %v2490
  %v2734 = vunpack.c.l.b16 %v2126
  %v2735 = vunpack.c.l.b16 %v2127
  %v2736 = vunpack.c.l.b16 %v2128
  %v2737 = vunpack.c.l.b16 %v2129
  %v2738 = vunpack.c.l.b16 %v2130
  %v2739 = vunpack.c.l.b16 %v2131
  %v2740 = vunpack.c.l.b16 %v2132
  %v2741 = vunpack.c.l.b16 %v2133
  %v2742 = vunpack.c.l.b16 %v2134
  %v2743 = vunpack.c.l.b16 %v2135
  %v2744 = vunpack.c.l.b16 %v2136
  %v2745 = vunpack.c.l.b16 %v2137
  %v2746 = vunpack.c.l.b16 %v2138
  %v2747 = vunpack.c.l.b16 %v2139
  %v2748 = vunpack.c.l.b16 %v2140
  %v2749 = vunpack.c.l.b16 %v2141
  %v2750 = vunpack.c.l.b16 %v2142
  %v2751 = vunpack.c.l.b16 %v2143
  %v2752 = vunpack.c.l.b16 %v2144
  %v2753 = vunpack.c.l.b16 %v2145
  %v2754 = vunpack.c.l.b16 %v2146
  %v2755 = vunpack.c.l.b16 %v2147
  %v2756 = vunpack.c.l.b16 %v2148
  %v2757 = vunpack.c.l.b16 %v2149
  %v2758 = vunpack.c.l.b16 %v2150
  %v2759 = vunpack.c.l.b16 %v2151
  %v2760 = vunpack.c.l.b16 %v2152
  %v2761 = vunpack.c.l.b16 %v2153
  %v2762 = vunpack.c.l.b16 %v2154
  %v2763 = vunpack.c.l.b16 %v2155
  %v2764 = vunpack.c.l.b16 %v2156
  %v2765 = vunpack.c.l.b16 %v2157
  %v2766 = vunpack.c.l.b16 %v2158
  %v2767 = vunpack.c.l.b16 %v2159
  %v2768 = vunpack.c.l.b16 %v2160
  %v2769 = vunpack.c.l.b16 %v2161
  %v2770 = vunpack.c.l.b16 %v2162
  %v2771 = vunpack.c.l.b16 %v2163
  %v2772 = vunpack.c.l.b16 %v2164
  %v2773 = vunpack.c.l.b16 %v2165
  %v2774 = vunpack.c.l.b16 %v2166
  %v2775 = vunpack.c.l.b16 %v2167
  %v2776 = vunpack.c.l.b16 %v2168
  %v2777 = vunpack.c.l.b16 %v2169
  %v2778 = vunpack.c.l.b16 %v2170
  %v2779 = vunpack.c.l.b16 %v2171
  %v2780 = vunpack.c.l.b16 %v2172
  %v2781 = vunpack.c.l.b16 %v2173
  %v2782 = vpack.c.b16 %v2735, %v2734
  %v2783 = vpack.c.b16 %v2737, %v2736
  %v2784 = vpack.c.b16 %v2739, %v2738
  %v2785 = vpack.c.b16 %v2741, %v2740
  %v2786 = vpack.c.b16 %v2743, %v2742
  %v2787 = vpack.c.b16 %v2745, %v2744
  %v2788 = vpack.c.b16 %v2747, %v2746
  %v2789 = vpack.c.b16 %v2749, %v2748
  %v2790 = vpack.c.b16 %v2751, %v2750
  %v2791 = vpack.c.b16 %v2753, %v2752
  %v2792 = vpack.c.b16 %v2755, %v2754
  %v2793 = vpack.c.b16 %v2757, %v2756
  %v2794 = vpack.c.b16 %v2759, %v2758
  %v2795 = vpack.c.b16 %v2761, %v2760
  %v2796 = vpack.c.b16 %v2763, %v2762
  %v2797 = vpack.c.b16 %v2765, %v2764
  %v2798 = vpack.c.b16 %v2767, %v2766
  %v2799 = vpack.c.b16 %v2769, %v2768
  %v2800 = vpack.c.b16 %v2771, %v2770
  %v2801 = vpack.c.b16 %v2773, %v2772
  %v2802 = vpack.c.b16 %v2775, %v2774
  %v2803 = vpack.c.b16 %v2777, %v2776
  %v2804 = vpack.c.b16 %v2779, %v2778
  %v2805 = vpack.c.b16 %v2781, %v2780
  %2830 = vmatprep.subr.bf16.mxu0 0
  %2831 = vmatpush1.bf16.msra.mxu0 %v2789
  %2832 = vmatprep.subr.bf16.mxu0 0
  %2833 = vmatpush1.bf16.msra.mxu0 %v2788
  %2834 = vmatprep.subr.bf16.mxu0 0
  %2835 = vmatpush1.bf16.msra.mxu0 %v2787
  %2836 = vmatprep.subr.bf16.mxu0 0
  %2837 = vmatpush1.bf16.msra.mxu0 %v2786
  %2838 = vmatprep.subr.bf16.mxu0 0
  %2839 = vmatpush1.bf16.msra.mxu0 %v2785
  %2840 = vmatprep.subr.bf16.mxu0 0
  %2841 = vmatpush1.bf16.msra.mxu0 %v2784
  %2842 = vmatprep.subr.bf16.mxu0 0
  %2843 = vmatpush1.bf16.msra.mxu0 %v2783
  %2844 = vmatprep.subr.bf16.mxu0 0
  %2845 = vmatpush1.bf16.msra.mxu0 %v2782
  %2846 = vmatprep.subr.bf16.mxu0 0
  %2847 = vmatpush2.bf16.msra.mxu0 %v2797
  %2848 = vmatprep.subr.bf16.mxu0 0
  %2849 = vmatpush2.bf16.msra.mxu0 %v2796
  %2850 = vmatprep.subr.bf16.mxu0 0
  %2851 = vmatpush2.bf16.msra.mxu0 %v2795
  %2852 = vmatprep.subr.bf16.mxu0 0
  %2853 = vmatpush2.bf16.msra.mxu0 %v2794
  %2854 = vmatprep.subr.bf16.mxu0 0
  %2855 = vmatpush2.bf16.msra.mxu0 %v2793
  %2856 = vmatprep.subr.bf16.mxu0 0
  %2857 = vmatpush2.bf16.msra.mxu0 %v2792
  %2858 = vmatprep.subr.bf16.mxu0 0
  %2859 = vmatpush2.bf16.msra.mxu0 %v2791
  %2860 = vmatprep.subr.bf16.mxu0 0
  %2861 = vmatpush2.bf16.msra.mxu0 %v2790
  %2862 = vmatprep.mubr.bf16.mxu0 %v2495
  %2863 = vmatmul.mubr.bf16.gmra.mxu0 %v2494
  %v2864 = vpop.f32.mrf.mxu0
  %v2865 = vadd.f32 0.0, %v2864
  %v2866 = vpop.f32.mrf.mxu0
  %v2867 = vpop.f32.mrf.mxu0
  %v2868 = vadd.f32 0.0, %v2867
  %v2869 = vpop.f32.mrf.mxu0
  %2870 = vmatprep.mubr.bf16.mxu0 %v2498
  %2871 = vmatmul.mubr.bf16.gmra.mxu0 %v2497
  %v2872 = vpop.f32.mrf.mxu0
  %v2873 = vadd.f32 0.0, %v2872
  %v2874 = vpop.f32.mrf.mxu0
  %v2875 = vpop.f32.mrf.mxu0
  %v2876 = vadd.f32 0.0, %v2875
  %v2877 = vpop.f32.mrf.mxu0
  %2878 = vmatprep.mubr.bf16.mxu0 %v2501
  %2879 = vmatmul.mubr.bf16.gmra.mxu0 %v2500
  %v2880 = vpop.f32.mrf.mxu0
  %v2881 = vadd.f32 0.0, %v2880
  %v2882 = vpop.f32.mrf.mxu0
  %v2883 = vpop.f32.mrf.mxu0
  %v2884 = vadd.f32 0.0, %v2883
  %v2885 = vpop.f32.mrf.mxu0
  %2886 = vmatprep.mubr.bf16.mxu0 %v2504
  %2887 = vmatmul.mubr.bf16.gmra.mxu0 %v2503
  %v2888 = vpop.f32.mrf.mxu0
  %v2889 = vadd.f32 0.0, %v2888
  %v2890 = vpop.f32.mrf.mxu0
  %v2891 = vpop.f32.mrf.mxu0
  %v2892 = vadd.f32 0.0, %v2891
  %v2893 = vpop.f32.mrf.mxu0
  %2894 = vmatprep.mubr.bf16.mxu0 %v2507
  %2895 = vmatmul.mubr.bf16.gmra.mxu0 %v2506
  %v2896 = vpop.f32.mrf.mxu0
  %v2897 = vadd.f32 0.0, %v2896
  %v2898 = vpop.f32.mrf.mxu0
  %v2899 = vpop.f32.mrf.mxu0
  %v2900 = vadd.f32 0.0, %v2899
  %v2901 = vpop.f32.mrf.mxu0
  %2902 = vmatprep.mubr.bf16.mxu0 %v2510
  %2903 = vmatmul.mubr.bf16.gmra.mxu0 %v2509
  %v2904 = vpop.f32.mrf.mxu0
  %v2905 = vadd.f32 0.0, %v2904
  %v2906 = vpop.f32.mrf.mxu0
  %v2907 = vpop.f32.mrf.mxu0
  %v2908 = vadd.f32 0.0, %v2907
  %v2909 = vpop.f32.mrf.mxu0
  %2910 = vmatprep.mubr.bf16.mxu0 %v2513
  %2911 = vmatmul.mubr.bf16.gmra.mxu0 %v2512
  %v2912 = vpop.f32.mrf.mxu0
  %v2913 = vadd.f32 0.0, %v2912
  %v2914 = vpop.f32.mrf.mxu0
  %v2915 = vpop.f32.mrf.mxu0
  %v2916 = vadd.f32 0.0, %v2915
  %v2917 = vpop.f32.mrf.mxu0
  %2918 = vmatprep.mubr.bf16.mxu0 %v2516
  %2919 = vmatmul.mubr.bf16.gmra.mxu0 %v2515
  %v2920 = vpop.f32.mrf.mxu0
  %v2921 = vadd.f32 0.0, %v2920
  %v2922 = vpop.f32.mrf.mxu0
  %v2923 = vpop.f32.mrf.mxu0
  %v2924 = vadd.f32 0.0, %v2923
  %v2925 = vpop.f32.mrf.mxu0
  %2926 = vmatprep.mubr.bf16.mxu0 %v2519
  %2927 = vmatmul.mubr.bf16.gmra.mxu0 %v2518
  %v2928 = vpop.f32.mrf.mxu0
  %v2929 = vadd.f32 0.0, %v2928
  %v2930 = vpop.f32.mrf.mxu0
  %v2931 = vpop.f32.mrf.mxu0
  %v2932 = vadd.f32 0.0, %v2931
  %v2933 = vpop.f32.mrf.mxu0
  %2934 = vmatprep.mubr.bf16.mxu0 %v2522
  %2935 = vmatmul.mubr.bf16.gmra.mxu0 %v2521
  %v2936 = vpop.f32.mrf.mxu0
  %v2937 = vadd.f32 0.0, %v2936
  %v2938 = vpop.f32.mrf.mxu0
  %v2939 = vpop.f32.mrf.mxu0
  %v2940 = vadd.f32 0.0, %v2939
  %v2941 = vpop.f32.mrf.mxu0
  %2942 = vmatprep.mubr.bf16.mxu0 %v2525
  %2943 = vmatmul.mubr.bf16.gmra.mxu0 %v2524
  %v2944 = vpop.f32.mrf.mxu0
  %v2945 = vadd.f32 0.0, %v2944
  %v2946 = vpop.f32.mrf.mxu0
  %v2947 = vpop.f32.mrf.mxu0
  %v2948 = vadd.f32 0.0, %v2947
  %v2949 = vpop.f32.mrf.mxu0
  %2950 = vmatprep.mubr.bf16.mxu0 %v2528
  %2951 = vmatmul.mubr.bf16.gmra.mxu0 %v2527
  %v2952 = vpop.f32.mrf.mxu0
  %v2953 = vadd.f32 0.0, %v2952
  %v2954 = vpop.f32.mrf.mxu0
  %v2955 = vpop.f32.mrf.mxu0
  %v2956 = vadd.f32 0.0, %v2955
  %v2957 = vpop.f32.mrf.mxu0
  %2958 = vmatprep.mubr.bf16.mxu0 %v2531
  %2959 = vmatmul.mubr.bf16.gmra.mxu0 %v2530
  %v2960 = vpop.f32.mrf.mxu0
  %v2961 = vadd.f32 0.0, %v2960
  %v2962 = vpop.f32.mrf.mxu0
  %v2963 = vpop.f32.mrf.mxu0
  %v2964 = vadd.f32 0.0, %v2963
  %v2965 = vpop.f32.mrf.mxu0
  %2966 = vmatprep.mubr.bf16.mxu0 %v2534
  %2967 = vmatmul.mubr.bf16.gmra.mxu0 %v2533
  %v2968 = vpop.f32.mrf.mxu0
  %v2969 = vadd.f32 0.0, %v2968
  %v2970 = vpop.f32.mrf.mxu0
  %v2971 = vpop.f32.mrf.mxu0
  %v2972 = vadd.f32 0.0, %v2971
  %v2973 = vpop.f32.mrf.mxu0
  %2974 = vmatprep.mubr.bf16.mxu0 %v2537
  %2975 = vmatmul.mubr.bf16.gmra.mxu0 %v2536
  %v2976 = vpop.f32.mrf.mxu0
  %v2977 = vadd.f32 0.0, %v2976
  %v2978 = vpop.f32.mrf.mxu0
  %v2979 = vpop.f32.mrf.mxu0
  %v2980 = vadd.f32 0.0, %v2979
  %v2981 = vpop.f32.mrf.mxu0
  %2982 = vmatprep.mubr.bf16.mxu0 %v2540
  %2983 = vmatmul.mubr.bf16.gmra.mxu0 %v2539
  %v2984 = vpop.f32.mrf.mxu0
  %v2985 = vadd.f32 0.0, %v2984
  %v2986 = vpop.f32.mrf.mxu0
  %v2987 = vpop.f32.mrf.mxu0
  %v2988 = vadd.f32 0.0, %v2987
  %v2989 = vpop.f32.mrf.mxu0
  %2990 = vmatprep.mubr.bf16.mxu0 %v2543
  %2991 = vmatmul.mubr.bf16.gmra.mxu0 %v2542
  %v2992 = vpop.f32.mrf.mxu0
  %v2993 = vadd.f32 0.0, %v2992
  %v2994 = vpop.f32.mrf.mxu0
  %v2995 = vpop.f32.mrf.mxu0
  %v2996 = vadd.f32 0.0, %v2995
  %v2997 = vpop.f32.mrf.mxu0
  %2998 = vmatprep.mubr.bf16.mxu0 %v2546
  %2999 = vmatmul.mubr.bf16.gmra.mxu0 %v2545
  %v3000 = vpop.f32.mrf.mxu0
  %v3001 = vadd.f32 0.0, %v3000
  %v3002 = vpop.f32.mrf.mxu0
  %v3003 = vpop.f32.mrf.mxu0
  %v3004 = vadd.f32 0.0, %v3003
  %v3005 = vpop.f32.mrf.mxu0
  %3006 = vmatprep.mubr.bf16.mxu0 %v2549
  %3007 = vmatmul.mubr.bf16.gmra.mxu0 %v2548
  %v3008 = vpop.f32.mrf.mxu0
  %v3009 = vadd.f32 0.0, %v3008
  %v3010 = vpop.f32.mrf.mxu0
  %v3011 = vpop.f32.mrf.mxu0
  %v3012 = vadd.f32 0.0, %v3011
  %v3013 = vpop.f32.mrf.mxu0
  %3014 = vmatprep.mubr.bf16.mxu0 %v2552
  %3015 = vmatmul.mubr.bf16.gmra.mxu0 %v2551
  %v3016 = vpop.f32.mrf.mxu0
  %v3017 = vadd.f32 0.0, %v3016
  %v3018 = vpop.f32.mrf.mxu0
  %v3019 = vpop.f32.mrf.mxu0
  %v3020 = vadd.f32 0.0, %v3019
  %v3021 = vpop.f32.mrf.mxu0
  %3022 = vmatprep.mubr.bf16.mxu0 %v2555
  %3023 = vmatmul.mubr.bf16.gmra.mxu0 %v2554
  %v3024 = vpop.f32.mrf.mxu0
  %v3025 = vadd.f32 0.0, %v3024
  %v3026 = vpop.f32.mrf.mxu0
  %v3027 = vpop.f32.mrf.mxu0
  %v3028 = vadd.f32 0.0, %v3027
  %v3029 = vpop.f32.mrf.mxu0
  %3030 = vmatprep.mubr.bf16.mxu0 %v2558
  %3031 = vmatmul.mubr.bf16.gmra.mxu0 %v2557
  %v3032 = vpop.f32.mrf.mxu0
  %v3033 = vadd.f32 0.0, %v3032
  %v3034 = vpop.f32.mrf.mxu0
  %v3035 = vpop.f32.mrf.mxu0
  %v3036 = vadd.f32 0.0, %v3035
  %v3037 = vpop.f32.mrf.mxu0
  %3038 = vmatprep.mubr.bf16.mxu0 %v2561
  %3039 = vmatmul.mubr.bf16.gmra.mxu0 %v2560
  %v3040 = vpop.f32.mrf.mxu0
  %v3041 = vadd.f32 0.0, %v3040
  %v3042 = vpop.f32.mrf.mxu0
  %v3043 = vpop.f32.mrf.mxu0
  %v3044 = vadd.f32 0.0, %v3043
  %v3045 = vpop.f32.mrf.mxu0
  %3046 = vmatprep.mubr.bf16.mxu0 %v2564
  %3047 = vmatmul.mubr.bf16.gmra.mxu0 %v2563
  %v3048 = vpop.f32.mrf.mxu0
  %v3049 = vadd.f32 0.0, %v3048
  %v3050 = vpop.f32.mrf.mxu0
  %v3051 = vpop.f32.mrf.mxu0
  %v3052 = vadd.f32 0.0, %v3051
  %v3053 = vpop.f32.mrf.mxu0
  %3054 = vmatprep.mubr.bf16.mxu0 %v2567
  %3055 = vmatmul.mubr.bf16.gmra.mxu0 %v2566
  %v3056 = vpop.f32.mrf.mxu0
  %v3057 = vadd.f32 0.0, %v3056
  %v3058 = vpop.f32.mrf.mxu0
  %v3059 = vpop.f32.mrf.mxu0
  %v3060 = vadd.f32 0.0, %v3059
  %v3061 = vpop.f32.mrf.mxu0
  %3062 = vmatprep.mubr.bf16.mxu0 %v2570
  %3063 = vmatmul.mubr.bf16.gmra.mxu0 %v2569
  %v3064 = vpop.f32.mrf.mxu0
  %v3065 = vadd.f32 0.0, %v3064
  %v3066 = vpop.f32.mrf.mxu0
  %v3067 = vpop.f32.mrf.mxu0
  %v3068 = vadd.f32 0.0, %v3067
  %v3069 = vpop.f32.mrf.mxu0
  %3070 = vmatprep.mubr.bf16.mxu0 %v2573
  %3071 = vmatmul.mubr.bf16.gmra.mxu0 %v2572
  %v3072 = vpop.f32.mrf.mxu0
  %v3073 = vadd.f32 0.0, %v3072
  %v3074 = vpop.f32.mrf.mxu0
  %v3075 = vpop.f32.mrf.mxu0
  %v3076 = vadd.f32 0.0, %v3075
  %v3077 = vpop.f32.mrf.mxu0
  %3078 = vmatprep.mubr.bf16.mxu0 %v2576
  %3079 = vmatmul.mubr.bf16.gmra.mxu0 %v2575
  %v3080 = vpop.f32.mrf.mxu0
  %v3081 = vadd.f32 0.0, %v3080
  %v3082 = vpop.f32.mrf.mxu0
  %v3083 = vpop.f32.mrf.mxu0
  %v3084 = vadd.f32 0.0, %v3083
  %v3085 = vpop.f32.mrf.mxu0
  %3086 = vmatprep.mubr.bf16.mxu0 %v2579
  %3087 = vmatmul.mubr.bf16.gmra.mxu0 %v2578
  %v3088 = vpop.f32.mrf.mxu0
  %v3089 = vadd.f32 0.0, %v3088
  %v3090 = vpop.f32.mrf.mxu0
  %v3091 = vpop.f32.mrf.mxu0
  %v3092 = vadd.f32 0.0, %v3091
  %v3093 = vpop.f32.mrf.mxu0
  %3094 = vmatprep.mubr.bf16.mxu0 %v2582
  %3095 = vmatmul.mubr.bf16.gmra.mxu0 %v2581
  %v3096 = vpop.f32.mrf.mxu0
  %v3097 = vadd.f32 0.0, %v3096
  %v3098 = vpop.f32.mrf.mxu0
  %v3099 = vpop.f32.mrf.mxu0
  %v3100 = vadd.f32 0.0, %v3099
  %v3101 = vpop.f32.mrf.mxu0
  %3102 = vmatprep.mubr.bf16.mxu0 %v2585
  %3103 = vmatmul.mubr.bf16.gmra.mxu0 %v2584
  %v3104 = vpop.f32.mrf.mxu0
  %v3105 = vadd.f32 0.0, %v3104
  %v3106 = vpop.f32.mrf.mxu0
  %v3107 = vpop.f32.mrf.mxu0
  %v3108 = vadd.f32 0.0, %v3107
  %v3109 = vpop.f32.mrf.mxu0
  %3110 = vmatprep.mubr.bf16.mxu0 %v2588
  %3111 = vmatmul.mubr.bf16.gmra.mxu0 %v2587
  %v3112 = vpop.f32.mrf.mxu0
  %v3113 = vadd.f32 0.0, %v3112
  %v3114 = vpop.f32.mrf.mxu0
  %v3115 = vpop.f32.mrf.mxu0
  %v3116 = vadd.f32 0.0, %v3115
  %v3117 = vpop.f32.mrf.mxu0
  %3118 = vdwg.mxu0
  %3119 = vmatprep.subr.bf16.mxu0 0
  %3120 = vmatpush1.bf16.msra.mxu0 %v2805
  %3121 = vmatprep.subr.bf16.mxu0 0
  %3122 = vmatpush1.bf16.msra.mxu0 %v2804
  %3123 = vmatprep.subr.bf16.mxu0 0
  %3124 = vmatpush1.bf16.msra.mxu0 %v2803
  %3125 = vmatprep.subr.bf16.mxu0 0
  %3126 = vmatpush1.bf16.msra.mxu0 %v2802
  %3127 = vmatprep.subr.bf16.mxu0 0
  %3128 = vmatpush1.bf16.msra.mxu0 %v2801
  %3129 = vmatprep.subr.bf16.mxu0 0
  %3130 = vmatpush1.bf16.msra.mxu0 %v2800
  %3131 = vmatprep.subr.bf16.mxu0 0
  %3132 = vmatpush1.bf16.msra.mxu0 %v2799
  %3133 = vmatprep.subr.bf16.mxu0 0
  %3134 = vmatpush1.bf16.msra.mxu0 %v2798
  %3135 = vmatprep.subr.bf16.mxu0 0
  %3136 = vmatpush2.bf16.msra.mxu0 0
  %3137 = vmatprep.subr.bf16.mxu0 0
  %3138 = vmatpush2.bf16.msra.mxu0 0
  %3139 = vmatprep.subr.bf16.mxu0 0
  %3140 = vmatpush2.bf16.msra.mxu0 0
  %3141 = vmatprep.subr.bf16.mxu0 0
  %3142 = vmatpush2.bf16.msra.mxu0 0
  %3143 = vmatprep.subr.bf16.mxu0 0
  %3144 = vmatpush2.bf16.msra.mxu0 0
  %3145 = vmatprep.subr.bf16.mxu0 0
  %3146 = vmatpush2.bf16.msra.mxu0 0
  %3147 = vmatprep.subr.bf16.mxu0 0
  %3148 = vmatpush2.bf16.msra.mxu0 0
  %3149 = vmatprep.subr.bf16.mxu0 0
  %3150 = vmatpush2.bf16.msra.mxu0 0
  %3151 = vmatprep.mubr.bf16.mxu0 0
  %3152 = vmatmul.mubr.bf16.gmra.mxu0 %v2496
  %v3153 = vpop.f32.mrf.mxu0
  %v3154 = vadd.f32 %v2865, %v3153
  %v3155 = vpop.f32.mrf.mxu0
  %v3156 = vpop.f32.mrf.mxu0
  %v3157 = vadd.f32 %v2868, %v3156
  %v3158 = vpop.f32.mrf.mxu0
  %3159 = vmatprep.mubr.bf16.mxu0 0
  %3160 = vmatmul.mubr.bf16.gmra.mxu0 %v2499
  %v3161 = vpop.f32.mrf.mxu0
  %v3162 = vadd.f32 %v2873, %v3161
  %v3163 = vpop.f32.mrf.mxu0
  %v3164 = vpop.f32.mrf.mxu0
  %v3165 = vadd.f32 %v2876, %v3164
  %v3166 = vpop.f32.mrf.mxu0
  %3167 = vmatprep.mubr.bf16.mxu0 0
  %3168 = vmatmul.mubr.bf16.gmra.mxu0 %v2502
  %v3169 = vpop.f32.mrf.mxu0
  %v3170 = vadd.f32 %v2881, %v3169
  %v3171 = vpop.f32.mrf.mxu0
  %v3172 = vpop.f32.mrf.mxu0
  %v3173 = vadd.f32 %v2884, %v3172
  %v3174 = vpop.f32.mrf.mxu0
  %3175 = vmatprep.mubr.bf16.mxu0 0
  %3176 = vmatmul.mubr.bf16.gmra.mxu0 %v2505
  %v3177 = vpop.f32.mrf.mxu0
  %v3178 = vadd.f32 %v2889, %v3177
  %v3179 = vpop.f32.mrf.mxu0
  %v3180 = vpop.f32.mrf.mxu0
  %v3181 = vadd.f32 %v2892, %v3180
  %v3182 = vpop.f32.mrf.mxu0
  %3183 = vmatprep.mubr.bf16.mxu0 0
  %3184 = vmatmul.mubr.bf16.gmra.mxu0 %v2508
  %v3185 = vpop.f32.mrf.mxu0
  %v3186 = vadd.f32 %v2897, %v3185
  %v3187 = vpop.f32.mrf.mxu0
  %v3188 = vpop.f32.mrf.mxu0
  %v3189 = vadd.f32 %v2900, %v3188
  %v3190 = vpop.f32.mrf.mxu0
  %3191 = vmatprep.mubr.bf16.mxu0 0
  %3192 = vmatmul.mubr.bf16.gmra.mxu0 %v2511
  %v3193 = vpop.f32.mrf.mxu0
  %v3194 = vadd.f32 %v2905, %v3193
  %v3195 = vpop.f32.mrf.mxu0
  %v3196 = vpop.f32.mrf.mxu0
  %v3197 = vadd.f32 %v2908, %v3196
  %v3198 = vpop.f32.mrf.mxu0
  %3199 = vmatprep.mubr.bf16.mxu0 0
  %3200 = vmatmul.mubr.bf16.gmra.mxu0 %v2514
  %v3201 = vpop.f32.mrf.mxu0
  %v3202 = vadd.f32 %v2913, %v3201
  %v3203 = vpop.f32.mrf.mxu0
  %v3204 = vpop.f32.mrf.mxu0
  %v3205 = vadd.f32 %v2916, %v3204
  %v3206 = vpop.f32.mrf.mxu0
  %3207 = vmatprep.mubr.bf16.mxu0 0
  %3208 = vmatmul.mubr.bf16.gmra.mxu0 %v2517
  %v3209 = vpop.f32.mrf.mxu0
  %v3210 = vadd.f32 %v2921, %v3209
  %v3211 = vpop.f32.mrf.mxu0
  %v3212 = vpop.f32.mrf.mxu0
  %v3213 = vadd.f32 %v2924, %v3212
  %v3214 = vpop.f32.mrf.mxu0
  %3215 = vmatprep.mubr.bf16.mxu0 0
  %3216 = vmatmul.mubr.bf16.gmra.mxu0 %v2520
  %v3217 = vpop.f32.mrf.mxu0
  %v3218 = vadd.f32 %v2929, %v3217
  %v3219 = vpop.f32.mrf.mxu0
  %v3220 = vpop.f32.mrf.mxu0
  %v3221 = vadd.f32 %v2932, %v3220
  %v3222 = vpop.f32.mrf.mxu0
  %3223 = vmatprep.mubr.bf16.mxu0 0
  %3224 = vmatmul.mubr.bf16.gmra.mxu0 %v2523
  %v3225 = vpop.f32.mrf.mxu0
  %v3226 = vadd.f32 %v2937, %v3225
  %v3227 = vpop.f32.mrf.mxu0
  %v3228 = vpop.f32.mrf.mxu0
  %v3229 = vadd.f32 %v2940, %v3228
  %v3230 = vpop.f32.mrf.mxu0
  %3231 = vmatprep.mubr.bf16.mxu0 0
  %3232 = vmatmul.mubr.bf16.gmra.mxu0 %v2526
  %v3233 = vpop.f32.mrf.mxu0
  %v3234 = vadd.f32 %v2945, %v3233
  %v3235 = vpop.f32.mrf.mxu0
  %v3236 = vpop.f32.mrf.mxu0
  %v3237 = vadd.f32 %v2948, %v3236
  %v3238 = vpop.f32.mrf.mxu0
  %3239 = vmatprep.mubr.bf16.mxu0 0
  %3240 = vmatmul.mubr.bf16.gmra.mxu0 %v2529
  %v3241 = vpop.f32.mrf.mxu0
  %v3242 = vadd.f32 %v2953, %v3241
  %v3243 = vpop.f32.mrf.mxu0
  %v3244 = vpop.f32.mrf.mxu0
  %v3245 = vadd.f32 %v2956, %v3244
  %v3246 = vpop.f32.mrf.mxu0
  %3247 = vmatprep.mubr.bf16.mxu0 0
  %3248 = vmatmul.mubr.bf16.gmra.mxu0 %v2532
  %v3249 = vpop.f32.mrf.mxu0
  %v3250 = vadd.f32 %v2961, %v3249
  %v3251 = vpop.f32.mrf.mxu0
  %v3252 = vpop.f32.mrf.mxu0
  %v3253 = vadd.f32 %v2964, %v3252
  %v3254 = vpop.f32.mrf.mxu0
  %3255 = vmatprep.mubr.bf16.mxu0 0
  %3256 = vmatmul.mubr.bf16.gmra.mxu0 %v2535
  %v3257 = vpop.f32.mrf.mxu0
  %v3258 = vadd.f32 %v2969, %v3257
  %v3259 = vpop.f32.mrf.mxu0
  %v3260 = vpop.f32.mrf.mxu0
  %v3261 = vadd.f32 %v2972, %v3260
  %v3262 = vpop.f32.mrf.mxu0
  %3263 = vmatprep.mubr.bf16.mxu0 0
  %3264 = vmatmul.mubr.bf16.gmra.mxu0 %v2538
  %v3265 = vpop.f32.mrf.mxu0
  %v3266 = vadd.f32 %v2977, %v3265
  %v3267 = vpop.f32.mrf.mxu0
  %v3268 = vpop.f32.mrf.mxu0
  %v3269 = vadd.f32 %v2980, %v3268
  %v3270 = vpop.f32.mrf.mxu0
  %3271 = vmatprep.mubr.bf16.mxu0 0
  %3272 = vmatmul.mubr.bf16.gmra.mxu0 %v2541
  %v3273 = vpop.f32.mrf.mxu0
  %v3274 = vadd.f32 %v2985, %v3273
  %v3275 = vpop.f32.mrf.mxu0
  %v3276 = vpop.f32.mrf.mxu0
  %v3277 = vadd.f32 %v2988, %v3276
  %v3278 = vpop.f32.mrf.mxu0
  %3279 = vmatprep.mubr.bf16.mxu0 0
  %3280 = vmatmul.mubr.bf16.gmra.mxu0 %v2544
  %v3281 = vpop.f32.mrf.mxu0
  %v3282 = vadd.f32 %v2993, %v3281
  %v3283 = vpop.f32.mrf.mxu0
  %v3284 = vpop.f32.mrf.mxu0
  %v3285 = vadd.f32 %v2996, %v3284
  %v3286 = vpop.f32.mrf.mxu0
  %3287 = vmatprep.mubr.bf16.mxu0 0
  %3288 = vmatmul.mubr.bf16.gmra.mxu0 %v2547
  %v3289 = vpop.f32.mrf.mxu0
  %v3290 = vadd.f32 %v3001, %v3289
  %v3291 = vpop.f32.mrf.mxu0
  %v3292 = vpop.f32.mrf.mxu0
  %v3293 = vadd.f32 %v3004, %v3292
  %v3294 = vpop.f32.mrf.mxu0
  %3295 = vmatprep.mubr.bf16.mxu0 0
  %3296 = vmatmul.mubr.bf16.gmra.mxu0 %v2550
  %v3297 = vpop.f32.mrf.mxu0
  %v3298 = vadd.f32 %v3009, %v3297
  %v3299 = vpop.f32.mrf.mxu0
  %v3300 = vpop.f32.mrf.mxu0
  %v3301 = vadd.f32 %v3012, %v3300
  %v3302 = vpop.f32.mrf.mxu0
  %3303 = vmatprep.mubr.bf16.mxu0 0
  %3304 = vmatmul.mubr.bf16.gmra.mxu0 %v2553
  %v3305 = vpop.f32.mrf.mxu0
  %v3306 = vadd.f32 %v3017, %v3305
  %v3307 = vpop.f32.mrf.mxu0
  %v3308 = vpop.f32.mrf.mxu0
  %v3309 = vadd.f32 %v3020, %v3308
  %v3310 = vpop.f32.mrf.mxu0
  %3311 = vmatprep.mubr.bf16.mxu0 0
  %3312 = vmatmul.mubr.bf16.gmra.mxu0 %v2556
  %v3313 = vpop.f32.mrf.mxu0
  %v3314 = vadd.f32 %v3025, %v3313
  %v3315 = vpop.f32.mrf.mxu0
  %v3316 = vpop.f32.mrf.mxu0
  %v3317 = vadd.f32 %v3028, %v3316
  %v3318 = vpop.f32.mrf.mxu0
  %3319 = vmatprep.mubr.bf16.mxu0 0
  %3320 = vmatmul.mubr.bf16.gmra.mxu0 %v2559
  %v3321 = vpop.f32.mrf.mxu0
  %v3322 = vadd.f32 %v3033, %v3321
  %v3323 = vpop.f32.mrf.mxu0
  %v3324 = vpop.f32.mrf.mxu0
  %v3325 = vadd.f32 %v3036, %v3324
  %v3326 = vpop.f32.mrf.mxu0
  %3327 = vmatprep.mubr.bf16.mxu0 0
  %3328 = vmatmul.mubr.bf16.gmra.mxu0 %v2562
  %v3329 = vpop.f32.mrf.mxu0
  %v3330 = vadd.f32 %v3041, %v3329
  %v3331 = vpop.f32.mrf.mxu0
  %v3332 = vpop.f32.mrf.mxu0
  %v3333 = vadd.f32 %v3044, %v3332
  %v3334 = vpop.f32.mrf.mxu0
  %3335 = vmatprep.mubr.bf16.mxu0 0
  %3336 = vmatmul.mubr.bf16.gmra.mxu0 %v2565
  %v3337 = vpop.f32.mrf.mxu0
  %v3338 = vadd.f32 %v3049, %v3337
  %v3339 = vpop.f32.mrf.mxu0
  %v3340 = vpop.f32.mrf.mxu0
  %v3341 = vadd.f32 %v3052, %v3340
  %v3342 = vpop.f32.mrf.mxu0
  %3343 = vmatprep.mubr.bf16.mxu0 0
  %3344 = vmatmul.mubr.bf16.gmra.mxu0 %v2568
  %v3345 = vpop.f32.mrf.mxu0
  %v3346 = vadd.f32 %v3057, %v3345
  %v3347 = vpop.f32.mrf.mxu0
  %v3348 = vpop.f32.mrf.mxu0
  %v3349 = vadd.f32 %v3060, %v3348
  %v3350 = vpop.f32.mrf.mxu0
  %3351 = vmatprep.mubr.bf16.mxu0 0
  %3352 = vmatmul.mubr.bf16.gmra.mxu0 %v2571
  %v3353 = vpop.f32.mrf.mxu0
  %v3354 = vadd.f32 %v3065, %v3353
  %v3355 = vpop.f32.mrf.mxu0
  %v3356 = vpop.f32.mrf.mxu0
  %v3357 = vadd.f32 %v3068, %v3356
  %v3358 = vpop.f32.mrf.mxu0
  %3359 = vmatprep.mubr.bf16.mxu0 0
  %3360 = vmatmul.mubr.bf16.gmra.mxu0 %v2574
  %v3361 = vpop.f32.mrf.mxu0
  %v3362 = vadd.f32 %v3073, %v3361
  %v3363 = vpop.f32.mrf.mxu0
  %v3364 = vpop.f32.mrf.mxu0
  %v3365 = vadd.f32 %v3076, %v3364
  %v3366 = vpop.f32.mrf.mxu0
  %3367 = vmatprep.mubr.bf16.mxu0 0
  %3368 = vmatmul.mubr.bf16.gmra.mxu0 %v2577
  %v3369 = vpop.f32.mrf.mxu0
  %v3370 = vadd.f32 %v3081, %v3369
  %v3371 = vpop.f32.mrf.mxu0
  %v3372 = vpop.f32.mrf.mxu0
  %v3373 = vadd.f32 %v3084, %v3372
  %v3374 = vpop.f32.mrf.mxu0
  %3375 = vmatprep.mubr.bf16.mxu0 0
  %3376 = vmatmul.mubr.bf16.gmra.mxu0 %v2580
  %v3377 = vpop.f32.mrf.mxu0
  %v3378 = vadd.f32 %v3089, %v3377
  %v3379 = vpop.f32.mrf.mxu0
  %v3380 = vpop.f32.mrf.mxu0
  %v3381 = vadd.f32 %v3092, %v3380
  %v3382 = vpop.f32.mrf.mxu0
  %3383 = vmatprep.mubr.bf16.mxu0 0
  %3384 = vmatmul.mubr.bf16.gmra.mxu0 %v2583
  %v3385 = vpop.f32.mrf.mxu0
  %v3386 = vadd.f32 %v3097, %v3385
  %v3387 = vpop.f32.mrf.mxu0
  %v3388 = vpop.f32.mrf.mxu0
  %v3389 = vadd.f32 %v3100, %v3388
  %v3390 = vpop.f32.mrf.mxu0
  %3391 = vmatprep.mubr.bf16.mxu0 0
  %3392 = vmatmul.mubr.bf16.gmra.mxu0 %v2586
  %v3393 = vpop.f32.mrf.mxu0
  %v3394 = vadd.f32 %v3105, %v3393
  %v3395 = vpop.f32.mrf.mxu0
  %v3396 = vpop.f32.mrf.mxu0
  %v3397 = vadd.f32 %v3108, %v3396
  %v3398 = vpop.f32.mrf.mxu0
  %3399 = vmatprep.mubr.bf16.mxu0 0
  %3400 = vmatmul.mubr.bf16.gmra.mxu0 %v2589
  %v3401 = vpop.f32.mrf.mxu0
  %v3402 = vadd.f32 %v3113, %v3401
  %v3403 = vpop.f32.mrf.mxu0
  %v3404 = vpop.f32.mrf.mxu0
  %v3405 = vadd.f32 %v3116, %v3404
  %v3406 = vpop.f32.mrf.mxu0
  %3407 = vdwg.mxu0
  %v3536 = vunpack.c.l.b16 %v1821
  %v3537 = vunpack.c.h.b16 %v1821
  %v3538 = vunpack.c.l.b16 %v1822
  %v3539 = vunpack.c.l.b16 %v1823
  %v3540 = vunpack.c.h.b16 %v1823
  %v3541 = vunpack.c.l.b16 %v1824
  %v3542 = vunpack.c.l.b16 %v1825
  %v3543 = vunpack.c.h.b16 %v1825
  %v3544 = vunpack.c.l.b16 %v1826
  %v3545 = vunpack.c.l.b16 %v1827
  %v3546 = vunpack.c.h.b16 %v1827
  %v3547 = vunpack.c.l.b16 %v1828
  %v3548 = vunpack.c.l.b16 %v1829
  %v3549 = vunpack.c.h.b16 %v1829
  %v3550 = vunpack.c.l.b16 %v1830
  %v3551 = vunpack.c.l.b16 %v1831
  %v3552 = vunpack.c.h.b16 %v1831
  %v3553 = vunpack.c.l.b16 %v1832
  %v3554 = vunpack.c.l.b16 %v1833
  %v3555 = vunpack.c.h.b16 %v1833
  %v3556 = vunpack.c.l.b16 %v1834
  %v3557 = vunpack.c.l.b16 %v1835
  %v3558 = vunpack.c.h.b16 %v1835
  %v3559 = vunpack.c.l.b16 %v1836
  %v3560 = vunpack.c.l.b16 %v1837
  %v3561 = vunpack.c.h.b16 %v1837
  %v3562 = vunpack.c.l.b16 %v1838
  %v3563 = vunpack.c.l.b16 %v1839
  %v3564 = vunpack.c.h.b16 %v1839
  %v3565 = vunpack.c.l.b16 %v1840
  %v3566 = vunpack.c.l.b16 %v1841
  %v3567 = vunpack.c.h.b16 %v1841
  %v3568 = vunpack.c.l.b16 %v1842
  %v3569 = vunpack.c.l.b16 %v1843
  %v3570 = vunpack.c.h.b16 %v1843
  %v3571 = vunpack.c.l.b16 %v1844
  %v3572 = vunpack.c.l.b16 %v1845
  %v3573 = vunpack.c.h.b16 %v1845
  %v3574 = vunpack.c.l.b16 %v1846
  %v3575 = vunpack.c.l.b16 %v1847
  %v3576 = vunpack.c.h.b16 %v1847
  %v3577 = vunpack.c.l.b16 %v1848
  %v3578 = vunpack.c.l.b16 %v1849
  %v3579 = vunpack.c.h.b16 %v1849
  %v3580 = vunpack.c.l.b16 %v1850
  %v3581 = vunpack.c.l.b16 %v1851
  %v3582 = vunpack.c.h.b16 %v1851
  %v3583 = vunpack.c.l.b16 %v1852
  %v3584 = vunpack.c.l.b16 %v1853
  %v3585 = vunpack.c.h.b16 %v1853
  %v3586 = vunpack.c.l.b16 %v1854
  %v3587 = vunpack.c.l.b16 %v1855
  %v3588 = vunpack.c.h.b16 %v1855
  %v3589 = vunpack.c.l.b16 %v1856
  %v3590 = vunpack.c.l.b16 %v1857
  %v3591 = vunpack.c.h.b16 %v1857
  %v3592 = vunpack.c.l.b16 %v1858
  %v3593 = vunpack.c.l.b16 %v1859
  %v3594 = vunpack.c.h.b16 %v1859
  %v3595 = vunpack.c.l.b16 %v1860
  %v3596 = vunpack.c.l.b16 %v1861
  %v3597 = vunpack.c.h.b16 %v1861
  %v3598 = vunpack.c.l.b16 %v1862
  %v3599 = vunpack.c.l.b16 %v1863
  %v3600 = vunpack.c.h.b16 %v1863
  %v3601 = vunpack.c.l.b16 %v1864
  %v3602 = vunpack.c.l.b16 %v1865
  %v3603 = vunpack.c.h.b16 %v1865
  %v3604 = vunpack.c.l.b16 %v1866
  %v3605 = vunpack.c.l.b16 %v1867
  %v3606 = vunpack.c.h.b16 %v1867
  %v3607 = vunpack.c.l.b16 %v1868
  %v3608 = vunpack.c.l.b16 %v1869
  %v3609 = vunpack.c.h.b16 %v1869
  %v3610 = vunpack.c.l.b16 %v1870
  %v3611 = vunpack.c.l.b16 %v1871
  %v3612 = vunpack.c.h.b16 %v1871
  %v3613 = vunpack.c.l.b16 %v1872
  %v3614 = vunpack.c.l.b16 %v1873
  %v3615 = vunpack.c.h.b16 %v1873
  %v3616 = vunpack.c.l.b16 %v1874
  %v3617 = vunpack.c.l.b16 %v1875
  %v3618 = vunpack.c.h.b16 %v1875
  %v3619 = vunpack.c.l.b16 %v1876
  %v3620 = vunpack.c.l.b16 %v1877
  %v3621 = vunpack.c.h.b16 %v1877
  %v3622 = vunpack.c.l.b16 %v1878
  %v3623 = vunpack.c.l.b16 %v1879
  %v3624 = vunpack.c.h.b16 %v1879
  %v3625 = vunpack.c.l.b16 %v1880
  %v3626 = vunpack.c.l.b16 %v1881
  %v3627 = vunpack.c.h.b16 %v1881
  %v3628 = vunpack.c.l.b16 %v1882
  %v3629 = vunpack.c.l.b16 %v1883
  %v3630 = vunpack.c.h.b16 %v1883
  %v3631 = vunpack.c.l.b16 %v1884
  %v3632 = vunpack.c.l.b16 %v1885
  %v3633 = vunpack.c.h.b16 %v1885
  %v3634 = vunpack.c.l.b16 %v1886
  %v3635 = vunpack.c.l.b16 %v1887
  %v3636 = vunpack.c.h.b16 %v1887
  %v3637 = vunpack.c.l.b16 %v1888
  %v3638 = vunpack.c.l.b16 %v1889
  %v3639 = vunpack.c.h.b16 %v1889
  %v3640 = vunpack.c.l.b16 %v1890
  %v3641 = vunpack.c.l.b16 %v1891
  %v3642 = vunpack.c.h.b16 %v1891
  %v3643 = vunpack.c.l.b16 %v1892
  %v3644 = vunpack.c.l.b16 %v1893
  %v3645 = vunpack.c.h.b16 %v1893
  %v3646 = vunpack.c.l.b16 %v1894
  %v3647 = vunpack.c.l.b16 %v1895
  %v3648 = vunpack.c.h.b16 %v1895
  %v3649 = vunpack.c.l.b16 %v1896
  %v3650 = vunpack.c.l.b16 %v1897
  %v3651 = vunpack.c.h.b16 %v1897
  %v3652 = vunpack.c.l.b16 %v1898
  %v3653 = vunpack.c.l.b16 %v1899
  %v3654 = vunpack.c.h.b16 %v1899
  %v3655 = vunpack.c.l.b16 %v1900
  %v3656 = vunpack.c.l.b16 %v1901
  %v3657 = vunpack.c.h.b16 %v1901
  %v3658 = vunpack.c.l.b16 %v1902
  %v3659 = vunpack.c.l.b16 %v1903
  %v3660 = vunpack.c.h.b16 %v1903
  %v3661 = vunpack.c.l.b16 %v1904
  %v3662 = vunpack.c.l.b16 %v1905
  %v3663 = vunpack.c.h.b16 %v1905
  %v3664 = vunpack.c.l.b16 %v1906
  %v3665 = vunpack.c.l.b16 %v1907
  %v3666 = vunpack.c.h.b16 %v1907
  %v3667 = vunpack.c.l.b16 %v1908
  %v3668 = vunpack.c.l.b16 %v1909
  %v3669 = vunpack.c.h.b16 %v1909
  %v3670 = vunpack.c.l.b16 %v1910
  %v3671 = vunpack.c.l.b16 %v1911
  %v3672 = vunpack.c.h.b16 %v1911
  %v3673 = vunpack.c.l.b16 %v1912
  %v3674 = vunpack.c.l.b16 %v1913
  %v3675 = vunpack.c.h.b16 %v1913
  %v3676 = vunpack.c.l.b16 %v1914
  %v3677 = vunpack.c.l.b16 %v1915
  %v3678 = vunpack.c.h.b16 %v1915
  %v3679 = vunpack.c.l.b16 %v1916
  %v3680 = vunpack.c.l.b16 %v1917
  %v3681 = vunpack.c.h.b16 %v1917
  %v3682 = vunpack.c.l.b16 %v1918
  %v3683 = vunpack.c.l.b16 %v1919
  %v3684 = vunpack.c.h.b16 %v1919
  %v3685 = vunpack.c.l.b16 %v1920
  %v3686 = vunpack.c.l.b16 %v1921
  %v3687 = vunpack.c.h.b16 %v1921
  %v3688 = vunpack.c.l.b16 %v1922
  %v3689 = vunpack.c.l.b16 %v1923
  %v3690 = vunpack.c.h.b16 %v1923
  %v3691 = vunpack.c.l.b16 %v1924
  %v3692 = vunpack.c.l.b16 %v1925
  %v3693 = vunpack.c.h.b16 %v1925
  %v3694 = vunpack.c.l.b16 %v1926
  %v3695 = vunpack.c.l.b16 %v1927
  %v3696 = vunpack.c.h.b16 %v1927
  %v3697 = vunpack.c.l.b16 %v1928
  %v3698 = vunpack.c.l.b16 %v1929
  %v3699 = vunpack.c.h.b16 %v1929
  %v3700 = vunpack.c.l.b16 %v1930
  %v3701 = vunpack.c.l.b16 %v1931
  %v3702 = vunpack.c.h.b16 %v1931
  %v3703 = vunpack.c.l.b16 %v1932
  %v3704 = vunpack.c.l.b16 %v1933
  %v3705 = vunpack.c.h.b16 %v1933
  %v3706 = vunpack.c.l.b16 %v1934
  %v3707 = vunpack.c.l.b16 %v1935
  %v3708 = vunpack.c.h.b16 %v1935
  %v3709 = vunpack.c.l.b16 %v1936
  %v3710 = vunpack.c.l.b16 %v1937
  %v3711 = vunpack.c.h.b16 %v1937
  %v3712 = vunpack.c.l.b16 %v1938
  %v3713 = vunpack.c.l.b16 %v1939
  %v3714 = vunpack.c.h.b16 %v1939
  %v3715 = vunpack.c.l.b16 %v1940
  %v3716 = vunpack.c.l.b16 %v1941
  %v3717 = vunpack.c.h.b16 %v1941
  %v3718 = vunpack.c.l.b16 %v1942
  %v3719 = vunpack.c.l.b16 %v1943
  %v3720 = vunpack.c.h.b16 %v1943
  %v3721 = vunpack.c.l.b16 %v1944
  %v3722 = vunpack.c.l.b16 %v1945
  %v3723 = vunpack.c.h.b16 %v1945
  %v3724 = vunpack.c.l.b16 %v1946
  %v3725 = vunpack.c.l.b16 %v1947
  %v3726 = vunpack.c.h.b16 %v1947
  %v3727 = vunpack.c.l.b16 %v1948
  %v3728 = vpack.c.b16 %v3539, %v3536
  %v3729 = vpack.c.b16 %v3540, %v3537
  %v3730 = vpack.c.b16 %v3541, %v3538
  %v3731 = vpack.c.b16 %v3545, %v3542
  %v3732 = vpack.c.b16 %v3546, %v3543
  %v3733 = vpack.c.b16 %v3547, %v3544
  %v3734 = vpack.c.b16 %v3551, %v3548
  %v3735 = vpack.c.b16 %v3552, %v3549
  %v3736 = vpack.c.b16 %v3553, %v3550
  %v3737 = vpack.c.b16 %v3557, %v3554
  %v3738 = vpack.c.b16 %v3558, %v3555
  %v3739 = vpack.c.b16 %v3559, %v3556
  %v3740 = vpack.c.b16 %v3563, %v3560
  %v3741 = vpack.c.b16 %v3564, %v3561
  %v3742 = vpack.c.b16 %v3565, %v3562
  %v3743 = vpack.c.b16 %v3569, %v3566
  %v3744 = vpack.c.b16 %v3570, %v3567
  %v3745 = vpack.c.b16 %v3571, %v3568
  %v3746 = vpack.c.b16 %v3575, %v3572
  %v3747 = vpack.c.b16 %v3576, %v3573
  %v3748 = vpack.c.b16 %v3577, %v3574
  %v3749 = vpack.c.b16 %v3581, %v3578
  %v3750 = vpack.c.b16 %v3582, %v3579
  %v3751 = vpack.c.b16 %v3583, %v3580
  %v3752 = vpack.c.b16 %v3587, %v3584
  %v3753 = vpack.c.b16 %v3588, %v3585
  %v3754 = vpack.c.b16 %v3589, %v3586
  %v3755 = vpack.c.b16 %v3593, %v3590
  %v3756 = vpack.c.b16 %v3594, %v3591
  %v3757 = vpack.c.b16 %v3595, %v3592
  %v3758 = vpack.c.b16 %v3599, %v3596
  %v3759 = vpack.c.b16 %v3600, %v3597
  %v3760 = vpack.c.b16 %v3601, %v3598
  %v3761 = vpack.c.b16 %v3605, %v3602
  %v3762 = vpack.c.b16 %v3606, %v3603
  %v3763 = vpack.c.b16 %v3607, %v3604
  %v3764 = vpack.c.b16 %v3611, %v3608
  %v3765 = vpack.c.b16 %v3612, %v3609
  %v3766 = vpack.c.b16 %v3613, %v3610
  %v3767 = vpack.c.b16 %v3617, %v3614
  %v3768 = vpack.c.b16 %v3618, %v3615
  %v3769 = vpack.c.b16 %v3619, %v3616
  %v3770 = vpack.c.b16 %v3623, %v3620
  %v3771 = vpack.c.b16 %v3624, %v3621
  %v3772 = vpack.c.b16 %v3625, %v3622
  %v3773 = vpack.c.b16 %v3629, %v3626
  %v3774 = vpack.c.b16 %v3630, %v3627
  %v3775 = vpack.c.b16 %v3631, %v3628
  %v3776 = vpack.c.b16 %v3635, %v3632
  %v3777 = vpack.c.b16 %v3636, %v3633
  %v3778 = vpack.c.b16 %v3637, %v3634
  %v3779 = vpack.c.b16 %v3641, %v3638
  %v3780 = vpack.c.b16 %v3642, %v3639
  %v3781 = vpack.c.b16 %v3643, %v3640
  %v3782 = vpack.c.b16 %v3647, %v3644
  %v3783 = vpack.c.b16 %v3648, %v3645
  %v3784 = vpack.c.b16 %v3649, %v3646
  %v3785 = vpack.c.b16 %v3653, %v3650
  %v3786 = vpack.c.b16 %v3654, %v3651
  %v3787 = vpack.c.b16 %v3655, %v3652
  %v3788 = vpack.c.b16 %v3659, %v3656
  %v3789 = vpack.c.b16 %v3660, %v3657
  %v3790 = vpack.c.b16 %v3661, %v3658
  %v3791 = vpack.c.b16 %v3665, %v3662
  %v3792 = vpack.c.b16 %v3666, %v3663
  %v3793 = vpack.c.b16 %v3667, %v3664
  %v3794 = vpack.c.b16 %v3671, %v3668
  %v3795 = vpack.c.b16 %v3672, %v3669
  %v3796 = vpack.c.b16 %v3673, %v3670
  %v3797 = vpack.c.b16 %v3677, %v3674
  %v3798 = vpack.c.b16 %v3678, %v3675
  %v3799 = vpack.c.b16 %v3679, %v3676
  %v3800 = vpack.c.b16 %v3683, %v3680
  %v3801 = vpack.c.b16 %v3684, %v3681
  %v3802 = vpack.c.b16 %v3685, %v3682
  %v3803 = vpack.c.b16 %v3689, %v3686
  %v3804 = vpack.c.b16 %v3690, %v3687
  %v3805 = vpack.c.b16 %v3691, %v3688
  %v3806 = vpack.c.b16 %v3695, %v3692
  %v3807 = vpack.c.b16 %v3696, %v3693
  %v3808 = vpack.c.b16 %v3697, %v3694
  %v3809 = vpack.c.b16 %v3701, %v3698
  %v3810 = vpack.c.b16 %v3702, %v3699
  %v3811 = vpack.c.b16 %v3703, %v3700
  %v3812 = vpack.c.b16 %v3707, %v3704
  %v3813 = vpack.c.b16 %v3708, %v3705
  %v3814 = vpack.c.b16 %v3709, %v3706
  %v3815 = vpack.c.b16 %v3713, %v3710
  %v3816 = vpack.c.b16 %v3714, %v3711
  %v3817 = vpack.c.b16 %v3715, %v3712
  %v3818 = vpack.c.b16 %v3719, %v3716
  %v3819 = vpack.c.b16 %v3720, %v3717
  %v3820 = vpack.c.b16 %v3721, %v3718
  %v3821 = vpack.c.b16 %v3725, %v3722
  %v3822 = vpack.c.b16 %v3726, %v3723
  %v3823 = vpack.c.b16 %v3727, %v3724
  %v3968 = vunpack.c.l.b16 %v1949
  %v3969 = vunpack.c.l.b16 %v1950
  %v3970 = vunpack.c.l.b16 %v1951
  %v3971 = vunpack.c.l.b16 %v1952
  %v3972 = vunpack.c.l.b16 %v1953
  %v3973 = vunpack.c.l.b16 %v1954
  %v3974 = vunpack.c.l.b16 %v1955
  %v3975 = vunpack.c.l.b16 %v1956
  %v3976 = vunpack.c.l.b16 %v1957
  %v3977 = vunpack.c.l.b16 %v1958
  %v3978 = vunpack.c.l.b16 %v1959
  %v3979 = vunpack.c.l.b16 %v1960
  %v3980 = vunpack.c.l.b16 %v1961
  %v3981 = vunpack.c.l.b16 %v1962
  %v3982 = vunpack.c.l.b16 %v1963
  %v3983 = vunpack.c.l.b16 %v1964
  %v3984 = vunpack.c.l.b16 %v1965
  %v3985 = vunpack.c.l.b16 %v1966
  %v3986 = vunpack.c.l.b16 %v1967
  %v3987 = vunpack.c.l.b16 %v1968
  %v3988 = vunpack.c.l.b16 %v1969
  %v3989 = vunpack.c.l.b16 %v1970
  %v3990 = vunpack.c.l.b16 %v1971
  %v3991 = vunpack.c.l.b16 %v1972
  %v3992 = vunpack.c.l.b16 %v1973
  %v3993 = vunpack.c.l.b16 %v1974
  %v3994 = vunpack.c.l.b16 %v1975
  %v3995 = vunpack.c.l.b16 %v1976
  %v3996 = vunpack.c.l.b16 %v1977
  %v3997 = vunpack.c.l.b16 %v1978
  %v3998 = vunpack.c.l.b16 %v1979
  %v3999 = vunpack.c.l.b16 %v1980
  %v4000 = vunpack.c.l.b16 %v1981
  %v4001 = vunpack.c.l.b16 %v1982
  %v4002 = vunpack.c.l.b16 %v1983
  %v4003 = vunpack.c.l.b16 %v1984
  %v4004 = vunpack.c.l.b16 %v1985
  %v4005 = vunpack.c.l.b16 %v1986
  %v4006 = vunpack.c.l.b16 %v1987
  %v4007 = vunpack.c.l.b16 %v1988
  %v4008 = vunpack.c.l.b16 %v1989
  %v4009 = vunpack.c.l.b16 %v1990
  %v4010 = vunpack.c.l.b16 %v1991
  %v4011 = vunpack.c.l.b16 %v1992
  %v4012 = vunpack.c.l.b16 %v1993
  %v4013 = vunpack.c.l.b16 %v1994
  %v4014 = vunpack.c.l.b16 %v1995
  %v4015 = vunpack.c.l.b16 %v1996
  %v4016 = vpack.c.b16 %v3969, %v3968
  %v4017 = vpack.c.b16 %v3971, %v3970
  %v4018 = vpack.c.b16 %v3973, %v3972
  %v4019 = vpack.c.b16 %v3975, %v3974
  %v4020 = vpack.c.b16 %v3977, %v3976
  %v4021 = vpack.c.b16 %v3979, %v3978
  %v4022 = vpack.c.b16 %v3981, %v3980
  %v4023 = vpack.c.b16 %v3983, %v3982
  %v4024 = vpack.c.b16 %v3985, %v3984
  %v4025 = vpack.c.b16 %v3987, %v3986
  %v4026 = vpack.c.b16 %v3989, %v3988
  %v4027 = vpack.c.b16 %v3991, %v3990
  %v4028 = vpack.c.b16 %v3993, %v3992
  %v4029 = vpack.c.b16 %v3995, %v3994
  %v4030 = vpack.c.b16 %v3997, %v3996
  %v4031 = vpack.c.b16 %v3999, %v3998
  %v4032 = vpack.c.b16 %v4001, %v4000
  %v4033 = vpack.c.b16 %v4003, %v4002
  %v4034 = vpack.c.b16 %v4005, %v4004
  %v4035 = vpack.c.b16 %v4007, %v4006
  %v4036 = vpack.c.b16 %v4009, %v4008
  %v4037 = vpack.c.b16 %v4011, %v4010
  %v4038 = vpack.c.b16 %v4013, %v4012
  %v4039 = vpack.c.b16 %v4015, %v4014
  %4064 = vmatprep.subr.bf16.mxu0 0
  %4065 = vmatpush1.bf16.msra.mxu0 %v4023
  %4066 = vmatprep.subr.bf16.mxu0 0
  %4067 = vmatpush1.bf16.msra.mxu0 %v4022
  %4068 = vmatprep.subr.bf16.mxu0 0
  %4069 = vmatpush1.bf16.msra.mxu0 %v4021
  %4070 = vmatprep.subr.bf16.mxu0 0
  %4071 = vmatpush1.bf16.msra.mxu0 %v4020
  %4072 = vmatprep.subr.bf16.mxu0 0
  %4073 = vmatpush1.bf16.msra.mxu0 %v4019
  %4074 = vmatprep.subr.bf16.mxu0 0
  %4075 = vmatpush1.bf16.msra.mxu0 %v4018
  %4076 = vmatprep.subr.bf16.mxu0 0
  %4077 = vmatpush1.bf16.msra.mxu0 %v4017
  %4078 = vmatprep.subr.bf16.mxu0 0
  %4079 = vmatpush1.bf16.msra.mxu0 %v4016
  %4080 = vmatprep.subr.bf16.mxu0 0
  %4081 = vmatpush2.bf16.msra.mxu0 %v4031
  %4082 = vmatprep.subr.bf16.mxu0 0
  %4083 = vmatpush2.bf16.msra.mxu0 %v4030
  %4084 = vmatprep.subr.bf16.mxu0 0
  %4085 = vmatpush2.bf16.msra.mxu0 %v4029
  %4086 = vmatprep.subr.bf16.mxu0 0
  %4087 = vmatpush2.bf16.msra.mxu0 %v4028
  %4088 = vmatprep.subr.bf16.mxu0 0
  %4089 = vmatpush2.bf16.msra.mxu0 %v4027
  %4090 = vmatprep.subr.bf16.mxu0 0
  %4091 = vmatpush2.bf16.msra.mxu0 %v4026
  %4092 = vmatprep.subr.bf16.mxu0 0
  %4093 = vmatpush2.bf16.msra.mxu0 %v4025
  %4094 = vmatprep.subr.bf16.mxu0 0
  %4095 = vmatpush2.bf16.msra.mxu0 %v4024
  %4096 = vmatprep.mubr.bf16.mxu0 %v3729
  %4097 = vmatmul.mubr.bf16.gmra.mxu0 %v3728
  %v4098 = vpop.f32.mrf.mxu0
  %v4099 = vadd.f32 %v3154, %v4098
  %v4100 = vpop.f32.mrf.mxu0
  %v4101 = vpop.f32.mrf.mxu0
  %v4102 = vadd.f32 %v3157, %v4101
  %v4103 = vpop.f32.mrf.mxu0
  %4104 = vmatprep.mubr.bf16.mxu0 %v3732
  %4105 = vmatmul.mubr.bf16.gmra.mxu0 %v3731
  %v4106 = vpop.f32.mrf.mxu0
  %v4107 = vadd.f32 %v3162, %v4106
  %v4108 = vpop.f32.mrf.mxu0
  %v4109 = vpop.f32.mrf.mxu0
  %v4110 = vadd.f32 %v3165, %v4109
  %v4111 = vpop.f32.mrf.mxu0
  %4112 = vmatprep.mubr.bf16.mxu0 %v3735
  %4113 = vmatmul.mubr.bf16.gmra.mxu0 %v3734
  %v4114 = vpop.f32.mrf.mxu0
  %v4115 = vadd.f32 %v3170, %v4114
  %v4116 = vpop.f32.mrf.mxu0
  %v4117 = vpop.f32.mrf.mxu0
  %v4118 = vadd.f32 %v3173, %v4117
  %v4119 = vpop.f32.mrf.mxu0
  %4120 = vmatprep.mubr.bf16.mxu0 %v3738
  %4121 = vmatmul.mubr.bf16.gmra.mxu0 %v3737
  %v4122 = vpop.f32.mrf.mxu0
  %v4123 = vadd.f32 %v3178, %v4122
  %v4124 = vpop.f32.mrf.mxu0
  %v4125 = vpop.f32.mrf.mxu0
  %v4126 = vadd.f32 %v3181, %v4125
  %v4127 = vpop.f32.mrf.mxu0
  %4128 = vmatprep.mubr.bf16.mxu0 %v3741
  %4129 = vmatmul.mubr.bf16.gmra.mxu0 %v3740
  %v4130 = vpop.f32.mrf.mxu0
  %v4131 = vadd.f32 %v3186, %v4130
  %v4132 = vpop.f32.mrf.mxu0
  %v4133 = vpop.f32.mrf.mxu0
  %v4134 = vadd.f32 %v3189, %v4133
  %v4135 = vpop.f32.mrf.mxu0
  %4136 = vmatprep.mubr.bf16.mxu0 %v3744
  %4137 = vmatmul.mubr.bf16.gmra.mxu0 %v3743
  %v4138 = vpop.f32.mrf.mxu0
  %v4139 = vadd.f32 %v3194, %v4138
  %v4140 = vpop.f32.mrf.mxu0
  %v4141 = vpop.f32.mrf.mxu0
  %v4142 = vadd.f32 %v3197, %v4141
  %v4143 = vpop.f32.mrf.mxu0
  %4144 = vmatprep.mubr.bf16.mxu0 %v3747
  %4145 = vmatmul.mubr.bf16.gmra.mxu0 %v3746
  %v4146 = vpop.f32.mrf.mxu0
  %v4147 = vadd.f32 %v3202, %v4146
  %v4148 = vpop.f32.mrf.mxu0
  %v4149 = vpop.f32.mrf.mxu0
  %v4150 = vadd.f32 %v3205, %v4149
  %v4151 = vpop.f32.mrf.mxu0
  %4152 = vmatprep.mubr.bf16.mxu0 %v3750
  %4153 = vmatmul.mubr.bf16.gmra.mxu0 %v3749
  %v4154 = vpop.f32.mrf.mxu0
  %v4155 = vadd.f32 %v3210, %v4154
  %v4156 = vpop.f32.mrf.mxu0
  %v4157 = vpop.f32.mrf.mxu0
  %v4158 = vadd.f32 %v3213, %v4157
  %v4159 = vpop.f32.mrf.mxu0
  %4160 = vmatprep.mubr.bf16.mxu0 %v3753
  %4161 = vmatmul.mubr.bf16.gmra.mxu0 %v3752
  %v4162 = vpop.f32.mrf.mxu0
  %v4163 = vadd.f32 %v3218, %v4162
  %v4164 = vpop.f32.mrf.mxu0
  %v4165 = vpop.f32.mrf.mxu0
  %v4166 = vadd.f32 %v3221, %v4165
  %v4167 = vpop.f32.mrf.mxu0
  %4168 = vmatprep.mubr.bf16.mxu0 %v3756
  %4169 = vmatmul.mubr.bf16.gmra.mxu0 %v3755
  %v4170 = vpop.f32.mrf.mxu0
  %v4171 = vadd.f32 %v3226, %v4170
  %v4172 = vpop.f32.mrf.mxu0
  %v4173 = vpop.f32.mrf.mxu0
  %v4174 = vadd.f32 %v3229, %v4173
  %v4175 = vpop.f32.mrf.mxu0
  %4176 = vmatprep.mubr.bf16.mxu0 %v3759
  %4177 = vmatmul.mubr.bf16.gmra.mxu0 %v3758
  %v4178 = vpop.f32.mrf.mxu0
  %v4179 = vadd.f32 %v3234, %v4178
  %v4180 = vpop.f32.mrf.mxu0
  %v4181 = vpop.f32.mrf.mxu0
  %v4182 = vadd.f32 %v3237, %v4181
  %v4183 = vpop.f32.mrf.mxu0
  %4184 = vmatprep.mubr.bf16.mxu0 %v3762
  %4185 = vmatmul.mubr.bf16.gmra.mxu0 %v3761
  %v4186 = vpop.f32.mrf.mxu0
  %v4187 = vadd.f32 %v3242, %v4186
  %v4188 = vpop.f32.mrf.mxu0
  %v4189 = vpop.f32.mrf.mxu0
  %v4190 = vadd.f32 %v3245, %v4189
  %v4191 = vpop.f32.mrf.mxu0
  %4192 = vmatprep.mubr.bf16.mxu0 %v3765
  %4193 = vmatmul.mubr.bf16.gmra.mxu0 %v3764
  %v4194 = vpop.f32.mrf.mxu0
  %v4195 = vadd.f32 %v3250, %v4194
  %v4196 = vpop.f32.mrf.mxu0
  %v4197 = vpop.f32.mrf.mxu0
  %v4198 = vadd.f32 %v3253, %v4197
  %v4199 = vpop.f32.mrf.mxu0
  %4200 = vmatprep.mubr.bf16.mxu0 %v3768
  %4201 = vmatmul.mubr.bf16.gmra.mxu0 %v3767
  %v4202 = vpop.f32.mrf.mxu0
  %v4203 = vadd.f32 %v3258, %v4202
  %v4204 = vpop.f32.mrf.mxu0
  %v4205 = vpop.f32.mrf.mxu0
  %v4206 = vadd.f32 %v3261, %v4205
  %v4207 = vpop.f32.mrf.mxu0
  %4208 = vmatprep.mubr.bf16.mxu0 %v3771
  %4209 = vmatmul.mubr.bf16.gmra.mxu0 %v3770
  %v4210 = vpop.f32.mrf.mxu0
  %v4211 = vadd.f32 %v3266, %v4210
  %v4212 = vpop.f32.mrf.mxu0
  %v4213 = vpop.f32.mrf.mxu0
  %v4214 = vadd.f32 %v3269, %v4213
  %v4215 = vpop.f32.mrf.mxu0
  %4216 = vmatprep.mubr.bf16.mxu0 %v3774
  %4217 = vmatmul.mubr.bf16.gmra.mxu0 %v3773
  %v4218 = vpop.f32.mrf.mxu0
  %v4219 = vadd.f32 %v3274, %v4218
  %v4220 = vpop.f32.mrf.mxu0
  %v4221 = vpop.f32.mrf.mxu0
  %v4222 = vadd.f32 %v3277, %v4221
  %v4223 = vpop.f32.mrf.mxu0
  %4224 = vmatprep.mubr.bf16.mxu0 %v3777
  %4225 = vmatmul.mubr.bf16.gmra.mxu0 %v3776
  %v4226 = vpop.f32.mrf.mxu0
  %v4227 = vadd.f32 %v3282, %v4226
  %v4228 = vpop.f32.mrf.mxu0
  %v4229 = vpop.f32.mrf.mxu0
  %v4230 = vadd.f32 %v3285, %v4229
  %v4231 = vpop.f32.mrf.mxu0
  %4232 = vmatprep.mubr.bf16.mxu0 %v3780
  %4233 = vmatmul.mubr.bf16.gmra.mxu0 %v3779
  %v4234 = vpop.f32.mrf.mxu0
  %v4235 = vadd.f32 %v3290, %v4234
  %v4236 = vpop.f32.mrf.mxu0
  %v4237 = vpop.f32.mrf.mxu0
  %v4238 = vadd.f32 %v3293, %v4237
  %v4239 = vpop.f32.mrf.mxu0
  %4240 = vmatprep.mubr.bf16.mxu0 %v3783
  %4241 = vmatmul.mubr.bf16.gmra.mxu0 %v3782
  %v4242 = vpop.f32.mrf.mxu0
  %v4243 = vadd.f32 %v3298, %v4242
  %v4244 = vpop.f32.mrf.mxu0
  %v4245 = vpop.f32.mrf.mxu0
  %v4246 = vadd.f32 %v3301, %v4245
  %v4247 = vpop.f32.mrf.mxu0
  %4248 = vmatprep.mubr.bf16.mxu0 %v3786
  %4249 = vmatmul.mubr.bf16.gmra.mxu0 %v3785
  %v4250 = vpop.f32.mrf.mxu0
  %v4251 = vadd.f32 %v3306, %v4250
  %v4252 = vpop.f32.mrf.mxu0
  %v4253 = vpop.f32.mrf.mxu0
  %v4254 = vadd.f32 %v3309, %v4253
  %v4255 = vpop.f32.mrf.mxu0
  %4256 = vmatprep.mubr.bf16.mxu0 %v3789
  %4257 = vmatmul.mubr.bf16.gmra.mxu0 %v3788
  %v4258 = vpop.f32.mrf.mxu0
  %v4259 = vadd.f32 %v3314, %v4258
  %v4260 = vpop.f32.mrf.mxu0
  %v4261 = vpop.f32.mrf.mxu0
  %v4262 = vadd.f32 %v3317, %v4261
  %v4263 = vpop.f32.mrf.mxu0
  %4264 = vmatprep.mubr.bf16.mxu0 %v3792
  %4265 = vmatmul.mubr.bf16.gmra.mxu0 %v3791
  %v4266 = vpop.f32.mrf.mxu0
  %v4267 = vadd.f32 %v3322, %v4266
  %v4268 = vpop.f32.mrf.mxu0
  %v4269 = vpop.f32.mrf.mxu0
  %v4270 = vadd.f32 %v3325, %v4269
  %v4271 = vpop.f32.mrf.mxu0
  %4272 = vmatprep.mubr.bf16.mxu0 %v3795
  %4273 = vmatmul.mubr.bf16.gmra.mxu0 %v3794
  %v4274 = vpop.f32.mrf.mxu0
  %v4275 = vadd.f32 %v3330, %v4274
  %v4276 = vpop.f32.mrf.mxu0
  %v4277 = vpop.f32.mrf.mxu0
  %v4278 = vadd.f32 %v3333, %v4277
  %v4279 = vpop.f32.mrf.mxu0
  %4280 = vmatprep.mubr.bf16.mxu0 %v3798
  %4281 = vmatmul.mubr.bf16.gmra.mxu0 %v3797
  %v4282 = vpop.f32.mrf.mxu0
  %v4283 = vadd.f32 %v3338, %v4282
  %v4284 = vpop.f32.mrf.mxu0
  %v4285 = vpop.f32.mrf.mxu0
  %v4286 = vadd.f32 %v3341, %v4285
  %v4287 = vpop.f32.mrf.mxu0
  %4288 = vmatprep.mubr.bf16.mxu0 %v3801
  %4289 = vmatmul.mubr.bf16.gmra.mxu0 %v3800
  %v4290 = vpop.f32.mrf.mxu0
  %v4291 = vadd.f32 %v3346, %v4290
  %v4292 = vpop.f32.mrf.mxu0
  %v4293 = vpop.f32.mrf.mxu0
  %v4294 = vadd.f32 %v3349, %v4293
  %v4295 = vpop.f32.mrf.mxu0
  %4296 = vmatprep.mubr.bf16.mxu0 %v3804
  %4297 = vmatmul.mubr.bf16.gmra.mxu0 %v3803
  %v4298 = vpop.f32.mrf.mxu0
  %v4299 = vadd.f32 %v3354, %v4298
  %v4300 = vpop.f32.mrf.mxu0
  %v4301 = vpop.f32.mrf.mxu0
  %v4302 = vadd.f32 %v3357, %v4301
  %v4303 = vpop.f32.mrf.mxu0
  %4304 = vmatprep.mubr.bf16.mxu0 %v3807
  %4305 = vmatmul.mubr.bf16.gmra.mxu0 %v3806
  %v4306 = vpop.f32.mrf.mxu0
  %v4307 = vadd.f32 %v3362, %v4306
  %v4308 = vpop.f32.mrf.mxu0
  %v4309 = vpop.f32.mrf.mxu0
  %v4310 = vadd.f32 %v3365, %v4309
  %v4311 = vpop.f32.mrf.mxu0
  %4312 = vmatprep.mubr.bf16.mxu0 %v3810
  %4313 = vmatmul.mubr.bf16.gmra.mxu0 %v3809
  %v4314 = vpop.f32.mrf.mxu0
  %v4315 = vadd.f32 %v3370, %v4314
  %v4316 = vpop.f32.mrf.mxu0
  %v4317 = vpop.f32.mrf.mxu0
  %v4318 = vadd.f32 %v3373, %v4317
  %v4319 = vpop.f32.mrf.mxu0
  %4320 = vmatprep.mubr.bf16.mxu0 %v3813
  %4321 = vmatmul.mubr.bf16.gmra.mxu0 %v3812
  %v4322 = vpop.f32.mrf.mxu0
  %v4323 = vadd.f32 %v3378, %v4322
  %v4324 = vpop.f32.mrf.mxu0
  %v4325 = vpop.f32.mrf.mxu0
  %v4326 = vadd.f32 %v3381, %v4325
  %v4327 = vpop.f32.mrf.mxu0
  %4328 = vmatprep.mubr.bf16.mxu0 %v3816
  %4329 = vmatmul.mubr.bf16.gmra.mxu0 %v3815
  %v4330 = vpop.f32.mrf.mxu0
  %v4331 = vadd.f32 %v3386, %v4330
  %v4332 = vpop.f32.mrf.mxu0
  %v4333 = vpop.f32.mrf.mxu0
  %v4334 = vadd.f32 %v3389, %v4333
  %v4335 = vpop.f32.mrf.mxu0
  %4336 = vmatprep.mubr.bf16.mxu0 %v3819
  %4337 = vmatmul.mubr.bf16.gmra.mxu0 %v3818
  %v4338 = vpop.f32.mrf.mxu0
  %v4339 = vadd.f32 %v3394, %v4338
  %v4340 = vpop.f32.mrf.mxu0
  %v4341 = vpop.f32.mrf.mxu0
  %v4342 = vadd.f32 %v3397, %v4341
  %v4343 = vpop.f32.mrf.mxu0
  %4344 = vmatprep.mubr.bf16.mxu0 %v3822
  %4345 = vmatmul.mubr.bf16.gmra.mxu0 %v3821
  %v4346 = vpop.f32.mrf.mxu0
  %v4347 = vadd.f32 %v3402, %v4346
  %v4348 = vpop.f32.mrf.mxu0
  %v4349 = vpop.f32.mrf.mxu0
  %v4350 = vadd.f32 %v3405, %v4349
  %v4351 = vpop.f32.mrf.mxu0
  %4352 = vdwg.mxu0
  %4353 = vmatprep.subr.bf16.mxu0 0
  %4354 = vmatpush1.bf16.msra.mxu0 %v4039
  %4355 = vmatprep.subr.bf16.mxu0 0
  %4356 = vmatpush1.bf16.msra.mxu0 %v4038
  %4357 = vmatprep.subr.bf16.mxu0 0
  %4358 = vmatpush1.bf16.msra.mxu0 %v4037
  %4359 = vmatprep.subr.bf16.mxu0 0
  %4360 = vmatpush1.bf16.msra.mxu0 %v4036
  %4361 = vmatprep.subr.bf16.mxu0 0
  %4362 = vmatpush1.bf16.msra.mxu0 %v4035
  %4363 = vmatprep.subr.bf16.mxu0 0
  %4364 = vmatpush1.bf16.msra.mxu0 %v4034
  %4365 = vmatprep.subr.bf16.mxu0 0
  %4366 = vmatpush1.bf16.msra.mxu0 %v4033
  %4367 = vmatprep.subr.bf16.mxu0 0
  %4368 = vmatpush1.bf16.msra.mxu0 %v4032
  %4369 = vmatprep.subr.bf16.mxu0 0
  %4370 = vmatpush2.bf16.msra.mxu0 0
  %4371 = vmatprep.subr.bf16.mxu0 0
  %4372 = vmatpush2.bf16.msra.mxu0 0
  %4373 = vmatprep.subr.bf16.mxu0 0
  %4374 = vmatpush2.bf16.msra.mxu0 0
  %4375 = vmatprep.subr.bf16.mxu0 0
  %4376 = vmatpush2.bf16.msra.mxu0 0
  %4377 = vmatprep.subr.bf16.mxu0 0
  %4378 = vmatpush2.bf16.msra.mxu0 0
  %4379 = vmatprep.subr.bf16.mxu0 0
  %4380 = vmatpush2.bf16.msra.mxu0 0
  %4381 = vmatprep.subr.bf16.mxu0 0
  %4382 = vmatpush2.bf16.msra.mxu0 0
  %4383 = vmatprep.subr.bf16.mxu0 0
  %4384 = vmatpush2.bf16.msra.mxu0 0
  %4385 = vmatprep.mubr.bf16.mxu0 0
  %4386 = vmatmul.mubr.bf16.gmra.mxu0 %v3730
  %v4387 = vpop.f32.mrf.mxu0
  %v4388 = vadd.f32 %v4099, %v4387
  %v4389 = vpop.f32.mrf.mxu0
  %v4390 = vpop.f32.mrf.mxu0
  %v4391 = vadd.f32 %v4102, %v4390
  %v4392 = vpop.f32.mrf.mxu0
  %4393 = vmatprep.mubr.bf16.mxu0 0
  %4394 = vmatmul.mubr.bf16.gmra.mxu0 %v3733
  %v4395 = vpop.f32.mrf.mxu0
  %v4396 = vadd.f32 %v4107, %v4395
  %v4397 = vpop.f32.mrf.mxu0
  %v4398 = vpop.f32.mrf.mxu0
  %v4399 = vadd.f32 %v4110, %v4398
  %v4400 = vpop.f32.mrf.mxu0
  %4401 = vmatprep.mubr.bf16.mxu0 0
  %4402 = vmatmul.mubr.bf16.gmra.mxu0 %v3736
  %v4403 = vpop.f32.mrf.mxu0
  %v4404 = vadd.f32 %v4115, %v4403
  %v4405 = vpop.f32.mrf.mxu0
  %v4406 = vpop.f32.mrf.mxu0
  %v4407 = vadd.f32 %v4118, %v4406
  %v4408 = vpop.f32.mrf.mxu0
  %4409 = vmatprep.mubr.bf16.mxu0 0
  %4410 = vmatmul.mubr.bf16.gmra.mxu0 %v3739
  %v4411 = vpop.f32.mrf.mxu0
  %v4412 = vadd.f32 %v4123, %v4411
  %v4413 = vpop.f32.mrf.mxu0
  %v4414 = vpop.f32.mrf.mxu0
  %v4415 = vadd.f32 %v4126, %v4414
  %v4416 = vpop.f32.mrf.mxu0
  %4417 = vmatprep.mubr.bf16.mxu0 0
  %4418 = vmatmul.mubr.bf16.gmra.mxu0 %v3742
  %v4419 = vpop.f32.mrf.mxu0
  %v4420 = vadd.f32 %v4131, %v4419
  %v4421 = vpop.f32.mrf.mxu0
  %v4422 = vpop.f32.mrf.mxu0
  %v4423 = vadd.f32 %v4134, %v4422
  %v4424 = vpop.f32.mrf.mxu0
  %4425 = vmatprep.mubr.bf16.mxu0 0
  %4426 = vmatmul.mubr.bf16.gmra.mxu0 %v3745
  %v4427 = vpop.f32.mrf.mxu0
  %v4428 = vadd.f32 %v4139, %v4427
  %v4429 = vpop.f32.mrf.mxu0
  %v4430 = vpop.f32.mrf.mxu0
  %v4431 = vadd.f32 %v4142, %v4430
  %v4432 = vpop.f32.mrf.mxu0
  %4433 = vmatprep.mubr.bf16.mxu0 0
  %4434 = vmatmul.mubr.bf16.gmra.mxu0 %v3748
  %v4435 = vpop.f32.mrf.mxu0
  %v4436 = vadd.f32 %v4147, %v4435
  %v4437 = vpop.f32.mrf.mxu0
  %v4438 = vpop.f32.mrf.mxu0
  %v4439 = vadd.f32 %v4150, %v4438
  %v4440 = vpop.f32.mrf.mxu0
  %4441 = vmatprep.mubr.bf16.mxu0 0
  %4442 = vmatmul.mubr.bf16.gmra.mxu0 %v3751
  %v4443 = vpop.f32.mrf.mxu0
  %v4444 = vadd.f32 %v4155, %v4443
  %v4445 = vpop.f32.mrf.mxu0
  %v4446 = vpop.f32.mrf.mxu0
  %v4447 = vadd.f32 %v4158, %v4446
  %v4448 = vpop.f32.mrf.mxu0
  %4449 = vmatprep.mubr.bf16.mxu0 0
  %4450 = vmatmul.mubr.bf16.gmra.mxu0 %v3754
  %v4451 = vpop.f32.mrf.mxu0
  %v4452 = vadd.f32 %v4163, %v4451
  %v4453 = vpop.f32.mrf.mxu0
  %v4454 = vpop.f32.mrf.mxu0
  %v4455 = vadd.f32 %v4166, %v4454
  %v4456 = vpop.f32.mrf.mxu0
  %4457 = vmatprep.mubr.bf16.mxu0 0
  %4458 = vmatmul.mubr.bf16.gmra.mxu0 %v3757
  %v4459 = vpop.f32.mrf.mxu0
  %v4460 = vadd.f32 %v4171, %v4459
  %v4461 = vpop.f32.mrf.mxu0
  %v4462 = vpop.f32.mrf.mxu0
  %v4463 = vadd.f32 %v4174, %v4462
  %v4464 = vpop.f32.mrf.mxu0
  %4465 = vmatprep.mubr.bf16.mxu0 0
  %4466 = vmatmul.mubr.bf16.gmra.mxu0 %v3760
  %v4467 = vpop.f32.mrf.mxu0
  %v4468 = vadd.f32 %v4179, %v4467
  %v4469 = vpop.f32.mrf.mxu0
  %v4470 = vpop.f32.mrf.mxu0
  %v4471 = vadd.f32 %v4182, %v4470
  %v4472 = vpop.f32.mrf.mxu0
  %4473 = vmatprep.mubr.bf16.mxu0 0
  %4474 = vmatmul.mubr.bf16.gmra.mxu0 %v3763
  %v4475 = vpop.f32.mrf.mxu0
  %v4476 = vadd.f32 %v4187, %v4475
  %v4477 = vpop.f32.mrf.mxu0
  %v4478 = vpop.f32.mrf.mxu0
  %v4479 = vadd.f32 %v4190, %v4478
  %v4480 = vpop.f32.mrf.mxu0
  %4481 = vmatprep.mubr.bf16.mxu0 0
  %4482 = vmatmul.mubr.bf16.gmra.mxu0 %v3766
  %v4483 = vpop.f32.mrf.mxu0
  %v4484 = vadd.f32 %v4195, %v4483
  %v4485 = vpop.f32.mrf.mxu0
  %v4486 = vpop.f32.mrf.mxu0
  %v4487 = vadd.f32 %v4198, %v4486
  %v4488 = vpop.f32.mrf.mxu0
  %4489 = vmatprep.mubr.bf16.mxu0 0
  %4490 = vmatmul.mubr.bf16.gmra.mxu0 %v3769
  %v4491 = vpop.f32.mrf.mxu0
  %v4492 = vadd.f32 %v4203, %v4491
  %v4493 = vpop.f32.mrf.mxu0
  %v4494 = vpop.f32.mrf.mxu0
  %v4495 = vadd.f32 %v4206, %v4494
  %v4496 = vpop.f32.mrf.mxu0
  %4497 = vmatprep.mubr.bf16.mxu0 0
  %4498 = vmatmul.mubr.bf16.gmra.mxu0 %v3772
  %v4499 = vpop.f32.mrf.mxu0
  %v4500 = vadd.f32 %v4211, %v4499
  %v4501 = vpop.f32.mrf.mxu0
  %v4502 = vpop.f32.mrf.mxu0
  %v4503 = vadd.f32 %v4214, %v4502
  %v4504 = vpop.f32.mrf.mxu0
  %4505 = vmatprep.mubr.bf16.mxu0 0
  %4506 = vmatmul.mubr.bf16.gmra.mxu0 %v3775
  %v4507 = vpop.f32.mrf.mxu0
  %v4508 = vadd.f32 %v4219, %v4507
  %v4509 = vpop.f32.mrf.mxu0
  %v4510 = vpop.f32.mrf.mxu0
  %v4511 = vadd.f32 %v4222, %v4510
  %v4512 = vpop.f32.mrf.mxu0
  %4513 = vmatprep.mubr.bf16.mxu0 0
  %4514 = vmatmul.mubr.bf16.gmra.mxu0 %v3778
  %v4515 = vpop.f32.mrf.mxu0
  %v4516 = vadd.f32 %v4227, %v4515
  %v4517 = vpop.f32.mrf.mxu0
  %v4518 = vpop.f32.mrf.mxu0
  %v4519 = vadd.f32 %v4230, %v4518
  %v4520 = vpop.f32.mrf.mxu0
  %4521 = vmatprep.mubr.bf16.mxu0 0
  %4522 = vmatmul.mubr.bf16.gmra.mxu0 %v3781
  %v4523 = vpop.f32.mrf.mxu0
  %v4524 = vadd.f32 %v4235, %v4523
  %v4525 = vpop.f32.mrf.mxu0
  %v4526 = vpop.f32.mrf.mxu0
  %v4527 = vadd.f32 %v4238, %v4526
  %v4528 = vpop.f32.mrf.mxu0
  %4529 = vmatprep.mubr.bf16.mxu0 0
  %4530 = vmatmul.mubr.bf16.gmra.mxu0 %v3784
  %v4531 = vpop.f32.mrf.mxu0
  %v4532 = vadd.f32 %v4243, %v4531
  %v4533 = vpop.f32.mrf.mxu0
  %v4534 = vpop.f32.mrf.mxu0
  %v4535 = vadd.f32 %v4246, %v4534
  %v4536 = vpop.f32.mrf.mxu0
  %4537 = vmatprep.mubr.bf16.mxu0 0
  %4538 = vmatmul.mubr.bf16.gmra.mxu0 %v3787
  %v4539 = vpop.f32.mrf.mxu0
  %v4540 = vadd.f32 %v4251, %v4539
  %v4541 = vpop.f32.mrf.mxu0
  %v4542 = vpop.f32.mrf.mxu0
  %v4543 = vadd.f32 %v4254, %v4542
  %v4544 = vpop.f32.mrf.mxu0
  %4545 = vmatprep.mubr.bf16.mxu0 0
  %4546 = vmatmul.mubr.bf16.gmra.mxu0 %v3790
  %v4547 = vpop.f32.mrf.mxu0
  %v4548 = vadd.f32 %v4259, %v4547
  %v4549 = vpop.f32.mrf.mxu0
  %v4550 = vpop.f32.mrf.mxu0
  %v4551 = vadd.f32 %v4262, %v4550
  %v4552 = vpop.f32.mrf.mxu0
  %4553 = vmatprep.mubr.bf16.mxu0 0
  %4554 = vmatmul.mubr.bf16.gmra.mxu0 %v3793
  %v4555 = vpop.f32.mrf.mxu0
  %v4556 = vadd.f32 %v4267, %v4555
  %v4557 = vpop.f32.mrf.mxu0
  %v4558 = vpop.f32.mrf.mxu0
  %v4559 = vadd.f32 %v4270, %v4558
  %v4560 = vpop.f32.mrf.mxu0
  %4561 = vmatprep.mubr.bf16.mxu0 0
  %4562 = vmatmul.mubr.bf16.gmra.mxu0 %v3796
  %v4563 = vpop.f32.mrf.mxu0
  %v4564 = vadd.f32 %v4275, %v4563
  %v4565 = vpop.f32.mrf.mxu0
  %v4566 = vpop.f32.mrf.mxu0
  %v4567 = vadd.f32 %v4278, %v4566
  %v4568 = vpop.f32.mrf.mxu0
  %4569 = vmatprep.mubr.bf16.mxu0 0
  %4570 = vmatmul.mubr.bf16.gmra.mxu0 %v3799
  %v4571 = vpop.f32.mrf.mxu0
  %v4572 = vadd.f32 %v4283, %v4571
  %v4573 = vpop.f32.mrf.mxu0
  %v4574 = vpop.f32.mrf.mxu0
  %v4575 = vadd.f32 %v4286, %v4574
  %v4576 = vpop.f32.mrf.mxu0
  %4577 = vmatprep.mubr.bf16.mxu0 0
  %4578 = vmatmul.mubr.bf16.gmra.mxu0 %v3802
  %v4579 = vpop.f32.mrf.mxu0
  %v4580 = vadd.f32 %v4291, %v4579
  %v4581 = vpop.f32.mrf.mxu0
  %v4582 = vpop.f32.mrf.mxu0
  %v4583 = vadd.f32 %v4294, %v4582
  %v4584 = vpop.f32.mrf.mxu0
  %4585 = vmatprep.mubr.bf16.mxu0 0
  %4586 = vmatmul.mubr.bf16.gmra.mxu0 %v3805
  %v4587 = vpop.f32.mrf.mxu0
  %v4588 = vadd.f32 %v4299, %v4587
  %v4589 = vpop.f32.mrf.mxu0
  %v4590 = vpop.f32.mrf.mxu0
  %v4591 = vadd.f32 %v4302, %v4590
  %v4592 = vpop.f32.mrf.mxu0
  %4593 = vmatprep.mubr.bf16.mxu0 0
  %4594 = vmatmul.mubr.bf16.gmra.mxu0 %v3808
  %v4595 = vpop.f32.mrf.mxu0
  %v4596 = vadd.f32 %v4307, %v4595
  %v4597 = vpop.f32.mrf.mxu0
  %v4598 = vpop.f32.mrf.mxu0
  %v4599 = vadd.f32 %v4310, %v4598
  %v4600 = vpop.f32.mrf.mxu0
  %4601 = vmatprep.mubr.bf16.mxu0 0
  %4602 = vmatmul.mubr.bf16.gmra.mxu0 %v3811
  %v4603 = vpop.f32.mrf.mxu0
  %v4604 = vadd.f32 %v4315, %v4603
  %v4605 = vpop.f32.mrf.mxu0
  %v4606 = vpop.f32.mrf.mxu0
  %v4607 = vadd.f32 %v4318, %v4606
  %v4608 = vpop.f32.mrf.mxu0
  %4609 = vmatprep.mubr.bf16.mxu0 0
  %4610 = vmatmul.mubr.bf16.gmra.mxu0 %v3814
  %v4611 = vpop.f32.mrf.mxu0
  %v4612 = vadd.f32 %v4323, %v4611
  %v4613 = vpop.f32.mrf.mxu0
  %v4614 = vpop.f32.mrf.mxu0
  %v4615 = vadd.f32 %v4326, %v4614
  %v4616 = vpop.f32.mrf.mxu0
  %4617 = vmatprep.mubr.bf16.mxu0 0
  %4618 = vmatmul.mubr.bf16.gmra.mxu0 %v3817
  %v4619 = vpop.f32.mrf.mxu0
  %v4620 = vadd.f32 %v4331, %v4619
  %v4621 = vpop.f32.mrf.mxu0
  %v4622 = vpop.f32.mrf.mxu0
  %v4623 = vadd.f32 %v4334, %v4622
  %v4624 = vpop.f32.mrf.mxu0
  %4625 = vmatprep.mubr.bf16.mxu0 0
  %4626 = vmatmul.mubr.bf16.gmra.mxu0 %v3820
  %v4627 = vpop.f32.mrf.mxu0
  %v4628 = vadd.f32 %v4339, %v4627
  %v4629 = vpop.f32.mrf.mxu0
  %v4630 = vpop.f32.mrf.mxu0
  %v4631 = vadd.f32 %v4342, %v4630
  %v4632 = vpop.f32.mrf.mxu0
  %4633 = vmatprep.mubr.bf16.mxu0 0
  %4634 = vmatmul.mubr.bf16.gmra.mxu0 %v3823
  %v4635 = vpop.f32.mrf.mxu0
  %v4636 = vadd.f32 %v4347, %v4635
  %v4637 = vpop.f32.mrf.mxu0
  %v4638 = vpop.f32.mrf.mxu0
  %v4639 = vadd.f32 %v4350, %v4638
  %v4640 = vpop.f32.mrf.mxu0
  %4641 = vdwg.mxu0
  %s4642 = scalar_lea.vmem [#allocation2], 48
  %v4643 = vld [vmem:[%s4642] sm:$0xff]
  %v4644 = vld [vmem:[%s4642 + $0x8] sm:$0xf]
  %v4645 = vld [vmem:[%s4642 + $0xc] sm:$0xff]
  %v4646 = vld [vmem:[%s4642 + $0x14] sm:$0xf]
  %v4647 = vld [vmem:[%s4642 + $0x18] sm:$0xff]
  %v4648 = vld [vmem:[%s4642 + $0x20] sm:$0xf]
  %v4649 = vld [vmem:[%s4642 + $0x24] sm:$0xff]
  %v4650 = vld [vmem:[%s4642 + $0x2c] sm:$0xf]
  %v4651 = vld [vmem:[%s4642 + $0x30] sm:$0xff]
  %v4652 = vld [vmem:[%s4642 + $0x38] sm:$0xf]
  %v4653 = vld [vmem:[%s4642 + $0x3c] sm:$0xff]
  %v4654 = vld [vmem:[%s4642 + $0x44] sm:$0xf]
  %v4655 = vld [vmem:[%s4642 + $0x48] sm:$0xff]
  %v4656 = vld [vmem:[%s4642 + $0x50] sm:$0xf]
  %v4657 = vld [vmem:[%s4642 + $0x54] sm:$0xff]
  %v4658 = vld [vmem:[%s4642 + $0x5c] sm:$0xf]
  %v4659 = vld [vmem:[%s4642 + $0x60] sm:$0xff]
  %v4660 = vld [vmem:[%s4642 + $0x68] sm:$0xf]
  %v4661 = vld [vmem:[%s4642 + $0x6c] sm:$0xff]
  %v4662 = vld [vmem:[%s4642 + $0x74] sm:$0xf]
  %v4663 = vld [vmem:[%s4642 + $0x78] sm:$0xff]
  %v4664 = vld [vmem:[%s4642 + $0x80] sm:$0xf]
  %v4665 = vld [vmem:[%s4642 + $0x84] sm:$0xff]
  %v4666 = vld [vmem:[%s4642 + $0x8c] sm:$0xf]
  %v4667 = vld [vmem:[%s4642 + $0x90] sm:$0xff]
  %v4668 = vld [vmem:[%s4642 + $0x98] sm:$0xf]
  %v4669 = vld [vmem:[%s4642 + $0x9c] sm:$0xff]
  %v4670 = vld [vmem:[%s4642 + $0xa4] sm:$0xf]
  %v4671 = vld [vmem:[%s4642 + $0xa8] sm:$0xff]
  %v4672 = vld [vmem:[%s4642 + $0xb0] sm:$0xf]
  %v4673 = vld [vmem:[%s4642 + $0xb4] sm:$0xff]
  %v4674 = vld [vmem:[%s4642 + $0xbc] sm:$0xf]
  %v4675 = vld [vmem:[%s4642 + $0xc0] sm:$0xff]
  %v4676 = vld [vmem:[%s4642 + $0xc8] sm:$0xf]
  %v4677 = vld [vmem:[%s4642 + $0xcc] sm:$0xff]
  %v4678 = vld [vmem:[%s4642 + $0xd4] sm:$0xf]
  %v4679 = vld [vmem:[%s4642 + $0xd8] sm:$0xff]
  %v4680 = vld [vmem:[%s4642 + $0xe0] sm:$0xf]
  %v4681 = vld [vmem:[%s4642 + $0xe4] sm:$0xff]
  %v4682 = vld [vmem:[%s4642 + $0xec] sm:$0xf]
  %v4683 = vld [vmem:[%s4642 + $0xf0] sm:$0xff]
  %v4684 = vld [vmem:[%s4642 + $0xf8] sm:$0xf]
  %v4685 = vld [vmem:[%s4642 + $0xfc] sm:$0xff]
  %v4686 = vld [vmem:[%s4642 + $0x104] sm:$0xf]
  %v4687 = vld [vmem:[%s4642 + $0x108] sm:$0xff]
  %v4688 = vld [vmem:[%s4642 + $0x110] sm:$0xf]
  %v4689 = vld [vmem:[%s4642 + $0x114] sm:$0xff]
  %v4690 = vld [vmem:[%s4642 + $0x11c] sm:$0xf]
  %v4691 = vld [vmem:[%s4642 + $0x120] sm:$0xff]
  %v4692 = vld [vmem:[%s4642 + $0x128] sm:$0xf]
  %v4693 = vld [vmem:[%s4642 + $0x12c] sm:$0xff]
  %v4694 = vld [vmem:[%s4642 + $0x134] sm:$0xf]
  %v4695 = vld [vmem:[%s4642 + $0x138] sm:$0xff]
  %v4696 = vld [vmem:[%s4642 + $0x140] sm:$0xf]
  %v4697 = vld [vmem:[%s4642 + $0x144] sm:$0xff]
  %v4698 = vld [vmem:[%s4642 + $0x14c] sm:$0xf]
  %v4699 = vld [vmem:[%s4642 + $0x150] sm:$0xff]
  %v4700 = vld [vmem:[%s4642 + $0x158] sm:$0xf]
  %v4701 = vld [vmem:[%s4642 + $0x15c] sm:$0xff]
  %v4702 = vld [vmem:[%s4642 + $0x164] sm:$0xf]
  %v4703 = vld [vmem:[%s4642 + $0x168] sm:$0xff]
  %v4704 = vld [vmem:[%s4642 + $0x170] sm:$0xf]
  %v4705 = vld [vmem:[%s4642 + $0x174] sm:$0xff]
  %v4706 = vld [vmem:[%s4642 + $0x17c] sm:$0xf]
  %v4707 = vld [vmem:[%s4642 + $0x1b0] sm:$0xff]
  %v4708 = vld [vmem:[%s4642 + $0x1b8] sm:$0xf]
  %v4709 = vld [vmem:[%s4642 + $0x1bc] sm:$0xff]
  %v4710 = vld [vmem:[%s4642 + $0x1c4] sm:$0xf]
  %v4711 = vld [vmem:[%s4642 + $0x1c8] sm:$0xff]
  %v4712 = vld [vmem:[%s4642 + $0x1d0] sm:$0xf]
  %v4713 = vld [vmem:[%s4642 + $0x1d4] sm:$0xff]
  %v4714 = vld [vmem:[%s4642 + $0x1dc] sm:$0xf]
  %v4715 = vld [vmem:[%s4642 + $0x1e0] sm:$0xff]
  %v4716 = vld [vmem:[%s4642 + $0x1e8] sm:$0xf]
  %v4717 = vld [vmem:[%s4642 + $0x1ec] sm:$0xff]
  %v4718 = vld [vmem:[%s4642 + $0x1f4] sm:$0xf]
  %v4719 = vld [vmem:[%s4642 + $0x1f8] sm:$0xff]
  %v4720 = vld [vmem:[%s4642 + $0x200] sm:$0xf]
  %v4721 = vld [vmem:[%s4642 + $0x204] sm:$0xff]
  %v4722 = vld [vmem:[%s4642 + $0x20c] sm:$0xf]
  %v4723 = vld [vmem:[%s4642 + $0x210] sm:$0xff]
  %v4724 = vld [vmem:[%s4642 + $0x218] sm:$0xf]
  %v4725 = vld [vmem:[%s4642 + $0x21c] sm:$0xff]
  %v4726 = vld [vmem:[%s4642 + $0x224] sm:$0xf]
  %v4727 = vld [vmem:[%s4642 + $0x228] sm:$0xff]
  %v4728 = vld [vmem:[%s4642 + $0x230] sm:$0xf]
  %v4729 = vld [vmem:[%s4642 + $0x234] sm:$0xff]
  %v4730 = vld [vmem:[%s4642 + $0x23c] sm:$0xf]
  %v4731 = vld [vmem:[%s4642 + $0x240] sm:$0xff]
  %v4732 = vld [vmem:[%s4642 + $0x248] sm:$0xf]
  %v4733 = vld [vmem:[%s4642 + $0x24c] sm:$0xff]
  %v4734 = vld [vmem:[%s4642 + $0x254] sm:$0xf]
  %v4735 = vld [vmem:[%s4642 + $0x258] sm:$0xff]
  %v4736 = vld [vmem:[%s4642 + $0x260] sm:$0xf]
  %v4737 = vld [vmem:[%s4642 + $0x264] sm:$0xff]
  %v4738 = vld [vmem:[%s4642 + $0x26c] sm:$0xf]
  %v4739 = vld [vmem:[%s4642 + $0x270] sm:$0xff]
  %v4740 = vld [vmem:[%s4642 + $0x278] sm:$0xf]
  %v4741 = vld [vmem:[%s4642 + $0x27c] sm:$0xff]
  %v4742 = vld [vmem:[%s4642 + $0x284] sm:$0xf]
  %v4743 = vld [vmem:[%s4642 + $0x288] sm:$0xff]
  %v4744 = vld [vmem:[%s4642 + $0x290] sm:$0xf]
  %v4745 = vld [vmem:[%s4642 + $0x294] sm:$0xff]
  %v4746 = vld [vmem:[%s4642 + $0x29c] sm:$0xf]
  %v4747 = vld [vmem:[%s4642 + $0x2a0] sm:$0xff]
  %v4748 = vld [vmem:[%s4642 + $0x2a8] sm:$0xf]
  %v4749 = vld [vmem:[%s4642 + $0x2ac] sm:$0xff]
  %v4750 = vld [vmem:[%s4642 + $0x2b4] sm:$0xf]
  %v4751 = vld [vmem:[%s4642 + $0x2b8] sm:$0xff]
  %v4752 = vld [vmem:[%s4642 + $0x2c0] sm:$0xf]
  %v4753 = vld [vmem:[%s4642 + $0x2c4] sm:$0xff]
  %v4754 = vld [vmem:[%s4642 + $0x2cc] sm:$0xf]
  %v4755 = vld [vmem:[%s4642 + $0x2d0] sm:$0xff]
  %v4756 = vld [vmem:[%s4642 + $0x2d8] sm:$0xf]
  %v4757 = vld [vmem:[%s4642 + $0x2dc] sm:$0xff]
  %v4758 = vld [vmem:[%s4642 + $0x2e4] sm:$0xf]
  %v4759 = vld [vmem:[%s4642 + $0x2e8] sm:$0xff]
  %v4760 = vld [vmem:[%s4642 + $0x2f0] sm:$0xf]
  %v4761 = vld [vmem:[%s4642 + $0x2f4] sm:$0xff]
  %v4762 = vld [vmem:[%s4642 + $0x2fc] sm:$0xf]
  %v4763 = vld [vmem:[%s4642 + $0x300] sm:$0xff]
  %v4764 = vld [vmem:[%s4642 + $0x308] sm:$0xf]
  %v4765 = vld [vmem:[%s4642 + $0x30c] sm:$0xff]
  %v4766 = vld [vmem:[%s4642 + $0x314] sm:$0xf]
  %v4767 = vld [vmem:[%s4642 + $0x318] sm:$0xff]
  %v4768 = vld [vmem:[%s4642 + $0x320] sm:$0xf]
  %v4769 = vld [vmem:[%s4642 + $0x324] sm:$0xff]
  %v4770 = vld [vmem:[%s4642 + $0x32c] sm:$0xf]
  %s4771 = scalar_lea.vmem %s3, 384
  %v4772 = vld [vmem:[%s4771] sm:$0xf]
  %v4773 = vld [vmem:[%s4771 + $0x4] sm:$0xf]
  %v4774 = vld [vmem:[%s4771 + $0x8] sm:$0xf]
  %v4775 = vld [vmem:[%s4771 + $0xc] sm:$0xf]
  %v4776 = vld [vmem:[%s4771 + $0x10] sm:$0xf]
  %v4777 = vld [vmem:[%s4771 + $0x14] sm:$0xf]
  %v4778 = vld [vmem:[%s4771 + $0x18] sm:$0xf]
  %v4779 = vld [vmem:[%s4771 + $0x1c] sm:$0xf]
  %v4780 = vld [vmem:[%s4771 + $0x20] sm:$0xf]
  %v4781 = vld [vmem:[%s4771 + $0x24] sm:$0xf]
  %v4782 = vld [vmem:[%s4771 + $0x28] sm:$0xf]
  %v4783 = vld [vmem:[%s4771 + $0x2c] sm:$0xf]
  %v4784 = vld [vmem:[%s4771 + $0x30] sm:$0xf]
  %v4785 = vld [vmem:[%s4771 + $0x34] sm:$0xf]
  %v4786 = vld [vmem:[%s4771 + $0x38] sm:$0xf]
  %v4787 = vld [vmem:[%s4771 + $0x3c] sm:$0xf]
  %v4788 = vld [vmem:[%s4771 + $0x40] sm:$0xf]
  %v4789 = vld [vmem:[%s4771 + $0x44] sm:$0xf]
  %v4790 = vld [vmem:[%s4771 + $0x48] sm:$0xf]
  %v4791 = vld [vmem:[%s4771 + $0x4c] sm:$0xf]
  %v4792 = vld [vmem:[%s4771 + $0x50] sm:$0xf]
  %v4793 = vld [vmem:[%s4771 + $0x54] sm:$0xf]
  %v4794 = vld [vmem:[%s4771 + $0x58] sm:$0xf]
  %v4795 = vld [vmem:[%s4771 + $0x5c] sm:$0xf]
  %v4796 = vld [vmem:[%s4771 + $0x60] sm:$0xf]
  %v4797 = vld [vmem:[%s4771 + $0x64] sm:$0xf]
  %v4798 = vld [vmem:[%s4771 + $0x68] sm:$0xf]
  %v4799 = vld [vmem:[%s4771 + $0x6c] sm:$0xf]
  %v4800 = vld [vmem:[%s4771 + $0x70] sm:$0xf]
  %v4801 = vld [vmem:[%s4771 + $0x74] sm:$0xf]
  %v4802 = vld [vmem:[%s4771 + $0x78] sm:$0xf]
  %v4803 = vld [vmem:[%s4771 + $0x7c] sm:$0xf]
  %v4804 = vld [vmem:[%s4771 + $0x80] sm:$0xf]
  %v4805 = vld [vmem:[%s4771 + $0x84] sm:$0xf]
  %v4806 = vld [vmem:[%s4771 + $0x88] sm:$0xf]
  %v4807 = vld [vmem:[%s4771 + $0x8c] sm:$0xf]
  %v4808 = vld [vmem:[%s4771 + $0x90] sm:$0xf]
  %v4809 = vld [vmem:[%s4771 + $0x94] sm:$0xf]
  %v4810 = vld [vmem:[%s4771 + $0x98] sm:$0xf]
  %v4811 = vld [vmem:[%s4771 + $0x9c] sm:$0xf]
  %v4812 = vld [vmem:[%s4771 + $0xa0] sm:$0xf]
  %v4813 = vld [vmem:[%s4771 + $0xa4] sm:$0xf]
  %v4814 = vld [vmem:[%s4771 + $0xa8] sm:$0xf]
  %v4815 = vld [vmem:[%s4771 + $0xac] sm:$0xf]
  %v4816 = vld [vmem:[%s4771 + $0xb0] sm:$0xf]
  %v4817 = vld [vmem:[%s4771 + $0xb4] sm:$0xf]
  %v4818 = vld [vmem:[%s4771 + $0xb8] sm:$0xf]
  %v4819 = vld [vmem:[%s4771 + $0xbc] sm:$0xf]
  %v4948 = vunpack.c.l.b16 %v4643
  %v4949 = vunpack.c.h.b16 %v4643
  %v4950 = vunpack.c.l.b16 %v4644
  %v4951 = vunpack.c.l.b16 %v4645
  %v4952 = vunpack.c.h.b16 %v4645
  %v4953 = vunpack.c.l.b16 %v4646
  %v4954 = vunpack.c.l.b16 %v4647
  %v4955 = vunpack.c.h.b16 %v4647
  %v4956 = vunpack.c.l.b16 %v4648
  %v4957 = vunpack.c.l.b16 %v4649
  %v4958 = vunpack.c.h.b16 %v4649
  %v4959 = vunpack.c.l.b16 %v4650
  %v4960 = vunpack.c.l.b16 %v4651
  %v4961 = vunpack.c.h.b16 %v4651
  %v4962 = vunpack.c.l.b16 %v4652
  %v4963 = vunpack.c.l.b16 %v4653
  %v4964 = vunpack.c.h.b16 %v4653
  %v4965 = vunpack.c.l.b16 %v4654
  %v4966 = vunpack.c.l.b16 %v4655
  %v4967 = vunpack.c.h.b16 %v4655
  %v4968 = vunpack.c.l.b16 %v4656
  %v4969 = vunpack.c.l.b16 %v4657
  %v4970 = vunpack.c.h.b16 %v4657
  %v4971 = vunpack.c.l.b16 %v4658
  %v4972 = vunpack.c.l.b16 %v4659
  %v4973 = vunpack.c.h.b16 %v4659
  %v4974 = vunpack.c.l.b16 %v4660
  %v4975 = vunpack.c.l.b16 %v4661
  %v4976 = vunpack.c.h.b16 %v4661
  %v4977 = vunpack.c.l.b16 %v4662
  %v4978 = vunpack.c.l.b16 %v4663
  %v4979 = vunpack.c.h.b16 %v4663
  %v4980 = vunpack.c.l.b16 %v4664
  %v4981 = vunpack.c.l.b16 %v4665
  %v4982 = vunpack.c.h.b16 %v4665
  %v4983 = vunpack.c.l.b16 %v4666
  %v4984 = vunpack.c.l.b16 %v4667
  %v4985 = vunpack.c.h.b16 %v4667
  %v4986 = vunpack.c.l.b16 %v4668
  %v4987 = vunpack.c.l.b16 %v4669
  %v4988 = vunpack.c.h.b16 %v4669
  %v4989 = vunpack.c.l.b16 %v4670
  %v4990 = vunpack.c.l.b16 %v4671
  %v4991 = vunpack.c.h.b16 %v4671
  %v4992 = vunpack.c.l.b16 %v4672
  %v4993 = vunpack.c.l.b16 %v4673
  %v4994 = vunpack.c.h.b16 %v4673
  %v4995 = vunpack.c.l.b16 %v4674
  %v4996 = vunpack.c.l.b16 %v4675
  %v4997 = vunpack.c.h.b16 %v4675
  %v4998 = vunpack.c.l.b16 %v4676
  %v4999 = vunpack.c.l.b16 %v4677
  %v5000 = vunpack.c.h.b16 %v4677
  %v5001 = vunpack.c.l.b16 %v4678
  %v5002 = vunpack.c.l.b16 %v4679
  %v5003 = vunpack.c.h.b16 %v4679
  %v5004 = vunpack.c.l.b16 %v4680
  %v5005 = vunpack.c.l.b16 %v4681
  %v5006 = vunpack.c.h.b16 %v4681
  %v5007 = vunpack.c.l.b16 %v4682
  %v5008 = vunpack.c.l.b16 %v4683
  %v5009 = vunpack.c.h.b16 %v4683
  %v5010 = vunpack.c.l.b16 %v4684
  %v5011 = vunpack.c.l.b16 %v4685
  %v5012 = vunpack.c.h.b16 %v4685
  %v5013 = vunpack.c.l.b16 %v4686
  %v5014 = vunpack.c.l.b16 %v4687
  %v5015 = vunpack.c.h.b16 %v4687
  %v5016 = vunpack.c.l.b16 %v4688
  %v5017 = vunpack.c.l.b16 %v4689
  %v5018 = vunpack.c.h.b16 %v4689
  %v5019 = vunpack.c.l.b16 %v4690
  %v5020 = vunpack.c.l.b16 %v4691
  %v5021 = vunpack.c.h.b16 %v4691
  %v5022 = vunpack.c.l.b16 %v4692
  %v5023 = vunpack.c.l.b16 %v4693
  %v5024 = vunpack.c.h.b16 %v4693
  %v5025 = vunpack.c.l.b16 %v4694
  %v5026 = vunpack.c.l.b16 %v4695
  %v5027 = vunpack.c.h.b16 %v4695
  %v5028 = vunpack.c.l.b16 %v4696
  %v5029 = vunpack.c.l.b16 %v4697
  %v5030 = vunpack.c.h.b16 %v4697
  %v5031 = vunpack.c.l.b16 %v4698
  %v5032 = vunpack.c.l.b16 %v4699
  %v5033 = vunpack.c.h.b16 %v4699
  %v5034 = vunpack.c.l.b16 %v4700
  %v5035 = vunpack.c.l.b16 %v4701
  %v5036 = vunpack.c.h.b16 %v4701
  %v5037 = vunpack.c.l.b16 %v4702
  %v5038 = vunpack.c.l.b16 %v4703
  %v5039 = vunpack.c.h.b16 %v4703
  %v5040 = vunpack.c.l.b16 %v4704
  %v5041 = vunpack.c.l.b16 %v4705
  %v5042 = vunpack.c.h.b16 %v4705
  %v5043 = vunpack.c.l.b16 %v4706
  %v5044 = vunpack.c.l.b16 %v4707
  %v5045 = vunpack.c.h.b16 %v4707
  %v5046 = vunpack.c.l.b16 %v4708
  %v5047 = vunpack.c.l.b16 %v4709
  %v5048 = vunpack.c.h.b16 %v4709
  %v5049 = vunpack.c.l.b16 %v4710
  %v5050 = vunpack.c.l.b16 %v4711
  %v5051 = vunpack.c.h.b16 %v4711
  %v5052 = vunpack.c.l.b16 %v4712
  %v5053 = vunpack.c.l.b16 %v4713
  %v5054 = vunpack.c.h.b16 %v4713
  %v5055 = vunpack.c.l.b16 %v4714
  %v5056 = vunpack.c.l.b16 %v4715
  %v5057 = vunpack.c.h.b16 %v4715
  %v5058 = vunpack.c.l.b16 %v4716
  %v5059 = vunpack.c.l.b16 %v4717
  %v5060 = vunpack.c.h.b16 %v4717
  %v5061 = vunpack.c.l.b16 %v4718
  %v5062 = vunpack.c.l.b16 %v4719
  %v5063 = vunpack.c.h.b16 %v4719
  %v5064 = vunpack.c.l.b16 %v4720
  %v5065 = vunpack.c.l.b16 %v4721
  %v5066 = vunpack.c.h.b16 %v4721
  %v5067 = vunpack.c.l.b16 %v4722
  %v5068 = vunpack.c.l.b16 %v4723
  %v5069 = vunpack.c.h.b16 %v4723
  %v5070 = vunpack.c.l.b16 %v4724
  %v5071 = vunpack.c.l.b16 %v4725
  %v5072 = vunpack.c.h.b16 %v4725
  %v5073 = vunpack.c.l.b16 %v4726
  %v5074 = vunpack.c.l.b16 %v4727
  %v5075 = vunpack.c.h.b16 %v4727
  %v5076 = vunpack.c.l.b16 %v4728
  %v5077 = vunpack.c.l.b16 %v4729
  %v5078 = vunpack.c.h.b16 %v4729
  %v5079 = vunpack.c.l.b16 %v4730
  %v5080 = vunpack.c.l.b16 %v4731
  %v5081 = vunpack.c.h.b16 %v4731
  %v5082 = vunpack.c.l.b16 %v4732
  %v5083 = vunpack.c.l.b16 %v4733
  %v5084 = vunpack.c.h.b16 %v4733
  %v5085 = vunpack.c.l.b16 %v4734
  %v5086 = vunpack.c.l.b16 %v4735
  %v5087 = vunpack.c.h.b16 %v4735
  %v5088 = vunpack.c.l.b16 %v4736
  %v5089 = vunpack.c.l.b16 %v4737
  %v5090 = vunpack.c.h.b16 %v4737
  %v5091 = vunpack.c.l.b16 %v4738
  %v5092 = vunpack.c.l.b16 %v4739
  %v5093 = vunpack.c.h.b16 %v4739
  %v5094 = vunpack.c.l.b16 %v4740
  %v5095 = vunpack.c.l.b16 %v4741
  %v5096 = vunpack.c.h.b16 %v4741
  %v5097 = vunpack.c.l.b16 %v4742
  %v5098 = vunpack.c.l.b16 %v4743
  %v5099 = vunpack.c.h.b16 %v4743
  %v5100 = vunpack.c.l.b16 %v4744
  %v5101 = vunpack.c.l.b16 %v4745
  %v5102 = vunpack.c.h.b16 %v4745
  %v5103 = vunpack.c.l.b16 %v4746
  %v5104 = vunpack.c.l.b16 %v4747
  %v5105 = vunpack.c.h.b16 %v4747
  %v5106 = vunpack.c.l.b16 %v4748
  %v5107 = vunpack.c.l.b16 %v4749
  %v5108 = vunpack.c.h.b16 %v4749
  %v5109 = vunpack.c.l.b16 %v4750
  %v5110 = vunpack.c.l.b16 %v4751
  %v5111 = vunpack.c.h.b16 %v4751
  %v5112 = vunpack.c.l.b16 %v4752
  %v5113 = vunpack.c.l.b16 %v4753
  %v5114 = vunpack.c.h.b16 %v4753
  %v5115 = vunpack.c.l.b16 %v4754
  %v5116 = vunpack.c.l.b16 %v4755
  %v5117 = vunpack.c.h.b16 %v4755
  %v5118 = vunpack.c.l.b16 %v4756
  %v5119 = vunpack.c.l.b16 %v4757
  %v5120 = vunpack.c.h.b16 %v4757
  %v5121 = vunpack.c.l.b16 %v4758
  %v5122 = vunpack.c.l.b16 %v4759
  %v5123 = vunpack.c.h.b16 %v4759
  %v5124 = vunpack.c.l.b16 %v4760
  %v5125 = vunpack.c.l.b16 %v4761
  %v5126 = vunpack.c.h.b16 %v4761
  %v5127 = vunpack.c.l.b16 %v4762
  %v5128 = vunpack.c.l.b16 %v4763
  %v5129 = vunpack.c.h.b16 %v4763
  %v5130 = vunpack.c.l.b16 %v4764
  %v5131 = vunpack.c.l.b16 %v4765
  %v5132 = vunpack.c.h.b16 %v4765
  %v5133 = vunpack.c.l.b16 %v4766
  %v5134 = vunpack.c.l.b16 %v4767
  %v5135 = vunpack.c.h.b16 %v4767
  %v5136 = vunpack.c.l.b16 %v4768
  %v5137 = vunpack.c.l.b16 %v4769
  %v5138 = vunpack.c.h.b16 %v4769
  %v5139 = vunpack.c.l.b16 %v4770
  %v5140 = vpack.c.b16 %v4951, %v4948
  %v5141 = vpack.c.b16 %v4952, %v4949
  %v5142 = vpack.c.b16 %v4953, %v4950
  %v5143 = vpack.c.b16 %v4957, %v4954
  %v5144 = vpack.c.b16 %v4958, %v4955
  %v5145 = vpack.c.b16 %v4959, %v4956
  %v5146 = vpack.c.b16 %v4963, %v4960
  %v5147 = vpack.c.b16 %v4964, %v4961
  %v5148 = vpack.c.b16 %v4965, %v4962
  %v5149 = vpack.c.b16 %v4969, %v4966
  %v5150 = vpack.c.b16 %v4970, %v4967
  %v5151 = vpack.c.b16 %v4971, %v4968
  %v5152 = vpack.c.b16 %v4975, %v4972
  %v5153 = vpack.c.b16 %v4976, %v4973
  %v5154 = vpack.c.b16 %v4977, %v4974
  %v5155 = vpack.c.b16 %v4981, %v4978
  %v5156 = vpack.c.b16 %v4982, %v4979
  %v5157 = vpack.c.b16 %v4983, %v4980
  %v5158 = vpack.c.b16 %v4987, %v4984
  %v5159 = vpack.c.b16 %v4988, %v4985
  %v5160 = vpack.c.b16 %v4989, %v4986
  %v5161 = vpack.c.b16 %v4993, %v4990
  %v5162 = vpack.c.b16 %v4994, %v4991
  %v5163 = vpack.c.b16 %v4995, %v4992
  %v5164 = vpack.c.b16 %v4999, %v4996
  %v5165 = vpack.c.b16 %v5000, %v4997
  %v5166 = vpack.c.b16 %v5001, %v4998
  %v5167 = vpack.c.b16 %v5005, %v5002
  %v5168 = vpack.c.b16 %v5006, %v5003
  %v5169 = vpack.c.b16 %v5007, %v5004
  %v5170 = vpack.c.b16 %v5011, %v5008
  %v5171 = vpack.c.b16 %v5012, %v5009
  %v5172 = vpack.c.b16 %v5013, %v5010
  %v5173 = vpack.c.b16 %v5017, %v5014
  %v5174 = vpack.c.b16 %v5018, %v5015
  %v5175 = vpack.c.b16 %v5019, %v5016
  %v5176 = vpack.c.b16 %v5023, %v5020
  %v5177 = vpack.c.b16 %v5024, %v5021
  %v5178 = vpack.c.b16 %v5025, %v5022
  %v5179 = vpack.c.b16 %v5029, %v5026
  %v5180 = vpack.c.b16 %v5030, %v5027
  %v5181 = vpack.c.b16 %v5031, %v5028
  %v5182 = vpack.c.b16 %v5035, %v5032
  %v5183 = vpack.c.b16 %v5036, %v5033
  %v5184 = vpack.c.b16 %v5037, %v5034
  %v5185 = vpack.c.b16 %v5041, %v5038
  %v5186 = vpack.c.b16 %v5042, %v5039
  %v5187 = vpack.c.b16 %v5043, %v5040
  %v5188 = vpack.c.b16 %v5047, %v5044
  %v5189 = vpack.c.b16 %v5048, %v5045
  %v5190 = vpack.c.b16 %v5049, %v5046
  %v5191 = vpack.c.b16 %v5053, %v5050
  %v5192 = vpack.c.b16 %v5054, %v5051
  %v5193 = vpack.c.b16 %v5055, %v5052
  %v5194 = vpack.c.b16 %v5059, %v5056
  %v5195 = vpack.c.b16 %v5060, %v5057
  %v5196 = vpack.c.b16 %v5061, %v5058
  %v5197 = vpack.c.b16 %v5065, %v5062
  %v5198 = vpack.c.b16 %v5066, %v5063
  %v5199 = vpack.c.b16 %v5067, %v5064
  %v5200 = vpack.c.b16 %v5071, %v5068
  %v5201 = vpack.c.b16 %v5072, %v5069
  %v5202 = vpack.c.b16 %v5073, %v5070
  %v5203 = vpack.c.b16 %v5077, %v5074
  %v5204 = vpack.c.b16 %v5078, %v5075
  %v5205 = vpack.c.b16 %v5079, %v5076
  %v5206 = vpack.c.b16 %v5083, %v5080
  %v5207 = vpack.c.b16 %v5084, %v5081
  %v5208 = vpack.c.b16 %v5085, %v5082
  %v5209 = vpack.c.b16 %v5089, %v5086
  %v5210 = vpack.c.b16 %v5090, %v5087
  %v5211 = vpack.c.b16 %v5091, %v5088
  %v5212 = vpack.c.b16 %v5095, %v5092
  %v5213 = vpack.c.b16 %v5096, %v5093
  %v5214 = vpack.c.b16 %v5097, %v5094
  %v5215 = vpack.c.b16 %v5101, %v5098
  %v5216 = vpack.c.b16 %v5102, %v5099
  %v5217 = vpack.c.b16 %v5103, %v5100
  %v5218 = vpack.c.b16 %v5107, %v5104
  %v5219 = vpack.c.b16 %v5108, %v5105
  %v5220 = vpack.c.b16 %v5109, %v5106
  %v5221 = vpack.c.b16 %v5113, %v5110
  %v5222 = vpack.c.b16 %v5114, %v5111
  %v5223 = vpack.c.b16 %v5115, %v5112
  %v5224 = vpack.c.b16 %v5119, %v5116
  %v5225 = vpack.c.b16 %v5120, %v5117
  %v5226 = vpack.c.b16 %v5121, %v5118
  %v5227 = vpack.c.b16 %v5125, %v5122
  %v5228 = vpack.c.b16 %v5126, %v5123
  %v5229 = vpack.c.b16 %v5127, %v5124
  %v5230 = vpack.c.b16 %v5131, %v5128
  %v5231 = vpack.c.b16 %v5132, %v5129
  %v5232 = vpack.c.b16 %v5133, %v5130
  %v5233 = vpack.c.b16 %v5137, %v5134
  %v5234 = vpack.c.b16 %v5138, %v5135
  %v5235 = vpack.c.b16 %v5139, %v5136
  %v5380 = vunpack.c.l.b16 %v4772
  %v5381 = vunpack.c.l.b16 %v4773
  %v5382 = vunpack.c.l.b16 %v4774
  %v5383 = vunpack.c.l.b16 %v4775
  %v5384 = vunpack.c.l.b16 %v4776
  %v5385 = vunpack.c.l.b16 %v4777
  %v5386 = vunpack.c.l.b16 %v4778
  %v5387 = vunpack.c.l.b16 %v4779
  %v5388 = vunpack.c.l.b16 %v4780
  %v5389 = vunpack.c.l.b16 %v4781
  %v5390 = vunpack.c.l.b16 %v4782
  %v5391 = vunpack.c.l.b16 %v4783
  %v5392 = vunpack.c.l.b16 %v4784
  %v5393 = vunpack.c.l.b16 %v4785
  %v5394 = vunpack.c.l.b16 %v4786
  %v5395 = vunpack.c.l.b16 %v4787
  %v5396 = vunpack.c.l.b16 %v4788
  %v5397 = vunpack.c.l.b16 %v4789
  %v5398 = vunpack.c.l.b16 %v4790
  %v5399 = vunpack.c.l.b16 %v4791
  %v5400 = vunpack.c.l.b16 %v4792
  %v5401 = vunpack.c.l.b16 %v4793
  %v5402 = vunpack.c.l.b16 %v4794
  %v5403 = vunpack.c.l.b16 %v4795
  %v5404 = vunpack.c.l.b16 %v4796
  %v5405 = vunpack.c.l.b16 %v4797
  %v5406 = vunpack.c.l.b16 %v4798
  %v5407 = vunpack.c.l.b16 %v4799
  %v5408 = vunpack.c.l.b16 %v4800
  %v5409 = vunpack.c.l.b16 %v4801
  %v5410 = vunpack.c.l.b16 %v4802
  %v5411 = vunpack.c.l.b16 %v4803
  %v5412 = vunpack.c.l.b16 %v4804
  %v5413 = vunpack.c.l.b16 %v4805
  %v5414 = vunpack.c.l.b16 %v4806
  %v5415 = vunpack.c.l.b16 %v4807
  %v5416 = vunpack.c.l.b16 %v4808
  %v5417 = vunpack.c.l.b16 %v4809
  %v5418 = vunpack.c.l.b16 %v4810
  %v5419 = vunpack.c.l.b16 %v4811
  %v5420 = vunpack.c.l.b16 %v4812
  %v5421 = vunpack.c.l.b16 %v4813
  %v5422 = vunpack.c.l.b16 %v4814
  %v5423 = vunpack.c.l.b16 %v4815
  %v5424 = vunpack.c.l.b16 %v4816
  %v5425 = vunpack.c.l.b16 %v4817
  %v5426 = vunpack.c.l.b16 %v4818
  %v5427 = vunpack.c.l.b16 %v4819
  %v5428 = vpack.c.b16 %v5381, %v5380
  %v5429 = vpack.c.b16 %v5383, %v5382
  %v5430 = vpack.c.b16 %v5385, %v5384
  %v5431 = vpack.c.b16 %v5387, %v5386
  %v5432 = vpack.c.b16 %v5389, %v5388
  %v5433 = vpack.c.b16 %v5391, %v5390
  %v5434 = vpack.c.b16 %v5393, %v5392
  %v5435 = vpack.c.b16 %v5395, %v5394
  %v5436 = vpack.c.b16 %v5397, %v5396
  %v5437 = vpack.c.b16 %v5399, %v5398
  %v5438 = vpack.c.b16 %v5401, %v5400
  %v5439 = vpack.c.b16 %v5403, %v5402
  %v5440 = vpack.c.b16 %v5405, %v5404
  %v5441 = vpack.c.b16 %v5407, %v5406
  %v5442 = vpack.c.b16 %v5409, %v5408
  %v5443 = vpack.c.b16 %v5411, %v5410
  %v5444 = vpack.c.b16 %v5413, %v5412
  %v5445 = vpack.c.b16 %v5415, %v5414
  %v5446 = vpack.c.b16 %v5417, %v5416
  %v5447 = vpack.c.b16 %v5419, %v5418
  %v5448 = vpack.c.b16 %v5421, %v5420
  %v5449 = vpack.c.b16 %v5423, %v5422
  %v5450 = vpack.c.b16 %v5425, %v5424
  %v5451 = vpack.c.b16 %v5427, %v5426
  %5476 = vmatprep.subr.bf16.mxu0 0
  %5477 = vmatpush1.bf16.msra.mxu0 %v5435
  %5478 = vmatprep.subr.bf16.mxu0 0
  %5479 = vmatpush1.bf16.msra.mxu0 %v5434
  %5480 = vmatprep.subr.bf16.mxu0 0
  %5481 = vmatpush1.bf16.msra.mxu0 %v5433
  %5482 = vmatprep.subr.bf16.mxu0 0
  %5483 = vmatpush1.bf16.msra.mxu0 %v5432
  %5484 = vmatprep.subr.bf16.mxu0 0
  %5485 = vmatpush1.bf16.msra.mxu0 %v5431
  %5486 = vmatprep.subr.bf16.mxu0 0
  %5487 = vmatpush1.bf16.msra.mxu0 %v5430
  %5488 = vmatprep.subr.bf16.mxu0 0
  %5489 = vmatpush1.bf16.msra.mxu0 %v5429
  %5490 = vmatprep.subr.bf16.mxu0 0
  %5491 = vmatpush1.bf16.msra.mxu0 %v5428
  %5492 = vmatprep.subr.bf16.mxu0 0
  %5493 = vmatpush2.bf16.msra.mxu0 %v5443
  %5494 = vmatprep.subr.bf16.mxu0 0
  %5495 = vmatpush2.bf16.msra.mxu0 %v5442
  %5496 = vmatprep.subr.bf16.mxu0 0
  %5497 = vmatpush2.bf16.msra.mxu0 %v5441
  %5498 = vmatprep.subr.bf16.mxu0 0
  %5499 = vmatpush2.bf16.msra.mxu0 %v5440
  %5500 = vmatprep.subr.bf16.mxu0 0
  %5501 = vmatpush2.bf16.msra.mxu0 %v5439
  %5502 = vmatprep.subr.bf16.mxu0 0
  %5503 = vmatpush2.bf16.msra.mxu0 %v5438
  %5504 = vmatprep.subr.bf16.mxu0 0
  %5505 = vmatpush2.bf16.msra.mxu0 %v5437
  %5506 = vmatprep.subr.bf16.mxu0 0
  %5507 = vmatpush2.bf16.msra.mxu0 %v5436
  %5508 = vmatprep.mubr.bf16.mxu0 %v5141
  %5509 = vmatmul.mubr.bf16.gmra.mxu0 %v5140
  %v5510 = vpop.f32.mrf.mxu0
  %v5511 = vadd.f32 0.0, %v5510
  %v5512 = vpop.f32.mrf.mxu0
  %v5513 = vpop.f32.mrf.mxu0
  %v5514 = vadd.f32 0.0, %v5513
  %v5515 = vpop.f32.mrf.mxu0
  %5516 = vmatprep.mubr.bf16.mxu0 %v5144
  %5517 = vmatmul.mubr.bf16.gmra.mxu0 %v5143
  %v5518 = vpop.f32.mrf.mxu0
  %v5519 = vadd.f32 0.0, %v5518
  %v5520 = vpop.f32.mrf.mxu0
  %v5521 = vpop.f32.mrf.mxu0
  %v5522 = vadd.f32 0.0, %v5521
  %v5523 = vpop.f32.mrf.mxu0
  %5524 = vmatprep.mubr.bf16.mxu0 %v5147
  %5525 = vmatmul.mubr.bf16.gmra.mxu0 %v5146
  %v5526 = vpop.f32.mrf.mxu0
  %v5527 = vadd.f32 0.0, %v5526
  %v5528 = vpop.f32.mrf.mxu0
  %v5529 = vpop.f32.mrf.mxu0
  %v5530 = vadd.f32 0.0, %v5529
  %v5531 = vpop.f32.mrf.mxu0
  %5532 = vmatprep.mubr.bf16.mxu0 %v5150
  %5533 = vmatmul.mubr.bf16.gmra.mxu0 %v5149
  %v5534 = vpop.f32.mrf.mxu0
  %v5535 = vadd.f32 0.0, %v5534
  %v5536 = vpop.f32.mrf.mxu0
  %v5537 = vpop.f32.mrf.mxu0
  %v5538 = vadd.f32 0.0, %v5537
  %v5539 = vpop.f32.mrf.mxu0
  %5540 = vmatprep.mubr.bf16.mxu0 %v5153
  %5541 = vmatmul.mubr.bf16.gmra.mxu0 %v5152
  %v5542 = vpop.f32.mrf.mxu0
  %v5543 = vadd.f32 0.0, %v5542
  %v5544 = vpop.f32.mrf.mxu0
  %v5545 = vpop.f32.mrf.mxu0
  %v5546 = vadd.f32 0.0, %v5545
  %v5547 = vpop.f32.mrf.mxu0
  %5548 = vmatprep.mubr.bf16.mxu0 %v5156
  %5549 = vmatmul.mubr.bf16.gmra.mxu0 %v5155
  %v5550 = vpop.f32.mrf.mxu0
  %v5551 = vadd.f32 0.0, %v5550
  %v5552 = vpop.f32.mrf.mxu0
  %v5553 = vpop.f32.mrf.mxu0
  %v5554 = vadd.f32 0.0, %v5553
  %v5555 = vpop.f32.mrf.mxu0
  %5556 = vmatprep.mubr.bf16.mxu0 %v5159
  %5557 = vmatmul.mubr.bf16.gmra.mxu0 %v5158
  %v5558 = vpop.f32.mrf.mxu0
  %v5559 = vadd.f32 0.0, %v5558
  %v5560 = vpop.f32.mrf.mxu0
  %v5561 = vpop.f32.mrf.mxu0
  %v5562 = vadd.f32 0.0, %v5561
  %v5563 = vpop.f32.mrf.mxu0
  %5564 = vmatprep.mubr.bf16.mxu0 %v5162
  %5565 = vmatmul.mubr.bf16.gmra.mxu0 %v5161
  %v5566 = vpop.f32.mrf.mxu0
  %v5567 = vadd.f32 0.0, %v5566
  %v5568 = vpop.f32.mrf.mxu0
  %v5569 = vpop.f32.mrf.mxu0
  %v5570 = vadd.f32 0.0, %v5569
  %v5571 = vpop.f32.mrf.mxu0
  %5572 = vmatprep.mubr.bf16.mxu0 %v5165
  %5573 = vmatmul.mubr.bf16.gmra.mxu0 %v5164
  %v5574 = vpop.f32.mrf.mxu0
  %v5575 = vadd.f32 0.0, %v5574
  %v5576 = vpop.f32.mrf.mxu0
  %v5577 = vpop.f32.mrf.mxu0
  %v5578 = vadd.f32 0.0, %v5577
  %v5579 = vpop.f32.mrf.mxu0
  %5580 = vmatprep.mubr.bf16.mxu0 %v5168
  %5581 = vmatmul.mubr.bf16.gmra.mxu0 %v5167
  %v5582 = vpop.f32.mrf.mxu0
  %v5583 = vadd.f32 0.0, %v5582
  %v5584 = vpop.f32.mrf.mxu0
  %v5585 = vpop.f32.mrf.mxu0
  %v5586 = vadd.f32 0.0, %v5585
  %v5587 = vpop.f32.mrf.mxu0
  %5588 = vmatprep.mubr.bf16.mxu0 %v5171
  %5589 = vmatmul.mubr.bf16.gmra.mxu0 %v5170
  %v5590 = vpop.f32.mrf.mxu0
  %v5591 = vadd.f32 0.0, %v5590
  %v5592 = vpop.f32.mrf.mxu0
  %v5593 = vpop.f32.mrf.mxu0
  %v5594 = vadd.f32 0.0, %v5593
  %v5595 = vpop.f32.mrf.mxu0
  %5596 = vmatprep.mubr.bf16.mxu0 %v5174
  %5597 = vmatmul.mubr.bf16.gmra.mxu0 %v5173
  %v5598 = vpop.f32.mrf.mxu0
  %v5599 = vadd.f32 0.0, %v5598
  %v5600 = vpop.f32.mrf.mxu0
  %v5601 = vpop.f32.mrf.mxu0
  %v5602 = vadd.f32 0.0, %v5601
  %v5603 = vpop.f32.mrf.mxu0
  %5604 = vmatprep.mubr.bf16.mxu0 %v5177
  %5605 = vmatmul.mubr.bf16.gmra.mxu0 %v5176
  %v5606 = vpop.f32.mrf.mxu0
  %v5607 = vadd.f32 0.0, %v5606
  %v5608 = vpop.f32.mrf.mxu0
  %v5609 = vpop.f32.mrf.mxu0
  %v5610 = vadd.f32 0.0, %v5609
  %v5611 = vpop.f32.mrf.mxu0
  %5612 = vmatprep.mubr.bf16.mxu0 %v5180
  %5613 = vmatmul.mubr.bf16.gmra.mxu0 %v5179
  %v5614 = vpop.f32.mrf.mxu0
  %v5615 = vadd.f32 0.0, %v5614
  %v5616 = vpop.f32.mrf.mxu0
  %v5617 = vpop.f32.mrf.mxu0
  %v5618 = vadd.f32 0.0, %v5617
  %v5619 = vpop.f32.mrf.mxu0
  %5620 = vmatprep.mubr.bf16.mxu0 %v5183
  %5621 = vmatmul.mubr.bf16.gmra.mxu0 %v5182
  %v5622 = vpop.f32.mrf.mxu0
  %v5623 = vadd.f32 0.0, %v5622
  %v5624 = vpop.f32.mrf.mxu0
  %v5625 = vpop.f32.mrf.mxu0
  %v5626 = vadd.f32 0.0, %v5625
  %v5627 = vpop.f32.mrf.mxu0
  %5628 = vmatprep.mubr.bf16.mxu0 %v5186
  %5629 = vmatmul.mubr.bf16.gmra.mxu0 %v5185
  %v5630 = vpop.f32.mrf.mxu0
  %v5631 = vadd.f32 0.0, %v5630
  %v5632 = vpop.f32.mrf.mxu0
  %v5633 = vpop.f32.mrf.mxu0
  %v5634 = vadd.f32 0.0, %v5633
  %v5635 = vpop.f32.mrf.mxu0
  %5636 = vmatprep.mubr.bf16.mxu0 %v5189
  %5637 = vmatmul.mubr.bf16.gmra.mxu0 %v5188
  %v5638 = vpop.f32.mrf.mxu0
  %v5639 = vadd.f32 0.0, %v5638
  %v5640 = vpop.f32.mrf.mxu0
  %v5641 = vpop.f32.mrf.mxu0
  %v5642 = vadd.f32 0.0, %v5641
  %v5643 = vpop.f32.mrf.mxu0
  %5644 = vmatprep.mubr.bf16.mxu0 %v5192
  %5645 = vmatmul.mubr.bf16.gmra.mxu0 %v5191
  %v5646 = vpop.f32.mrf.mxu0
  %v5647 = vadd.f32 0.0, %v5646
  %v5648 = vpop.f32.mrf.mxu0
  %v5649 = vpop.f32.mrf.mxu0
  %v5650 = vadd.f32 0.0, %v5649
  %v5651 = vpop.f32.mrf.mxu0
  %5652 = vmatprep.mubr.bf16.mxu0 %v5195
  %5653 = vmatmul.mubr.bf16.gmra.mxu0 %v5194
  %v5654 = vpop.f32.mrf.mxu0
  %v5655 = vadd.f32 0.0, %v5654
  %v5656 = vpop.f32.mrf.mxu0
  %v5657 = vpop.f32.mrf.mxu0
  %v5658 = vadd.f32 0.0, %v5657
  %v5659 = vpop.f32.mrf.mxu0
  %5660 = vmatprep.mubr.bf16.mxu0 %v5198
  %5661 = vmatmul.mubr.bf16.gmra.mxu0 %v5197
  %v5662 = vpop.f32.mrf.mxu0
  %v5663 = vadd.f32 0.0, %v5662
  %v5664 = vpop.f32.mrf.mxu0
  %v5665 = vpop.f32.mrf.mxu0
  %v5666 = vadd.f32 0.0, %v5665
  %v5667 = vpop.f32.mrf.mxu0
  %5668 = vmatprep.mubr.bf16.mxu0 %v5201
  %5669 = vmatmul.mubr.bf16.gmra.mxu0 %v5200
  %v5670 = vpop.f32.mrf.mxu0
  %v5671 = vadd.f32 0.0, %v5670
  %v5672 = vpop.f32.mrf.mxu0
  %v5673 = vpop.f32.mrf.mxu0
  %v5674 = vadd.f32 0.0, %v5673
  %v5675 = vpop.f32.mrf.mxu0
  %5676 = vmatprep.mubr.bf16.mxu0 %v5204
  %5677 = vmatmul.mubr.bf16.gmra.mxu0 %v5203
  %v5678 = vpop.f32.mrf.mxu0
  %v5679 = vadd.f32 0.0, %v5678
  %v5680 = vpop.f32.mrf.mxu0
  %v5681 = vpop.f32.mrf.mxu0
  %v5682 = vadd.f32 0.0, %v5681
  %v5683 = vpop.f32.mrf.mxu0
  %5684 = vmatprep.mubr.bf16.mxu0 %v5207
  %5685 = vmatmul.mubr.bf16.gmra.mxu0 %v5206
  %v5686 = vpop.f32.mrf.mxu0
  %v5687 = vadd.f32 0.0, %v5686
  %v5688 = vpop.f32.mrf.mxu0
  %v5689 = vpop.f32.mrf.mxu0
  %v5690 = vadd.f32 0.0, %v5689
  %v5691 = vpop.f32.mrf.mxu0
  %5692 = vmatprep.mubr.bf16.mxu0 %v5210
  %5693 = vmatmul.mubr.bf16.gmra.mxu0 %v5209
  %v5694 = vpop.f32.mrf.mxu0
  %v5695 = vadd.f32 0.0, %v5694
  %v5696 = vpop.f32.mrf.mxu0
  %v5697 = vpop.f32.mrf.mxu0
  %v5698 = vadd.f32 0.0, %v5697
  %v5699 = vpop.f32.mrf.mxu0
  %5700 = vmatprep.mubr.bf16.mxu0 %v5213
  %5701 = vmatmul.mubr.bf16.gmra.mxu0 %v5212
  %v5702 = vpop.f32.mrf.mxu0
  %v5703 = vadd.f32 0.0, %v5702
  %v5704 = vpop.f32.mrf.mxu0
  %v5705 = vpop.f32.mrf.mxu0
  %v5706 = vadd.f32 0.0, %v5705
  %v5707 = vpop.f32.mrf.mxu0
  %5708 = vmatprep.mubr.bf16.mxu0 %v5216
  %5709 = vmatmul.mubr.bf16.gmra.mxu0 %v5215
  %v5710 = vpop.f32.mrf.mxu0
  %v5711 = vadd.f32 0.0, %v5710
  %v5712 = vpop.f32.mrf.mxu0
  %v5713 = vpop.f32.mrf.mxu0
  %v5714 = vadd.f32 0.0, %v5713
  %v5715 = vpop.f32.mrf.mxu0
  %5716 = vmatprep.mubr.bf16.mxu0 %v5219
  %5717 = vmatmul.mubr.bf16.gmra.mxu0 %v5218
  %v5718 = vpop.f32.mrf.mxu0
  %v5719 = vadd.f32 0.0, %v5718
  %v5720 = vpop.f32.mrf.mxu0
  %v5721 = vpop.f32.mrf.mxu0
  %v5722 = vadd.f32 0.0, %v5721
  %v5723 = vpop.f32.mrf.mxu0
  %5724 = vmatprep.mubr.bf16.mxu0 %v5222
  %5725 = vmatmul.mubr.bf16.gmra.mxu0 %v5221
  %v5726 = vpop.f32.mrf.mxu0
  %v5727 = vadd.f32 0.0, %v5726
  %v5728 = vpop.f32.mrf.mxu0
  %v5729 = vpop.f32.mrf.mxu0
  %v5730 = vadd.f32 0.0, %v5729
  %v5731 = vpop.f32.mrf.mxu0
  %5732 = vmatprep.mubr.bf16.mxu0 %v5225
  %5733 = vmatmul.mubr.bf16.gmra.mxu0 %v5224
  %v5734 = vpop.f32.mrf.mxu0
  %v5735 = vadd.f32 0.0, %v5734
  %v5736 = vpop.f32.mrf.mxu0
  %v5737 = vpop.f32.mrf.mxu0
  %v5738 = vadd.f32 0.0, %v5737
  %v5739 = vpop.f32.mrf.mxu0
  %5740 = vmatprep.mubr.bf16.mxu0 %v5228
  %5741 = vmatmul.mubr.bf16.gmra.mxu0 %v5227
  %v5742 = vpop.f32.mrf.mxu0
  %v5743 = vadd.f32 0.0, %v5742
  %v5744 = vpop.f32.mrf.mxu0
  %v5745 = vpop.f32.mrf.mxu0
  %v5746 = vadd.f32 0.0, %v5745
  %v5747 = vpop.f32.mrf.mxu0
  %5748 = vmatprep.mubr.bf16.mxu0 %v5231
  %5749 = vmatmul.mubr.bf16.gmra.mxu0 %v5230
  %v5750 = vpop.f32.mrf.mxu0
  %v5751 = vadd.f32 0.0, %v5750
  %v5752 = vpop.f32.mrf.mxu0
  %v5753 = vpop.f32.mrf.mxu0
  %v5754 = vadd.f32 0.0, %v5753
  %v5755 = vpop.f32.mrf.mxu0
  %5756 = vmatprep.mubr.bf16.mxu0 %v5234
  %5757 = vmatmul.mubr.bf16.gmra.mxu0 %v5233
  %v5758 = vpop.f32.mrf.mxu0
  %v5759 = vadd.f32 0.0, %v5758
  %v5760 = vpop.f32.mrf.mxu0
  %v5761 = vpop.f32.mrf.mxu0
  %v5762 = vadd.f32 0.0, %v5761
  %v5763 = vpop.f32.mrf.mxu0
  %5764 = vdwg.mxu0
  %5765 = vmatprep.subr.bf16.mxu0 0
  %5766 = vmatpush1.bf16.msra.mxu0 %v5451
  %5767 = vmatprep.subr.bf16.mxu0 0
  %5768 = vmatpush1.bf16.msra.mxu0 %v5450
  %5769 = vmatprep.subr.bf16.mxu0 0
  %5770 = vmatpush1.bf16.msra.mxu0 %v5449
  %5771 = vmatprep.subr.bf16.mxu0 0
  %5772 = vmatpush1.bf16.msra.mxu0 %v5448
  %5773 = vmatprep.subr.bf16.mxu0 0
  %5774 = vmatpush1.bf16.msra.mxu0 %v5447
  %5775 = vmatprep.subr.bf16.mxu0 0
  %5776 = vmatpush1.bf16.msra.mxu0 %v5446
  %5777 = vmatprep.subr.bf16.mxu0 0
  %5778 = vmatpush1.bf16.msra.mxu0 %v5445
  %5779 = vmatprep.subr.bf16.mxu0 0
  %5780 = vmatpush1.bf16.msra.mxu0 %v5444
  %5781 = vmatprep.subr.bf16.mxu0 0
  %5782 = vmatpush2.bf16.msra.mxu0 0
  %5783 = vmatprep.subr.bf16.mxu0 0
  %5784 = vmatpush2.bf16.msra.mxu0 0
  %5785 = vmatprep.subr.bf16.mxu0 0
  %5786 = vmatpush2.bf16.msra.mxu0 0
  %5787 = vmatprep.subr.bf16.mxu0 0
  %5788 = vmatpush2.bf16.msra.mxu0 0
  %5789 = vmatprep.subr.bf16.mxu0 0
  %5790 = vmatpush2.bf16.msra.mxu0 0
  %5791 = vmatprep.subr.bf16.mxu0 0
  %5792 = vmatpush2.bf16.msra.mxu0 0
  %5793 = vmatprep.subr.bf16.mxu0 0
  %5794 = vmatpush2.bf16.msra.mxu0 0
  %5795 = vmatprep.subr.bf16.mxu0 0
  %5796 = vmatpush2.bf16.msra.mxu0 0
  %5797 = vmatprep.mubr.bf16.mxu0 0
  %5798 = vmatmul.mubr.bf16.gmra.mxu0 %v5142
  %v5799 = vpop.f32.mrf.mxu0
  %v5800 = vadd.f32 %v5511, %v5799
  %v5801 = vpop.f32.mrf.mxu0
  %v5802 = vpop.f32.mrf.mxu0
  %v5803 = vadd.f32 %v5514, %v5802
  %v5804 = vpop.f32.mrf.mxu0
  %5805 = vmatprep.mubr.bf16.mxu0 0
  %5806 = vmatmul.mubr.bf16.gmra.mxu0 %v5145
  %v5807 = vpop.f32.mrf.mxu0
  %v5808 = vadd.f32 %v5519, %v5807
  %v5809 = vpop.f32.mrf.mxu0
  %v5810 = vpop.f32.mrf.mxu0
  %v5811 = vadd.f32 %v5522, %v5810
  %v5812 = vpop.f32.mrf.mxu0
  %5813 = vmatprep.mubr.bf16.mxu0 0
  %5814 = vmatmul.mubr.bf16.gmra.mxu0 %v5148
  %v5815 = vpop.f32.mrf.mxu0
  %v5816 = vadd.f32 %v5527, %v5815
  %v5817 = vpop.f32.mrf.mxu0
  %v5818 = vpop.f32.mrf.mxu0
  %v5819 = vadd.f32 %v5530, %v5818
  %v5820 = vpop.f32.mrf.mxu0
  %5821 = vmatprep.mubr.bf16.mxu0 0
  %5822 = vmatmul.mubr.bf16.gmra.mxu0 %v5151
  %v5823 = vpop.f32.mrf.mxu0
  %v5824 = vadd.f32 %v5535, %v5823
  %v5825 = vpop.f32.mrf.mxu0
  %v5826 = vpop.f32.mrf.mxu0
  %v5827 = vadd.f32 %v5538, %v5826
  %v5828 = vpop.f32.mrf.mxu0
  %5829 = vmatprep.mubr.bf16.mxu0 0
  %5830 = vmatmul.mubr.bf16.gmra.mxu0 %v5154
  %v5831 = vpop.f32.mrf.mxu0
  %v5832 = vadd.f32 %v5543, %v5831
  %v5833 = vpop.f32.mrf.mxu0
  %v5834 = vpop.f32.mrf.mxu0
  %v5835 = vadd.f32 %v5546, %v5834
  %v5836 = vpop.f32.mrf.mxu0
  %5837 = vmatprep.mubr.bf16.mxu0 0
  %5838 = vmatmul.mubr.bf16.gmra.mxu0 %v5157
  %v5839 = vpop.f32.mrf.mxu0
  %v5840 = vadd.f32 %v5551, %v5839
  %v5841 = vpop.f32.mrf.mxu0
  %v5842 = vpop.f32.mrf.mxu0
  %v5843 = vadd.f32 %v5554, %v5842
  %v5844 = vpop.f32.mrf.mxu0
  %5845 = vmatprep.mubr.bf16.mxu0 0
  %5846 = vmatmul.mubr.bf16.gmra.mxu0 %v5160
  %v5847 = vpop.f32.mrf.mxu0
  %v5848 = vadd.f32 %v5559, %v5847
  %v5849 = vpop.f32.mrf.mxu0
  %v5850 = vpop.f32.mrf.mxu0
  %v5851 = vadd.f32 %v5562, %v5850
  %v5852 = vpop.f32.mrf.mxu0
  %5853 = vmatprep.mubr.bf16.mxu0 0
  %5854 = vmatmul.mubr.bf16.gmra.mxu0 %v5163
  %v5855 = vpop.f32.mrf.mxu0
  %v5856 = vadd.f32 %v5567, %v5855
  %v5857 = vpop.f32.mrf.mxu0
  %v5858 = vpop.f32.mrf.mxu0
  %v5859 = vadd.f32 %v5570, %v5858
  %v5860 = vpop.f32.mrf.mxu0
  %5861 = vmatprep.mubr.bf16.mxu0 0
  %5862 = vmatmul.mubr.bf16.gmra.mxu0 %v5166
  %v5863 = vpop.f32.mrf.mxu0
  %v5864 = vadd.f32 %v5575, %v5863
  %v5865 = vpop.f32.mrf.mxu0
  %v5866 = vpop.f32.mrf.mxu0
  %v5867 = vadd.f32 %v5578, %v5866
  %v5868 = vpop.f32.mrf.mxu0
  %5869 = vmatprep.mubr.bf16.mxu0 0
  %5870 = vmatmul.mubr.bf16.gmra.mxu0 %v5169
  %v5871 = vpop.f32.mrf.mxu0
  %v5872 = vadd.f32 %v5583, %v5871
  %v5873 = vpop.f32.mrf.mxu0
  %v5874 = vpop.f32.mrf.mxu0
  %v5875 = vadd.f32 %v5586, %v5874
  %v5876 = vpop.f32.mrf.mxu0
  %5877 = vmatprep.mubr.bf16.mxu0 0
  %5878 = vmatmul.mubr.bf16.gmra.mxu0 %v5172
  %v5879 = vpop.f32.mrf.mxu0
  %v5880 = vadd.f32 %v5591, %v5879
  %v5881 = vpop.f32.mrf.mxu0
  %v5882 = vpop.f32.mrf.mxu0
  %v5883 = vadd.f32 %v5594, %v5882
  %v5884 = vpop.f32.mrf.mxu0
  %5885 = vmatprep.mubr.bf16.mxu0 0
  %5886 = vmatmul.mubr.bf16.gmra.mxu0 %v5175
  %v5887 = vpop.f32.mrf.mxu0
  %v5888 = vadd.f32 %v5599, %v5887
  %v5889 = vpop.f32.mrf.mxu0
  %v5890 = vpop.f32.mrf.mxu0
  %v5891 = vadd.f32 %v5602, %v5890
  %v5892 = vpop.f32.mrf.mxu0
  %5893 = vmatprep.mubr.bf16.mxu0 0
  %5894 = vmatmul.mubr.bf16.gmra.mxu0 %v5178
  %v5895 = vpop.f32.mrf.mxu0
  %v5896 = vadd.f32 %v5607, %v5895
  %v5897 = vpop.f32.mrf.mxu0
  %v5898 = vpop.f32.mrf.mxu0
  %v5899 = vadd.f32 %v5610, %v5898
  %v5900 = vpop.f32.mrf.mxu0
  %5901 = vmatprep.mubr.bf16.mxu0 0
  %5902 = vmatmul.mubr.bf16.gmra.mxu0 %v5181
  %v5903 = vpop.f32.mrf.mxu0
  %v5904 = vadd.f32 %v5615, %v5903
  %v5905 = vpop.f32.mrf.mxu0
  %v5906 = vpop.f32.mrf.mxu0
  %v5907 = vadd.f32 %v5618, %v5906
  %v5908 = vpop.f32.mrf.mxu0
  %5909 = vmatprep.mubr.bf16.mxu0 0
  %5910 = vmatmul.mubr.bf16.gmra.mxu0 %v5184
  %v5911 = vpop.f32.mrf.mxu0
  %v5912 = vadd.f32 %v5623, %v5911
  %v5913 = vpop.f32.mrf.mxu0
  %v5914 = vpop.f32.mrf.mxu0
  %v5915 = vadd.f32 %v5626, %v5914
  %v5916 = vpop.f32.mrf.mxu0
  %5917 = vmatprep.mubr.bf16.mxu0 0
  %5918 = vmatmul.mubr.bf16.gmra.mxu0 %v5187
  %v5919 = vpop.f32.mrf.mxu0
  %v5920 = vadd.f32 %v5631, %v5919
  %v5921 = vpop.f32.mrf.mxu0
  %v5922 = vpop.f32.mrf.mxu0
  %v5923 = vadd.f32 %v5634, %v5922
  %v5924 = vpop.f32.mrf.mxu0
  %5925 = vmatprep.mubr.bf16.mxu0 0
  %5926 = vmatmul.mubr.bf16.gmra.mxu0 %v5190
  %v5927 = vpop.f32.mrf.mxu0
  %v5928 = vadd.f32 %v5639, %v5927
  %v5929 = vpop.f32.mrf.mxu0
  %v5930 = vpop.f32.mrf.mxu0
  %v5931 = vadd.f32 %v5642, %v5930
  %v5932 = vpop.f32.mrf.mxu0
  %5933 = vmatprep.mubr.bf16.mxu0 0
  %5934 = vmatmul.mubr.bf16.gmra.mxu0 %v5193
  %v5935 = vpop.f32.mrf.mxu0
  %v5936 = vadd.f32 %v5647, %v5935
  %v5937 = vpop.f32.mrf.mxu0
  %v5938 = vpop.f32.mrf.mxu0
  %v5939 = vadd.f32 %v5650, %v5938
  %v5940 = vpop.f32.mrf.mxu0
  %5941 = vmatprep.mubr.bf16.mxu0 0
  %5942 = vmatmul.mubr.bf16.gmra.mxu0 %v5196
  %v5943 = vpop.f32.mrf.mxu0
  %v5944 = vadd.f32 %v5655, %v5943
  %v5945 = vpop.f32.mrf.mxu0
  %v5946 = vpop.f32.mrf.mxu0
  %v5947 = vadd.f32 %v5658, %v5946
  %v5948 = vpop.f32.mrf.mxu0
  %5949 = vmatprep.mubr.bf16.mxu0 0
  %5950 = vmatmul.mubr.bf16.gmra.mxu0 %v5199
  %v5951 = vpop.f32.mrf.mxu0
  %v5952 = vadd.f32 %v5663, %v5951
  %v5953 = vpop.f32.mrf.mxu0
  %v5954 = vpop.f32.mrf.mxu0
  %v5955 = vadd.f32 %v5666, %v5954
  %v5956 = vpop.f32.mrf.mxu0
  %5957 = vmatprep.mubr.bf16.mxu0 0
  %5958 = vmatmul.mubr.bf16.gmra.mxu0 %v5202
  %v5959 = vpop.f32.mrf.mxu0
  %v5960 = vadd.f32 %v5671, %v5959
  %v5961 = vpop.f32.mrf.mxu0
  %v5962 = vpop.f32.mrf.mxu0
  %v5963 = vadd.f32 %v5674, %v5962
  %v5964 = vpop.f32.mrf.mxu0
  %5965 = vmatprep.mubr.bf16.mxu0 0
  %5966 = vmatmul.mubr.bf16.gmra.mxu0 %v5205
  %v5967 = vpop.f32.mrf.mxu0
  %v5968 = vadd.f32 %v5679, %v5967
  %v5969 = vpop.f32.mrf.mxu0
  %v5970 = vpop.f32.mrf.mxu0
  %v5971 = vadd.f32 %v5682, %v5970
  %v5972 = vpop.f32.mrf.mxu0
  %5973 = vmatprep.mubr.bf16.mxu0 0
  %5974 = vmatmul.mubr.bf16.gmra.mxu0 %v5208
  %v5975 = vpop.f32.mrf.mxu0
  %v5976 = vadd.f32 %v5687, %v5975
  %v5977 = vpop.f32.mrf.mxu0
  %v5978 = vpop.f32.mrf.mxu0
  %v5979 = vadd.f32 %v5690, %v5978
  %v5980 = vpop.f32.mrf.mxu0
  %5981 = vmatprep.mubr.bf16.mxu0 0
  %5982 = vmatmul.mubr.bf16.gmra.mxu0 %v5211
  %v5983 = vpop.f32.mrf.mxu0
  %v5984 = vadd.f32 %v5695, %v5983
  %v5985 = vpop.f32.mrf.mxu0
  %v5986 = vpop.f32.mrf.mxu0
  %v5987 = vadd.f32 %v5698, %v5986
  %v5988 = vpop.f32.mrf.mxu0
  %5989 = vmatprep.mubr.bf16.mxu0 0
  %5990 = vmatmul.mubr.bf16.gmra.mxu0 %v5214
  %v5991 = vpop.f32.mrf.mxu0
  %v5992 = vadd.f32 %v5703, %v5991
  %v5993 = vpop.f32.mrf.mxu0
  %v5994 = vpop.f32.mrf.mxu0
  %v5995 = vadd.f32 %v5706, %v5994
  %v5996 = vpop.f32.mrf.mxu0
  %5997 = vmatprep.mubr.bf16.mxu0 0
  %5998 = vmatmul.mubr.bf16.gmra.mxu0 %v5217
  %v5999 = vpop.f32.mrf.mxu0
  %v6000 = vadd.f32 %v5711, %v5999
  %v6001 = vpop.f32.mrf.mxu0
  %v6002 = vpop.f32.mrf.mxu0
  %v6003 = vadd.f32 %v5714, %v6002
  %v6004 = vpop.f32.mrf.mxu0
  %6005 = vmatprep.mubr.bf16.mxu0 0
  %6006 = vmatmul.mubr.bf16.gmra.mxu0 %v5220
  %v6007 = vpop.f32.mrf.mxu0
  %v6008 = vadd.f32 %v5719, %v6007
  %v6009 = vpop.f32.mrf.mxu0
  %v6010 = vpop.f32.mrf.mxu0
  %v6011 = vadd.f32 %v5722, %v6010
  %v6012 = vpop.f32.mrf.mxu0
  %6013 = vmatprep.mubr.bf16.mxu0 0
  %6014 = vmatmul.mubr.bf16.gmra.mxu0 %v5223
  %v6015 = vpop.f32.mrf.mxu0
  %v6016 = vadd.f32 %v5727, %v6015
  %v6017 = vpop.f32.mrf.mxu0
  %v6018 = vpop.f32.mrf.mxu0
  %v6019 = vadd.f32 %v5730, %v6018
  %v6020 = vpop.f32.mrf.mxu0
  %6021 = vmatprep.mubr.bf16.mxu0 0
  %6022 = vmatmul.mubr.bf16.gmra.mxu0 %v5226
  %v6023 = vpop.f32.mrf.mxu0
  %v6024 = vadd.f32 %v5735, %v6023
  %v6025 = vpop.f32.mrf.mxu0
  %v6026 = vpop.f32.mrf.mxu0
  %v6027 = vadd.f32 %v5738, %v6026
  %v6028 = vpop.f32.mrf.mxu0
  %6029 = vmatprep.mubr.bf16.mxu0 0
  %6030 = vmatmul.mubr.bf16.gmra.mxu0 %v5229
  %v6031 = vpop.f32.mrf.mxu0
  %v6032 = vadd.f32 %v5743, %v6031
  %v6033 = vpop.f32.mrf.mxu0
  %v6034 = vpop.f32.mrf.mxu0
  %v6035 = vadd.f32 %v5746, %v6034
  %v6036 = vpop.f32.mrf.mxu0
  %6037 = vmatprep.mubr.bf16.mxu0 0
  %6038 = vmatmul.mubr.bf16.gmra.mxu0 %v5232
  %v6039 = vpop.f32.mrf.mxu0
  %v6040 = vadd.f32 %v5751, %v6039
  %v6041 = vpop.f32.mrf.mxu0
  %v6042 = vpop.f32.mrf.mxu0
  %v6043 = vadd.f32 %v5754, %v6042
  %v6044 = vpop.f32.mrf.mxu0
  %6045 = vmatprep.mubr.bf16.mxu0 0
  %6046 = vmatmul.mubr.bf16.gmra.mxu0 %v5235
  %v6047 = vpop.f32.mrf.mxu0
  %v6048 = vadd.f32 %v5759, %v6047
  %v6049 = vpop.f32.mrf.mxu0
  %v6050 = vpop.f32.mrf.mxu0
  %v6051 = vadd.f32 %v5762, %v6050
  %v6052 = vpop.f32.mrf.mxu0
  %6053 = vdwg.mxu0
  %v6054 = vadd.f32 %v4388, %v5800
  %v6055 = vadd.f32 %v4391, %v5803
  %v6056 = vadd.f32 %v4396, %v5808
  %v6057 = vadd.f32 %v4399, %v5811
  %v6058 = vadd.f32 %v4404, %v5816
  %v6059 = vadd.f32 %v4407, %v5819
  %v6060 = vadd.f32 %v4412, %v5824
  %v6061 = vadd.f32 %v4415, %v5827
  %v6062 = vadd.f32 %v4420, %v5832
  %v6063 = vadd.f32 %v4423, %v5835
  %v6064 = vadd.f32 %v4428, %v5840
  %v6065 = vadd.f32 %v4431, %v5843
  %v6066 = vadd.f32 %v4436, %v5848
  %v6067 = vadd.f32 %v4439, %v5851
  %v6068 = vadd.f32 %v4444, %v5856
  %v6069 = vadd.f32 %v4447, %v5859
  %v6070 = vadd.f32 %v4452, %v5864
  %v6071 = vadd.f32 %v4455, %v5867
  %v6072 = vadd.f32 %v4460, %v5872
  %v6073 = vadd.f32 %v4463, %v5875
  %v6074 = vadd.f32 %v4468, %v5880
  %v6075 = vadd.f32 %v4471, %v5883
  %v6076 = vadd.f32 %v4476, %v5888
  %v6077 = vadd.f32 %v4479, %v5891
  %v6078 = vadd.f32 %v4484, %v5896
  %v6079 = vadd.f32 %v4487, %v5899
  %v6080 = vadd.f32 %v4492, %v5904
  %v6081 = vadd.f32 %v4495, %v5907
  %v6082 = vadd.f32 %v4500, %v5912
  %v6083 = vadd.f32 %v4503, %v5915
  %v6084 = vadd.f32 %v4508, %v5920
  %v6085 = vadd.f32 %v4511, %v5923
  %v6086 = vadd.f32 %v4516, %v5928
  %v6087 = vadd.f32 %v4519, %v5931
  %v6088 = vadd.f32 %v4524, %v5936
  %v6089 = vadd.f32 %v4527, %v5939
  %v6090 = vadd.f32 %v4532, %v5944
  %v6091 = vadd.f32 %v4535, %v5947
  %v6092 = vadd.f32 %v4540, %v5952
  %v6093 = vadd.f32 %v4543, %v5955
  %v6094 = vadd.f32 %v4548, %v5960
  %v6095 = vadd.f32 %v4551, %v5963
  %v6096 = vadd.f32 %v4556, %v5968
  %v6097 = vadd.f32 %v4559, %v5971
  %v6098 = vadd.f32 %v4564, %v5976
  %v6099 = vadd.f32 %v4567, %v5979
  %v6100 = vadd.f32 %v4572, %v5984
  %v6101 = vadd.f32 %v4575, %v5987
  %v6102 = vadd.f32 %v4580, %v5992
  %v6103 = vadd.f32 %v4583, %v5995
  %v6104 = vadd.f32 %v4588, %v6000
  %v6105 = vadd.f32 %v4591, %v6003
  %v6106 = vadd.f32 %v4596, %v6008
  %v6107 = vadd.f32 %v4599, %v6011
  %v6108 = vadd.f32 %v4604, %v6016
  %v6109 = vadd.f32 %v4607, %v6019
  %v6110 = vadd.f32 %v4612, %v6024
  %v6111 = vadd.f32 %v4615, %v6027
  %v6112 = vadd.f32 %v4620, %v6032
  %v6113 = vadd.f32 %v4623, %v6035
  %v6114 = vadd.f32 %v4628, %v6040
  %v6115 = vadd.f32 %v4631, %v6043
  %v6116 = vadd.f32 %v4636, %v6048
  %v6117 = vadd.f32 %v4639, %v6051
  %v6118 = vld [vmem:[%s4] sm:$0x1]
  %v6120 = vlaneseq
  %v6121 = vshrl.u32 %v6120, 7
  %v6122 = vsub.s32 0, %v6121
  %v6123 = vrot.slane %v6118, %v6122
  %v6125 = vadd.f32 %v6054, %v6123
  %v6126 = vadd.f32 %v6055, %v6123
  %v6127 = vadd.f32 %v6056, %v6123
  %v6128 = vadd.f32 %v6057, %v6123
  %v6129 = vadd.f32 %v6058, %v6123
  %v6130 = vadd.f32 %v6059, %v6123
  %v6131 = vadd.f32 %v6060, %v6123
  %v6132 = vadd.f32 %v6061, %v6123
  %v6133 = vadd.f32 %v6062, %v6123
  %v6134 = vadd.f32 %v6063, %v6123
  %v6135 = vadd.f32 %v6064, %v6123
  %v6136 = vadd.f32 %v6065, %v6123
  %v6137 = vadd.f32 %v6066, %v6123
  %v6138 = vadd.f32 %v6067, %v6123
  %v6139 = vadd.f32 %v6068, %v6123
  %v6140 = vadd.f32 %v6069, %v6123
  %v6141 = vadd.f32 %v6070, %v6123
  %v6142 = vadd.f32 %v6071, %v6123
  %v6143 = vadd.f32 %v6072, %v6123
  %v6144 = vadd.f32 %v6073, %v6123
  %v6145 = vadd.f32 %v6074, %v6123
  %v6146 = vadd.f32 %v6075, %v6123
  %v6147 = vadd.f32 %v6076, %v6123
  %v6148 = vadd.f32 %v6077, %v6123
  %v6149 = vadd.f32 %v6078, %v6123
  %v6150 = vadd.f32 %v6079, %v6123
  %v6151 = vadd.f32 %v6080, %v6123
  %v6152 = vadd.f32 %v6081, %v6123
  %v6153 = vadd.f32 %v6082, %v6123
  %v6154 = vadd.f32 %v6083, %v6123
  %v6155 = vadd.f32 %v6084, %v6123
  %v6156 = vadd.f32 %v6085, %v6123
  %v6157 = vadd.f32 %v6086, %v6123
  %v6158 = vadd.f32 %v6087, %v6123
  %v6159 = vadd.f32 %v6088, %v6123
  %v6160 = vadd.f32 %v6089, %v6123
  %v6161 = vadd.f32 %v6090, %v6123
  %v6162 = vadd.f32 %v6091, %v6123
  %v6163 = vadd.f32 %v6092, %v6123
  %v6164 = vadd.f32 %v6093, %v6123
  %v6165 = vadd.f32 %v6094, %v6123
  %v6166 = vadd.f32 %v6095, %v6123
  %v6167 = vadd.f32 %v6096, %v6123
  %v6168 = vadd.f32 %v6097, %v6123
  %v6169 = vadd.f32 %v6098, %v6123
  %v6170 = vadd.f32 %v6099, %v6123
  %v6171 = vadd.f32 %v6100, %v6123
  %v6172 = vadd.f32 %v6101, %v6123
  %v6173 = vadd.f32 %v6102, %v6123
  %v6174 = vadd.f32 %v6103, %v6123
  %v6175 = vadd.f32 %v6104, %v6123
  %v6176 = vadd.f32 %v6105, %v6123
  %v6177 = vadd.f32 %v6106, %v6123
  %v6178 = vadd.f32 %v6107, %v6123
  %v6179 = vadd.f32 %v6108, %v6123
  %v6180 = vadd.f32 %v6109, %v6123
  %v6181 = vadd.f32 %v6110, %v6123
  %v6182 = vadd.f32 %v6111, %v6123
  %v6183 = vadd.f32 %v6112, %v6123
  %v6184 = vadd.f32 %v6113, %v6123
  %v6185 = vadd.f32 %v6114, %v6123
  %v6186 = vadd.f32 %v6115, %v6123
  %v6187 = vadd.f32 %v6116, %v6123
  %v6188 = vadd.f32 %v6117, %v6123
  %v6189 = vmax.f32 %v6125, 0.0
  %v6190 = vmax.f32 %v6126, 0.0
  %v6191 = vmax.f32 %v6127, 0.0
  %v6192 = vmax.f32 %v6128, 0.0
  %v6193 = vmax.f32 %v6129, 0.0
  %v6194 = vmax.f32 %v6130, 0.0
  %v6195 = vmax.f32 %v6131, 0.0
  %v6196 = vmax.f32 %v6132, 0.0
  %v6197 = vmax.f32 %v6133, 0.0
  %v6198 = vmax.f32 %v6134, 0.0
  %v6199 = vmax.f32 %v6135, 0.0
  %v6200 = vmax.f32 %v6136, 0.0
  %v6201 = vmax.f32 %v6137, 0.0
  %v6202 = vmax.f32 %v6138, 0.0
  %v6203 = vmax.f32 %v6139, 0.0
  %v6204 = vmax.f32 %v6140, 0.0
  %v6205 = vmax.f32 %v6141, 0.0
  %v6206 = vmax.f32 %v6142, 0.0
  %v6207 = vmax.f32 %v6143, 0.0
  %v6208 = vmax.f32 %v6144, 0.0
  %v6209 = vmax.f32 %v6145, 0.0
  %v6210 = vmax.f32 %v6146, 0.0
  %v6211 = vmax.f32 %v6147, 0.0
  %v6212 = vmax.f32 %v6148, 0.0
  %v6213 = vmax.f32 %v6149, 0.0
  %v6214 = vmax.f32 %v6150, 0.0
  %v6215 = vmax.f32 %v6151, 0.0
  %v6216 = vmax.f32 %v6152, 0.0
  %v6217 = vmax.f32 %v6153, 0.0
  %v6218 = vmax.f32 %v6154, 0.0
  %v6219 = vmax.f32 %v6155, 0.0
  %v6220 = vmax.f32 %v6156, 0.0
  %v6221 = vmax.f32 %v6157, 0.0
  %v6222 = vmax.f32 %v6158, 0.0
  %v6223 = vmax.f32 %v6159, 0.0
  %v6224 = vmax.f32 %v6160, 0.0
  %v6225 = vmax.f32 %v6161, 0.0
  %v6226 = vmax.f32 %v6162, 0.0
  %v6227 = vmax.f32 %v6163, 0.0
  %v6228 = vmax.f32 %v6164, 0.0
  %v6229 = vmax.f32 %v6165, 0.0
  %v6230 = vmax.f32 %v6166, 0.0
  %v6231 = vmax.f32 %v6167, 0.0
  %v6232 = vmax.f32 %v6168, 0.0
  %v6233 = vmax.f32 %v6169, 0.0
  %v6234 = vmax.f32 %v6170, 0.0
  %v6235 = vmax.f32 %v6171, 0.0
  %v6236 = vmax.f32 %v6172, 0.0
  %v6237 = vmax.f32 %v6173, 0.0
  %v6238 = vmax.f32 %v6174, 0.0
  %v6239 = vmax.f32 %v6175, 0.0
  %v6240 = vmax.f32 %v6176, 0.0
  %v6241 = vmax.f32 %v6177, 0.0
  %v6242 = vmax.f32 %v6178, 0.0
  %v6243 = vmax.f32 %v6179, 0.0
  %v6244 = vmax.f32 %v6180, 0.0
  %v6245 = vmax.f32 %v6181, 0.0
  %v6246 = vmax.f32 %v6182, 0.0
  %v6247 = vmax.f32 %v6183, 0.0
  %v6248 = vmax.f32 %v6184, 0.0
  %v6249 = vmax.f32 %v6185, 0.0
  %v6250 = vmax.f32 %v6186, 0.0
  %v6251 = vmax.f32 %v6187, 0.0
  %v6252 = vmax.f32 %v6188, 0.0
  %v6253 = vpack.c.bf16 %v6190, %v6189
  %v6254 = vpack.c.bf16 %v6192, %v6191
  %v6255 = vpack.c.bf16 %v6194, %v6193
  %v6256 = vpack.c.bf16 %v6196, %v6195
  %v6257 = vpack.c.bf16 %v6198, %v6197
  %v6258 = vpack.c.bf16 %v6200, %v6199
  %v6259 = vpack.c.bf16 %v6202, %v6201
  %v6260 = vpack.c.bf16 %v6204, %v6203
  %v6261 = vpack.c.bf16 %v6206, %v6205
  %v6262 = vpack.c.bf16 %v6208, %v6207
  %v6263 = vpack.c.bf16 %v6210, %v6209
  %v6264 = vpack.c.bf16 %v6212, %v6211
  %v6265 = vpack.c.bf16 %v6214, %v6213
  %v6266 = vpack.c.bf16 %v6216, %v6215
  %v6267 = vpack.c.bf16 %v6218, %v6217
  %v6268 = vpack.c.bf16 %v6220, %v6219
  %v6269 = vpack.c.bf16 %v6222, %v6221
  %v6270 = vpack.c.bf16 %v6224, %v6223
  %v6271 = vpack.c.bf16 %v6226, %v6225
  %v6272 = vpack.c.bf16 %v6228, %v6227
  %v6273 = vpack.c.bf16 %v6230, %v6229
  %v6274 = vpack.c.bf16 %v6232, %v6231
  %v6275 = vpack.c.bf16 %v6234, %v6233
  %v6276 = vpack.c.bf16 %v6236, %v6235
  %v6277 = vpack.c.bf16 %v6238, %v6237
  %v6278 = vpack.c.bf16 %v6240, %v6239
  %v6279 = vpack.c.bf16 %v6242, %v6241
  %v6280 = vpack.c.bf16 %v6244, %v6243
  %v6281 = vpack.c.bf16 %v6246, %v6245
  %v6282 = vpack.c.bf16 %v6248, %v6247
  %v6283 = vpack.c.bf16 %v6250, %v6249
  %v6284 = vpack.c.bf16 %v6252, %v6251
  %v6285 = vld [vmem:[%s5] sm:$0xf]
  %v6286 = vld [vmem:[%s5 + $0x4] sm:$0xf]
  %v6287 = vld [vmem:[%s5 + $0x8] sm:$0xf]
  %v6288 = vld [vmem:[%s5 + $0xc] sm:$0xf]
  %v6289 = vld [vmem:[%s5 + $0x10] sm:$0xf]
  %v6290 = vld [vmem:[%s5 + $0x14] sm:$0xf]
  %v6291 = vld [vmem:[%s5 + $0x18] sm:$0xf]
  %v6292 = vld [vmem:[%s5 + $0x1c] sm:$0xf]
  %v6293 = vld [vmem:[%s5 + $0x20] sm:$0xf]
  %v6294 = vld [vmem:[%s5 + $0x24] sm:$0xf]
  %v6295 = vld [vmem:[%s5 + $0x28] sm:$0xf]
  %v6296 = vld [vmem:[%s5 + $0x2c] sm:$0xf]
  %v6297 = vld [vmem:[%s5 + $0x30] sm:$0xf]
  %v6298 = vld [vmem:[%s5 + $0x34] sm:$0xf]
  %v6299 = vld [vmem:[%s5 + $0x38] sm:$0xf]
  %v6300 = vld [vmem:[%s5 + $0x3c] sm:$0xf]
  %v6301 = vld [vmem:[%s5 + $0x40] sm:$0x3]
  %v6302 = vld [vmem:[%s6] sm:$0x1]
  %v6304 = vlaneseq
  %v6305 = vshrl.u32 %v6304, 7
  %v6306 = vsub.s32 0, %v6305
  %v6307 = vrot.slane %v6302, %v6306
  %v6326 = vunpack.c.l.b16 %v6285
  %v6327 = vunpack.c.l.b16 %v6286
  %v6328 = vunpack.c.l.b16 %v6287
  %v6329 = vunpack.c.l.b16 %v6288
  %v6330 = vunpack.c.l.b16 %v6289
  %v6331 = vunpack.c.l.b16 %v6290
  %v6332 = vunpack.c.l.b16 %v6291
  %v6333 = vunpack.c.l.b16 %v6292
  %v6334 = vunpack.c.l.b16 %v6293
  %v6335 = vunpack.c.l.b16 %v6294
  %v6336 = vunpack.c.l.b16 %v6295
  %v6337 = vunpack.c.l.b16 %v6296
  %v6338 = vunpack.c.l.b16 %v6297
  %v6339 = vunpack.c.l.b16 %v6298
  %v6340 = vunpack.c.l.b16 %v6299
  %v6341 = vunpack.c.l.b16 %v6300
  %v6342 = vunpack.c.l.b16 %v6301
  %v6343 = vpack.c.b16 %v6327, %v6326
  %v6344 = vpack.c.b16 %v6329, %v6328
  %v6345 = vpack.c.b16 %v6331, %v6330
  %v6346 = vpack.c.b16 %v6333, %v6332
  %v6347 = vpack.c.b16 %v6335, %v6334
  %v6348 = vpack.c.b16 %v6337, %v6336
  %v6349 = vpack.c.b16 %v6339, %v6338
  %v6350 = vpack.c.b16 %v6341, %v6340
  %v6351 = vpack.c.b16 %v6342, %v6342
  %v6361 = vsel %vm228, %v6351, 0
  %6363 = vmatprep.subr.bf16.mxu0 0
  %6364 = vmatpush1.bf16.msra.mxu0 %v6350
  %6365 = vmatprep.subr.bf16.mxu0 0
  %6366 = vmatpush1.bf16.msra.mxu0 %v6349
  %6367 = vmatprep.subr.bf16.mxu0 0
  %6368 = vmatpush1.bf16.msra.mxu0 %v6348
  %6369 = vmatprep.subr.bf16.mxu0 0
  %6370 = vmatpush1.bf16.msra.mxu0 %v6347
  %6371 = vmatprep.subr.bf16.mxu0 0
  %6372 = vmatpush1.bf16.msra.mxu0 %v6346
  %6373 = vmatprep.subr.bf16.mxu0 0
  %6374 = vmatpush1.bf16.msra.mxu0 %v6345
  %6375 = vmatprep.subr.bf16.mxu0 0
  %6376 = vmatpush1.bf16.msra.mxu0 %v6344
  %6377 = vmatprep.subr.bf16.mxu0 0
  %6378 = vmatpush1.bf16.msra.mxu0 %v6343
  %6379 = vmatprep.subr.bf16.mxu0 0
  %6380 = vmatpush2.bf16.msra.mxu0 0
  %6381 = vmatprep.subr.bf16.mxu0 0
  %6382 = vmatpush2.bf16.msra.mxu0 0
  %6383 = vmatprep.subr.bf16.mxu0 0
  %6384 = vmatpush2.bf16.msra.mxu0 0
  %6385 = vmatprep.subr.bf16.mxu0 0
  %6386 = vmatpush2.bf16.msra.mxu0 0
  %6387 = vmatprep.subr.bf16.mxu0 0
  %6388 = vmatpush2.bf16.msra.mxu0 0
  %6389 = vmatprep.subr.bf16.mxu0 0
  %6390 = vmatpush2.bf16.msra.mxu0 0
  %6391 = vmatprep.subr.bf16.mxu0 0
  %6392 = vmatpush2.bf16.msra.mxu0 0
  %6393 = vmatprep.subr.bf16.mxu0 0
  %6394 = vmatpush2.bf16.msra.mxu0 %v6361
  %6395 = vmatprep.mubr.bf16.mxu0 %v133
  %6396 = vmatmul.mubr.bf16.gmra.mxu0 %v6253
  %v6397 = vpop.f32.mrf.mxu0
  %v6398 = vadd.f32 %v6307, %v6397
  %v6399 = vpop.f32.mrf.mxu0
  %v6400 = vpop.f32.mrf.mxu0
  %v6401 = vadd.f32 %v6307, %v6400
  %v6402 = vpop.f32.mrf.mxu0
  %6403 = vmatprep.mubr.bf16.mxu0 %v136
  %6404 = vmatmul.mubr.bf16.gmra.mxu0 %v6254
  %v6405 = vpop.f32.mrf.mxu0
  %v6406 = vadd.f32 %v6307, %v6405
  %v6407 = vpop.f32.mrf.mxu0
  %v6408 = vpop.f32.mrf.mxu0
  %v6409 = vadd.f32 %v6307, %v6408
  %v6410 = vpop.f32.mrf.mxu0
  %6411 = vmatprep.mubr.bf16.mxu0 %v139
  %6412 = vmatmul.mubr.bf16.gmra.mxu0 %v6255
  %v6413 = vpop.f32.mrf.mxu0
  %v6414 = vadd.f32 %v6307, %v6413
  %v6415 = vpop.f32.mrf.mxu0
  %v6416 = vpop.f32.mrf.mxu0
  %v6417 = vadd.f32 %v6307, %v6416
  %v6418 = vpop.f32.mrf.mxu0
  %6419 = vmatprep.mubr.bf16.mxu0 %v142
  %6420 = vmatmul.mubr.bf16.gmra.mxu0 %v6256
  %v6421 = vpop.f32.mrf.mxu0
  %v6422 = vadd.f32 %v6307, %v6421
  %v6423 = vpop.f32.mrf.mxu0
  %v6424 = vpop.f32.mrf.mxu0
  %v6425 = vadd.f32 %v6307, %v6424
  %v6426 = vpop.f32.mrf.mxu0
  %6427 = vmatprep.mubr.bf16.mxu0 %v145
  %6428 = vmatmul.mubr.bf16.gmra.mxu0 %v6257
  %v6429 = vpop.f32.mrf.mxu0
  %v6430 = vadd.f32 %v6307, %v6429
  %v6431 = vpop.f32.mrf.mxu0
  %v6432 = vpop.f32.mrf.mxu0
  %v6433 = vadd.f32 %v6307, %v6432
  %v6434 = vpop.f32.mrf.mxu0
  %6435 = vmatprep.mubr.bf16.mxu0 %v148
  %6436 = vmatmul.mubr.bf16.gmra.mxu0 %v6258
  %v6437 = vpop.f32.mrf.mxu0
  %v6438 = vadd.f32 %v6307, %v6437
  %v6439 = vpop.f32.mrf.mxu0
  %v6440 = vpop.f32.mrf.mxu0
  %v6441 = vadd.f32 %v6307, %v6440
  %v6442 = vpop.f32.mrf.mxu0
  %6443 = vmatprep.mubr.bf16.mxu0 %v151
  %6444 = vmatmul.mubr.bf16.gmra.mxu0 %v6259
  %v6445 = vpop.f32.mrf.mxu0
  %v6446 = vadd.f32 %v6307, %v6445
  %v6447 = vpop.f32.mrf.mxu0
  %v6448 = vpop.f32.mrf.mxu0
  %v6449 = vadd.f32 %v6307, %v6448
  %v6450 = vpop.f32.mrf.mxu0
  %6451 = vmatprep.mubr.bf16.mxu0 %v154
  %6452 = vmatmul.mubr.bf16.gmra.mxu0 %v6260
  %v6453 = vpop.f32.mrf.mxu0
  %v6454 = vadd.f32 %v6307, %v6453
  %v6455 = vpop.f32.mrf.mxu0
  %v6456 = vpop.f32.mrf.mxu0
  %v6457 = vadd.f32 %v6307, %v6456
  %v6458 = vpop.f32.mrf.mxu0
  %6459 = vmatprep.mubr.bf16.mxu0 %v157
  %6460 = vmatmul.mubr.bf16.gmra.mxu0 %v6261
  %v6461 = vpop.f32.mrf.mxu0
  %v6462 = vadd.f32 %v6307, %v6461
  %v6463 = vpop.f32.mrf.mxu0
  %v6464 = vpop.f32.mrf.mxu0
  %v6465 = vadd.f32 %v6307, %v6464
  %v6466 = vpop.f32.mrf.mxu0
  %6467 = vmatprep.mubr.bf16.mxu0 %v160
  %6468 = vmatmul.mubr.bf16.gmra.mxu0 %v6262
  %v6469 = vpop.f32.mrf.mxu0
  %v6470 = vadd.f32 %v6307, %v6469
  %v6471 = vpop.f32.mrf.mxu0
  %v6472 = vpop.f32.mrf.mxu0
  %v6473 = vadd.f32 %v6307, %v6472
  %v6474 = vpop.f32.mrf.mxu0
  %6475 = vmatprep.mubr.bf16.mxu0 %v163
  %6476 = vmatmul.mubr.bf16.gmra.mxu0 %v6263
  %v6477 = vpop.f32.mrf.mxu0
  %v6478 = vadd.f32 %v6307, %v6477
  %v6479 = vpop.f32.mrf.mxu0
  %v6480 = vpop.f32.mrf.mxu0
  %v6481 = vadd.f32 %v6307, %v6480
  %v6482 = vpop.f32.mrf.mxu0
  %6483 = vmatprep.mubr.bf16.mxu0 %v166
  %6484 = vmatmul.mubr.bf16.gmra.mxu0 %v6264
  %v6485 = vpop.f32.mrf.mxu0
  %v6486 = vadd.f32 %v6307, %v6485
  %v6487 = vpop.f32.mrf.mxu0
  %v6488 = vpop.f32.mrf.mxu0
  %v6489 = vadd.f32 %v6307, %v6488
  %v6490 = vpop.f32.mrf.mxu0
  %6491 = vmatprep.mubr.bf16.mxu0 %v169
  %6492 = vmatmul.mubr.bf16.gmra.mxu0 %v6265
  %v6493 = vpop.f32.mrf.mxu0
  %v6494 = vadd.f32 %v6307, %v6493
  %v6495 = vpop.f32.mrf.mxu0
  %v6496 = vpop.f32.mrf.mxu0
  %v6497 = vadd.f32 %v6307, %v6496
  %v6498 = vpop.f32.mrf.mxu0
  %6499 = vmatprep.mubr.bf16.mxu0 %v172
  %6500 = vmatmul.mubr.bf16.gmra.mxu0 %v6266
  %v6501 = vpop.f32.mrf.mxu0
  %v6502 = vadd.f32 %v6307, %v6501
  %v6503 = vpop.f32.mrf.mxu0
  %v6504 = vpop.f32.mrf.mxu0
  %v6505 = vadd.f32 %v6307, %v6504
  %v6506 = vpop.f32.mrf.mxu0
  %6507 = vmatprep.mubr.bf16.mxu0 %v175
  %6508 = vmatmul.mubr.bf16.gmra.mxu0 %v6267
  %v6509 = vpop.f32.mrf.mxu0
  %v6510 = vadd.f32 %v6307, %v6509
  %v6511 = vpop.f32.mrf.mxu0
  %v6512 = vpop.f32.mrf.mxu0
  %v6513 = vadd.f32 %v6307, %v6512
  %v6514 = vpop.f32.mrf.mxu0
  %6515 = vmatprep.mubr.bf16.mxu0 %v178
  %6516 = vmatmul.mubr.bf16.gmra.mxu0 %v6268
  %v6517 = vpop.f32.mrf.mxu0
  %v6518 = vadd.f32 %v6307, %v6517
  %v6519 = vpop.f32.mrf.mxu0
  %v6520 = vpop.f32.mrf.mxu0
  %v6521 = vadd.f32 %v6307, %v6520
  %v6522 = vpop.f32.mrf.mxu0
  %6523 = vmatprep.mubr.bf16.mxu0 %v181
  %6524 = vmatmul.mubr.bf16.gmra.mxu0 %v6269
  %v6525 = vpop.f32.mrf.mxu0
  %v6526 = vadd.f32 %v6307, %v6525
  %v6527 = vpop.f32.mrf.mxu0
  %v6528 = vpop.f32.mrf.mxu0
  %v6529 = vadd.f32 %v6307, %v6528
  %v6530 = vpop.f32.mrf.mxu0
  %6531 = vmatprep.mubr.bf16.mxu0 %v184
  %6532 = vmatmul.mubr.bf16.gmra.mxu0 %v6270
  %v6533 = vpop.f32.mrf.mxu0
  %v6534 = vadd.f32 %v6307, %v6533
  %v6535 = vpop.f32.mrf.mxu0
  %v6536 = vpop.f32.mrf.mxu0
  %v6537 = vadd.f32 %v6307, %v6536
  %v6538 = vpop.f32.mrf.mxu0
  %6539 = vmatprep.mubr.bf16.mxu0 %v187
  %6540 = vmatmul.mubr.bf16.gmra.mxu0 %v6271
  %v6541 = vpop.f32.mrf.mxu0
  %v6542 = vadd.f32 %v6307, %v6541
  %v6543 = vpop.f32.mrf.mxu0
  %v6544 = vpop.f32.mrf.mxu0
  %v6545 = vadd.f32 %v6307, %v6544
  %v6546 = vpop.f32.mrf.mxu0
  %6547 = vmatprep.mubr.bf16.mxu0 %v190
  %6548 = vmatmul.mubr.bf16.gmra.mxu0 %v6272
  %v6549 = vpop.f32.mrf.mxu0
  %v6550 = vadd.f32 %v6307, %v6549
  %v6551 = vpop.f32.mrf.mxu0
  %v6552 = vpop.f32.mrf.mxu0
  %v6553 = vadd.f32 %v6307, %v6552
  %v6554 = vpop.f32.mrf.mxu0
  %6555 = vmatprep.mubr.bf16.mxu0 %v193
  %6556 = vmatmul.mubr.bf16.gmra.mxu0 %v6273
  %v6557 = vpop.f32.mrf.mxu0
  %v6558 = vadd.f32 %v6307, %v6557
  %v6559 = vpop.f32.mrf.mxu0
  %v6560 = vpop.f32.mrf.mxu0
  %v6561 = vadd.f32 %v6307, %v6560
  %v6562 = vpop.f32.mrf.mxu0
  %6563 = vmatprep.mubr.bf16.mxu0 %v196
  %6564 = vmatmul.mubr.bf16.gmra.mxu0 %v6274
  %v6565 = vpop.f32.mrf.mxu0
  %v6566 = vadd.f32 %v6307, %v6565
  %v6567 = vpop.f32.mrf.mxu0
  %v6568 = vpop.f32.mrf.mxu0
  %v6569 = vadd.f32 %v6307, %v6568
  %v6570 = vpop.f32.mrf.mxu0
  %6571 = vmatprep.mubr.bf16.mxu0 %v199
  %6572 = vmatmul.mubr.bf16.gmra.mxu0 %v6275
  %v6573 = vpop.f32.mrf.mxu0
  %v6574 = vadd.f32 %v6307, %v6573
  %v6575 = vpop.f32.mrf.mxu0
  %v6576 = vpop.f32.mrf.mxu0
  %v6577 = vadd.f32 %v6307, %v6576
  %v6578 = vpop.f32.mrf.mxu0
  %6579 = vmatprep.mubr.bf16.mxu0 %v202
  %6580 = vmatmul.mubr.bf16.gmra.mxu0 %v6276
  %v6581 = vpop.f32.mrf.mxu0
  %v6582 = vadd.f32 %v6307, %v6581
  %v6583 = vpop.f32.mrf.mxu0
  %v6584 = vpop.f32.mrf.mxu0
  %v6585 = vadd.f32 %v6307, %v6584
  %v6586 = vpop.f32.mrf.mxu0
  %6587 = vmatprep.mubr.bf16.mxu0 %v205
  %6588 = vmatmul.mubr.bf16.gmra.mxu0 %v6277
  %v6589 = vpop.f32.mrf.mxu0
  %v6590 = vadd.f32 %v6307, %v6589
  %v6591 = vpop.f32.mrf.mxu0
  %v6592 = vpop.f32.mrf.mxu0
  %v6593 = vadd.f32 %v6307, %v6592
  %v6594 = vpop.f32.mrf.mxu0
  %6595 = vmatprep.mubr.bf16.mxu0 %v208
  %6596 = vmatmul.mubr.bf16.gmra.mxu0 %v6278
  %v6597 = vpop.f32.mrf.mxu0
  %v6598 = vadd.f32 %v6307, %v6597
  %v6599 = vpop.f32.mrf.mxu0
  %v6600 = vpop.f32.mrf.mxu0
  %v6601 = vadd.f32 %v6307, %v6600
  %v6602 = vpop.f32.mrf.mxu0
  %6603 = vmatprep.mubr.bf16.mxu0 %v211
  %6604 = vmatmul.mubr.bf16.gmra.mxu0 %v6279
  %v6605 = vpop.f32.mrf.mxu0
  %v6606 = vadd.f32 %v6307, %v6605
  %v6607 = vpop.f32.mrf.mxu0
  %v6608 = vpop.f32.mrf.mxu0
  %v6609 = vadd.f32 %v6307, %v6608
  %v6610 = vpop.f32.mrf.mxu0
  %6611 = vmatprep.mubr.bf16.mxu0 %v214
  %6612 = vmatmul.mubr.bf16.gmra.mxu0 %v6280
  %v6613 = vpop.f32.mrf.mxu0
  %v6614 = vadd.f32 %v6307, %v6613
  %v6615 = vpop.f32.mrf.mxu0
  %v6616 = vpop.f32.mrf.mxu0
  %v6617 = vadd.f32 %v6307, %v6616
  %v6618 = vpop.f32.mrf.mxu0
  %6619 = vmatprep.mubr.bf16.mxu0 %v217
  %6620 = vmatmul.mubr.bf16.gmra.mxu0 %v6281
  %v6621 = vpop.f32.mrf.mxu0
  %v6622 = vadd.f32 %v6307, %v6621
  %v6623 = vpop.f32.mrf.mxu0
  %v6624 = vpop.f32.mrf.mxu0
  %v6625 = vadd.f32 %v6307, %v6624
  %v6626 = vpop.f32.mrf.mxu0
  %6627 = vmatprep.mubr.bf16.mxu0 %v220
  %6628 = vmatmul.mubr.bf16.gmra.mxu0 %v6282
  %v6629 = vpop.f32.mrf.mxu0
  %v6630 = vadd.f32 %v6307, %v6629
  %v6631 = vpop.f32.mrf.mxu0
  %v6632 = vpop.f32.mrf.mxu0
  %v6633 = vadd.f32 %v6307, %v6632
  %v6634 = vpop.f32.mrf.mxu0
  %6635 = vmatprep.mubr.bf16.mxu0 %v223
  %6636 = vmatmul.mubr.bf16.gmra.mxu0 %v6283
  %v6637 = vpop.f32.mrf.mxu0
  %v6638 = vadd.f32 %v6307, %v6637
  %v6639 = vpop.f32.mrf.mxu0
  %v6640 = vpop.f32.mrf.mxu0
  %v6641 = vadd.f32 %v6307, %v6640
  %v6642 = vpop.f32.mrf.mxu0
  %6643 = vmatprep.mubr.bf16.mxu0 %v226
  %6644 = vmatmul.mubr.bf16.gmra.mxu0 %v6284
  %v6645 = vpop.f32.mrf.mxu0
  %v6646 = vadd.f32 %v6307, %v6645
  %v6647 = vpop.f32.mrf.mxu0
  %v6648 = vpop.f32.mrf.mxu0
  %v6649 = vadd.f32 %v6307, %v6648
  %v6650 = vpop.f32.mrf.mxu0
  %6651 = vdwg.mxu0
  %v6652 = vmax.f32 %v6398, 0.0
  %v6653 = vmax.f32 %v6401, 0.0
  %v6654 = vmax.f32 %v6406, 0.0
  %v6655 = vmax.f32 %v6409, 0.0
  %v6656 = vmax.f32 %v6414, 0.0
  %v6657 = vmax.f32 %v6417, 0.0
  %v6658 = vmax.f32 %v6422, 0.0
  %v6659 = vmax.f32 %v6425, 0.0
  %v6660 = vmax.f32 %v6430, 0.0
  %v6661 = vmax.f32 %v6433, 0.0
  %v6662 = vmax.f32 %v6438, 0.0
  %v6663 = vmax.f32 %v6441, 0.0
  %v6664 = vmax.f32 %v6446, 0.0
  %v6665 = vmax.f32 %v6449, 0.0
  %v6666 = vmax.f32 %v6454, 0.0
  %v6667 = vmax.f32 %v6457, 0.0
  %v6668 = vmax.f32 %v6462, 0.0
  %v6669 = vmax.f32 %v6465, 0.0
  %v6670 = vmax.f32 %v6470, 0.0
  %v6671 = vmax.f32 %v6473, 0.0
  %v6672 = vmax.f32 %v6478, 0.0
  %v6673 = vmax.f32 %v6481, 0.0
  %v6674 = vmax.f32 %v6486, 0.0
  %v6675 = vmax.f32 %v6489, 0.0
  %v6676 = vmax.f32 %v6494, 0.0
  %v6677 = vmax.f32 %v6497, 0.0
  %v6678 = vmax.f32 %v6502, 0.0
  %v6679 = vmax.f32 %v6505, 0.0
  %v6680 = vmax.f32 %v6510, 0.0
  %v6681 = vmax.f32 %v6513, 0.0
  %v6682 = vmax.f32 %v6518, 0.0
  %v6683 = vmax.f32 %v6521, 0.0
  %v6684 = vmax.f32 %v6526, 0.0
  %v6685 = vmax.f32 %v6529, 0.0
  %v6686 = vmax.f32 %v6534, 0.0
  %v6687 = vmax.f32 %v6537, 0.0
  %v6688 = vmax.f32 %v6542, 0.0
  %v6689 = vmax.f32 %v6545, 0.0
  %v6690 = vmax.f32 %v6550, 0.0
  %v6691 = vmax.f32 %v6553, 0.0
  %v6692 = vmax.f32 %v6558, 0.0
  %v6693 = vmax.f32 %v6561, 0.0
  %v6694 = vmax.f32 %v6566, 0.0
  %v6695 = vmax.f32 %v6569, 0.0
  %v6696 = vmax.f32 %v6574, 0.0
  %v6697 = vmax.f32 %v6577, 0.0
  %v6698 = vmax.f32 %v6582, 0.0
  %v6699 = vmax.f32 %v6585, 0.0
  %v6700 = vmax.f32 %v6590, 0.0
  %v6701 = vmax.f32 %v6593, 0.0
  %v6702 = vmax.f32 %v6598, 0.0
  %v6703 = vmax.f32 %v6601, 0.0
  %v6704 = vmax.f32 %v6606, 0.0
  %v6705 = vmax.f32 %v6609, 0.0
  %v6706 = vmax.f32 %v6614, 0.0
  %v6707 = vmax.f32 %v6617, 0.0
  %v6708 = vmax.f32 %v6622, 0.0
  %v6709 = vmax.f32 %v6625, 0.0
  %v6710 = vmax.f32 %v6630, 0.0
  %v6711 = vmax.f32 %v6633, 0.0
  %v6712 = vmax.f32 %v6638, 0.0
  %v6713 = vmax.f32 %v6641, 0.0
  %v6714 = vmax.f32 %v6646, 0.0
  %v6715 = vmax.f32 %v6649, 0.0
  %vm6716 = vcmask 130048
  %6717 = vst.msk [vmem:[%s7] sm:$0xff] %vm6716, %v6652
  %6718 = vst.msk [vmem:[%s7 + $0x8] sm:$0xff] %vm6716, %v6653
  %6719 = vst.msk [vmem:[%s7 + $0x10] sm:$0xff] %vm6716, %v6654
  %6720 = vst.msk [vmem:[%s7 + $0x18] sm:$0xff] %vm6716, %v6655
  %6721 = vst.msk [vmem:[%s7 + $0x20] sm:$0xff] %vm6716, %v6656
  %6722 = vst.msk [vmem:[%s7 + $0x28] sm:$0xff] %vm6716, %v6657
  %6723 = vst.msk [vmem:[%s7 + $0x30] sm:$0xff] %vm6716, %v6658
  %6724 = vst.msk [vmem:[%s7 + $0x38] sm:$0xff] %vm6716, %v6659
  %6725 = vst.msk [vmem:[%s7 + $0x40] sm:$0xff] %vm6716, %v6660
  %6726 = vst.msk [vmem:[%s7 + $0x48] sm:$0xff] %vm6716, %v6661
  %6727 = vst.msk [vmem:[%s7 + $0x50] sm:$0xff] %vm6716, %v6662
  %6728 = vst.msk [vmem:[%s7 + $0x58] sm:$0xff] %vm6716, %v6663
  %6729 = vst.msk [vmem:[%s7 + $0x60] sm:$0xff] %vm6716, %v6664
  %6730 = vst.msk [vmem:[%s7 + $0x68] sm:$0xff] %vm6716, %v6665
  %6731 = vst.msk [vmem:[%s7 + $0x70] sm:$0xff] %vm6716, %v6666
  %6732 = vst.msk [vmem:[%s7 + $0x78] sm:$0xff] %vm6716, %v6667
  %6733 = vst.msk [vmem:[%s7 + $0x80] sm:$0xff] %vm6716, %v6668
  %6734 = vst.msk [vmem:[%s7 + $0x88] sm:$0xff] %vm6716, %v6669
  %6735 = vst.msk [vmem:[%s7 + $0x90] sm:$0xff] %vm6716, %v6670
  %6736 = vst.msk [vmem:[%s7 + $0x98] sm:$0xff] %vm6716, %v6671
  %6737 = vst.msk [vmem:[%s7 + $0xa0] sm:$0xff] %vm6716, %v6672
  %6738 = vst.msk [vmem:[%s7 + $0xa8] sm:$0xff] %vm6716, %v6673
  %6739 = vst.msk [vmem:[%s7 + $0xb0] sm:$0xff] %vm6716, %v6674
  %6740 = vst.msk [vmem:[%s7 + $0xb8] sm:$0xff] %vm6716, %v6675
  %6741 = vst.msk [vmem:[%s7 + $0xc0] sm:$0xff] %vm6716, %v6676
  %6742 = vst.msk [vmem:[%s7 + $0xc8] sm:$0xff] %vm6716, %v6677
  %6743 = vst.msk [vmem:[%s7 + $0xd0] sm:$0xff] %vm6716, %v6678
  %6744 = vst.msk [vmem:[%s7 + $0xd8] sm:$0xff] %vm6716, %v6679
  %6745 = vst.msk [vmem:[%s7 + $0xe0] sm:$0xff] %vm6716, %v6680
  %6746 = vst.msk [vmem:[%s7 + $0xe8] sm:$0xff] %vm6716, %v6681
  %6747 = vst.msk [vmem:[%s7 + $0xf0] sm:$0xff] %vm6716, %v6682
  %6748 = vst.msk [vmem:[%s7 + $0xf8] sm:$0xff] %vm6716, %v6683
  %6749 = vst.msk [vmem:[%s7 + $0x100] sm:$0xff] %vm6716, %v6684
  %6750 = vst.msk [vmem:[%s7 + $0x108] sm:$0xff] %vm6716, %v6685
  %6751 = vst.msk [vmem:[%s7 + $0x110] sm:$0xff] %vm6716, %v6686
  %6752 = vst.msk [vmem:[%s7 + $0x118] sm:$0xff] %vm6716, %v6687
  %6753 = vst.msk [vmem:[%s7 + $0x120] sm:$0xff] %vm6716, %v6688
  %6754 = vst.msk [vmem:[%s7 + $0x128] sm:$0xff] %vm6716, %v6689
  %6755 = vst.msk [vmem:[%s7 + $0x130] sm:$0xff] %vm6716, %v6690
  %6756 = vst.msk [vmem:[%s7 + $0x138] sm:$0xff] %vm6716, %v6691
  %6757 = vst.msk [vmem:[%s7 + $0x140] sm:$0xff] %vm6716, %v6692
  %6758 = vst.msk [vmem:[%s7 + $0x148] sm:$0xff] %vm6716, %v6693
  %6759 = vst.msk [vmem:[%s7 + $0x150] sm:$0xff] %vm6716, %v6694
  %6760 = vst.msk [vmem:[%s7 + $0x158] sm:$0xff] %vm6716, %v6695
  %6761 = vst.msk [vmem:[%s7 + $0x160] sm:$0xff] %vm6716, %v6696
  %6762 = vst.msk [vmem:[%s7 + $0x168] sm:$0xff] %vm6716, %v6697
  %6763 = vst.msk [vmem:[%s7 + $0x170] sm:$0xff] %vm6716, %v6698
  %6764 = vst.msk [vmem:[%s7 + $0x178] sm:$0xff] %vm6716, %v6699
  %6765 = vst.msk [vmem:[%s7 + $0x180] sm:$0xff] %vm6716, %v6700
  %6766 = vst.msk [vmem:[%s7 + $0x188] sm:$0xff] %vm6716, %v6701
  %6767 = vst.msk [vmem:[%s7 + $0x190] sm:$0xff] %vm6716, %v6702
  %6768 = vst.msk [vmem:[%s7 + $0x198] sm:$0xff] %vm6716, %v6703
  %6769 = vst.msk [vmem:[%s7 + $0x1a0] sm:$0xff] %vm6716, %v6704
  %6770 = vst.msk [vmem:[%s7 + $0x1a8] sm:$0xff] %vm6716, %v6705
  %6771 = vst.msk [vmem:[%s7 + $0x1b0] sm:$0xff] %vm6716, %v6706
  %6772 = vst.msk [vmem:[%s7 + $0x1b8] sm:$0xff] %vm6716, %v6707
  %6773 = vst.msk [vmem:[%s7 + $0x1c0] sm:$0xff] %vm6716, %v6708
  %6774 = vst.msk [vmem:[%s7 + $0x1c8] sm:$0xff] %vm6716, %v6709
  %6775 = vst.msk [vmem:[%s7 + $0x1d0] sm:$0xff] %vm6716, %v6710
  %6776 = vst.msk [vmem:[%s7 + $0x1d8] sm:$0xff] %vm6716, %v6711
  %6777 = vst.msk [vmem:[%s7 + $0x1e0] sm:$0xff] %vm6716, %v6712
  %6778 = vst.msk [vmem:[%s7 + $0x1e8] sm:$0xff] %vm6716, %v6713
  %6779 = vst.msk [vmem:[%s7 + $0x1f0] sm:$0xff] %vm6716, %v6714
  %6780 = vst.msk [vmem:[%s7 + $0x1f8] sm:$0xff] %vm6716, %v6715
  // Predicated region
  $region30: #{bottleneck_forward.1} parent=0 // pred_check
    _
  $region31: #{bottleneck_forward.1} parent=0 // pred_check_branch
    %6782 = sbr.rel (0) target = $region33
  $region32: #{bottleneck_forward.1} parent=0 // pred_region
    _
  $region33: #{bottleneck_forward.1} parent=0 // pred_fallthru
    _
  // Predicated region
  $region34: #{bottleneck_forward.1} parent=0 // pred_check
    _
  $region35: #{bottleneck_forward.1} parent=0 // pred_check_branch
    %6784 = sbr.rel (0) target = $region37
  $region36: #{bottleneck_forward.1} parent=0 // pred_region
    _
  $region37: #{bottleneck_forward.1} parent=0 // pred_fallthru
    _

</llo_original>
